<compile_context>
chip_gen: v6e
topology: v6e:2x2x1
jax: 0.10.0
libtpu: 0.0.40
codegen_flags: <defaults>
</compile_context>

<pallas_src>
import functools

import jax
import jax.numpy as jnp
import numpy as np
from jax.experimental import pallas as pl
from jax.experimental.pallas import tpu as pltpu

_BN_EPS = 1e-5


# ---------------------------------------------------------------------------
# Static helpers for the roll-based im2col
# ---------------------------------------------------------------------------
def _pick_tb(n, max_tb=8):
    """Largest divisor of n that is <= max_tb and leaves >= 2 grid steps (if possible)."""
    cands = [t for t in range(1, min(max_tb, n) + 1) if n % t == 0 and n // t >= 2]
    return max(cands) if cands else n


def _tap_shifts(H, W):
    """Lane-roll amounts for the 9 taps of a 3x3 / pad-1 conv on the flattened HW axis.

    Tap k = dy*3+dx reads in[y+dy-1, x+dx-1] = flat[p + (dy-1)*W + (dx-1)],
    i.e. jnp.roll by -((dy-1)*W + (dx-1)).
    """
    HW = H * W
    return [(-((dy - 1) * W + (dx - 1))) % HW for dy in range(3) for dx in range(3)]


def _tap_masks_np(H, W):
    """(9, H*W) f32 0/1 masks zeroing tap positions that fall in the 1-pixel pad halo."""
    row = np.repeat(np.arange(H), W)
    col = np.tile(np.arange(W), H)
    ms = []
    for dy in range(3):
        for dx in range(3):
            m = np.ones(H * W, np.float32)
            if dy == 0:
                m *= (row >= 1)
            if dy == 2:
                m *= (row <= H - 2)
            if dx == 0:
                m *= (col >= 1)
            if dx == 2:
                m *= (col <= W - 2)
            ms.append(m)
    return np.stack(ms).astype(np.float32)


def _im2col_lane_major(patch_ref, x32, m_ref, shifts, c):
    """Fill patch_ref (9c, HW) bf16 with the 9 shifted + edge-masked taps of x32 (c, HW) f32."""
    for k, shift in enumerate(shifts):
        tap = x32 if shift == 0 else pltpu.roll(x32, shift, axis=1)
        if k != 4:                                   # center tap never touches the halo
            tap = tap * m_ref[k:k + 1, :]
        patch_ref[k * c:(k + 1) * c, :] = tap.astype(patch_ref.dtype)


# ---------------------------------------------------------------------------
# Stage 1: conv1 (3x3, stride 1, pad 1, no bias) + per-tile BN partial sums
# ---------------------------------------------------------------------------
def _conv1_kernel(H, W, x_ref, w_ref, m_ref, z_ref, s_ref, ss_ref, patch_ref):
    # x_ref: (TB, Cin, HW) f32   w_ref: (Cout, 9*Cin) bf16   m_ref: (9, HW) f32
    # z_ref: (TB, Cout, HW) bf16 s_ref/ss_ref: (1, Cout, 1) f32
    # patch_ref: VMEM (9*Cin, HW) bf16
    tb_n, cin, _ = x_ref.shape
    cout = w_ref.shape[0]
    shifts = _tap_shifts(H, W)

    ssum = jnp.zeros((cout, 1), jnp.float32)
    sssum = jnp.zeros((cout, 1), jnp.float32)
    for tb in range(tb_n):
        _im2col_lane_major(patch_ref, x_ref[tb], m_ref, shifts, cin)
        acc = jnp.dot(w_ref[...], patch_ref[...],
                      preferred_element_type=jnp.float32)          # (Cout, HW), lane-dense
        z_ref[tb] = acc.astype(z_ref.dtype)                        # bf16 HBM round trip
        ssum = ssum + jnp.sum(acc, axis=1, keepdims=True)          # exact f32 BN partials
        sssum = sssum + jnp.sum(acc * acc, axis=1, keepdims=True)
    s_ref[...] = ssum[None]
    ss_ref[...] = sssum[None]


# ---------------------------------------------------------------------------
# Stage 2: bn1 (global scale/shift) + tanh + conv2 + per-tile BN partial sums
# ---------------------------------------------------------------------------
def _bn1_conv2_kernel(H, W, z1_ref, sc_ref, sh_ref, w_ref, m_ref,
                      z2_ref, s_ref, ss_ref, patch_ref):
    # z1_ref: (TB, C, HW) bf16   sc_ref/sh_ref: (C, 1) f32   w_ref: (C, 9*C) bf16
    # m_ref: (9, HW) f32         z2_ref: (TB, C, HW) bf16    s_ref/ss_ref: (1, C, 1) f32
    # patch_ref: VMEM (9*C, HW) bf16
    tb_n, c, _ = z1_ref.shape
    shifts = _tap_shifts(H, W)
    sc = sc_ref[...]
    sh = sh_ref[...]

    ssum = jnp.zeros((c, 1), jnp.float32)
    sssum = jnp.zeros((c, 1), jnp.float32)
    for tb in range(tb_n):
        act = jnp.tanh(z1_ref[tb].astype(jnp.float32) * sc + sh)   # (C, HW) f32
        _im2col_lane_major(patch_ref, act, m_ref, shifts, c)
        acc = jnp.dot(w_ref[...], patch_ref[...],
                      preferred_element_type=jnp.float32)
        z2_ref[tb] = acc.astype(z2_ref.dtype)                      # bf16 HBM round trip
        ssum = ssum + jnp.sum(acc, axis=1, keepdims=True)
        sssum = sssum + jnp.sum(acc * acc, axis=1, keepdims=True)
    s_ref[...] = ssum[None]
    ss_ref[...] = sssum[None]


# ---------------------------------------------------------------------------
# Stage 3: bn2 (global scale/shift) + residual add + tanh (lane-dense elementwise)
# ---------------------------------------------------------------------------
def _bn2_residual_kernel(z2_ref, x_ref, sc_ref, sh_ref, out_ref):
    # z2_ref: (TB, C, HW) bf16   x_ref/out_ref: (TB, C, HW) f32   sc/sh: (C, 1) f32
    sc = sc_ref[...][None]
    sh = sh_ref[...][None]
    out_ref[...] = jnp.tanh(
        z2_ref[...].astype(jnp.float32) * sc + sh + x_ref[...]
    ).astype(out_ref.dtype)


# ---------------------------------------------------------------------------
# Wrapper
# ---------------------------------------------------------------------------
@jax.jit
def basic_block_forward(x_nchw, w1_oihw, g1, b1, w2_oihw, g2, b2):
    """x_nchw: (N, C, H, W) f32; conv weights in PyTorch OIHW layout."""
    N, Cin, H, W = x_nchw.shape
    Cout = w1_oihw.shape[0]
    assert Cin == Cout, "downsample=None requires in_channel == out_channel"
    HW = H * W
    TB = _pick_tb(N)
    G = N // TB
    cnt = float(N * HW)

    # Layout glue (all cheap): NCHW flattens to channel-major (N, C, HW) for free,
    # weights go tap-major (Cout, 9*Cin) bf16 with column k*Cin + i, k = dy*3+dx.
    x_flat = x_nchw.reshape(N, Cin, HW)
    w1t = jnp.transpose(w1_oihw, (0, 2, 3, 1)).reshape(Cout, 9 * Cin).astype(jnp.bfloat16)
    w2t = jnp.transpose(w2_oihw, (0, 2, 3, 1)).reshape(Cout, 9 * Cout).astype(jnp.bfloat16)
    masks = jnp.asarray(_tap_masks_np(H, W))                       # (9, HW) f32

    par = pltpu.CompilerParams(dimension_semantics=("parallel",))
    samp = lambda n: (n, 0, 0)       # batch-tiled 3-D blocks
    bcast = lambda n: (0, 0)         # grid-invariant 2-D blocks (weights/masks/scales)

    # -------- stage 1: conv1, tiled over batch --------
    z1, s1, ss1 = pl.pallas_call(
        functools.partial(_conv1_kernel, H, W),
        out_shape=(jax.ShapeDtypeStruct((N, Cout, HW), jnp.bfloat16),
                   jax.ShapeDtypeStruct((G, Cout, 1), jnp.float32),
                   jax.ShapeDtypeStruct((G, Cout, 1), jnp.float32)),
        grid=(G,),
        in_specs=[pl.BlockSpec((TB, Cin, HW), samp),
                  pl.BlockSpec((Cout, 9 * Cin), bcast),
                  pl.BlockSpec((9, HW), bcast)],
        out_specs=(pl.BlockSpec((TB, Cout, HW), samp),
                   pl.BlockSpec((1, Cout, 1), samp),
                   pl.BlockSpec((1, Cout, 1), samp)),
        scratch_shapes=[pltpu.VMEM((9 * Cin, HW), jnp.bfloat16)],
        compiler_params=par,
    )(x_flat, w1t, masks)

    # bn1 global stats (tiny per-channel reduction in JAX glue)
    mean1 = jnp.sum(s1, axis=0) / cnt                              # (Cout, 1)
    var1 = jnp.sum(ss1, axis=0) / cnt - mean1 * mean1
    inv1 = g1.reshape(Cout, 1) * jax.lax.rsqrt(var1 + _BN_EPS)
    sc1 = inv1
    sh1 = b1.reshape(Cout, 1) - mean1 * inv1

    # -------- stage 2: bn1 + tanh + conv2, tiled over batch --------
    z2, s2, ss2 = pl.pallas_call(
        functools.partial(_bn1_conv2_kernel, H, W),
        out_shape=(jax.ShapeDtypeStruct((N, Cout, HW), jnp.bfloat16),
                   jax.ShapeDtypeStruct((G, Cout, 1), jnp.float32),
                   jax.ShapeDtypeStruct((G, Cout, 1), jnp.float32)),
        grid=(G,),
        in_specs=[pl.BlockSpec((TB, Cout, HW), samp),
                  pl.BlockSpec((Cout, 1), bcast),
                  pl.BlockSpec((Cout, 1), bcast),
                  pl.BlockSpec((Cout, 9 * Cout), bcast),
                  pl.BlockSpec((9, HW), bcast)],
        out_specs=(pl.BlockSpec((TB, Cout, HW), samp),
                   pl.BlockSpec((1, Cout, 1), samp),
                   pl.BlockSpec((1, Cout, 1), samp)),
        scratch_shapes=[pltpu.VMEM((9 * Cout, HW), jnp.bfloat16)],
        compiler_params=par,
    )(z1, sc1, sh1, w2t, masks)

    # bn2 global stats
    mean2 = jnp.sum(s2, axis=0) / cnt
    var2 = jnp.sum(ss2, axis=0) / cnt - mean2 * mean2
    inv2 = g2.reshape(Cout, 1) * jax.lax.rsqrt(var2 + _BN_EPS)
    sc2 = inv2
    sh2 = b2.reshape(Cout, 1) - mean2 * inv2

    # -------- stage 3: bn2 + residual + tanh, tiled over batch --------
    out_flat = pl.pallas_call(
        _bn2_residual_kernel,
        out_shape=jax.ShapeDtypeStruct((N, Cout, HW), jnp.float32),
        grid=(G,),
        in_specs=[pl.BlockSpec((TB, Cout, HW), samp),
                  pl.BlockSpec((TB, Cin, HW), samp),
                  pl.BlockSpec((Cout, 1), bcast),
                  pl.BlockSpec((Cout, 1), bcast)],
        out_specs=pl.BlockSpec((TB, Cout, HW), samp),
        compiler_params=par,
    )(z2, x_flat, sc2, sh2)

    return out_flat.reshape(N, Cout, H, W)                         # already NCHW


# ---------------------------------------------------------------------------
# Pure-JAX reference of the PyTorch forward (NCHW, f32)
# ---------------------------------------------------------------------------
def _reference(x, w1, g1, b1, w2, g2, b2):
    def conv(a, w):
        return jax.lax.conv_general_dilated(
            a, w, window_strides=(1, 1), padding=((1, 1), (1, 1)),
            dimension_numbers=("NCHW", "OIHW", "NCHW"))

    def bn(a, g, b):
        m = jnp.mean(a, axis=(0, 2, 3), keepdims=True)
        v = jnp.mean((a - m) ** 2, axis=(0, 2, 3), keepdims=True)
        return (a - m) * jax.lax.rsqrt(v + _BN_EPS) * g.reshape(1, -1, 1, 1) \
            + b.reshape(1, -1, 1, 1)

    h = jnp.tanh(bn(conv(x, w1), g1, b1))
    return jnp.tanh(bn(conv(h, w2), g2, b2) + x)


if __name__ == "__main__":
    key = jax.random.PRNGKey(0)
    N, C, H, W = 2, 32, 16, 16
    ks = jax.random.split(key, 7)

    x = jax.random.normal(ks[0], (N, C, H, W), jnp.float32)
    w1 = 0.1 * jax.random.normal(ks[1], (C, C, 3, 3), jnp.float32)   # conv1.weight
    w2 = 0.1 * jax.random.normal(ks[2], (C, C, 3, 3), jnp.float32)   # conv2.weight
    g1 = 1.0 + 0.1 * jax.random.normal(ks[3], (C,), jnp.float32)     # bn1.weight
    b1 = 0.1 * jax.random.normal(ks[4], (C,), jnp.float32)           # bn1.bias
    g2 = 1.0 + 0.1 * jax.random.normal(ks[5], (C,), jnp.float32)     # bn2.weight
    b2 = 0.1 * jax.random.normal(ks[6], (C,), jnp.float32)           # bn2.bias

    out = jax.block_until_ready(basic_block_forward(x, w1, g1, b1, w2, g2, b2))
    ref = _reference(x, w1, g1, b1, w2, g2, b2)

    assert out.shape == (N, C, H, W)
    err = float(np.max(np.abs(np.asarray(out) - np.asarray(ref))))
    # bf16 MXU inputs / bf16 intermediates (f32 accumulation + f32 BN stats) vs
    # an all-f32 reference -> 2e-2 tolerance.
    assert np.allclose(np.asarray(out), np.asarray(ref), atol=2e-2, rtol=2e-2), err

    print("KERNEL_OK")
</pallas_src>

<mosaic_0001>
module attributes {stable_mosaic.version = 11 : i64} {
  func.func @_conv1_kernel(%arg0: i32, %arg1: memref<1x32x256xf32, #tpu.memory_space<vmem>>, %arg2: memref<32x288xbf16, #tpu.memory_space<vmem>>, %arg3: memref<9x256xf32, #tpu.memory_space<vmem>>, %arg4: memref<1x32x256xbf16, #tpu.memory_space<vmem>>, %arg5: memref<1x32x1xf32, #tpu.memory_space<vmem>>, %arg6: memref<1x32x1xf32, #tpu.memory_space<vmem>>, %arg7: memref<288x256xbf16, #tpu.memory_space<vmem>>) attributes {dimension_semantics = [#tpu.dimension_semantics<parallel>], iteration_bounds = array<i64: 2>, scalar_prefetch = 0 : i64, scratch_operands = 1 : i64, tpu.core_type = #tpu.core_type<tc>, window_params = [{transform_indices = @transform_0, window_bounds = array<i64: 1, 32, 256>}, {pipeline_mode = #tpu.pipeline_mode<synchronous>, transform_indices = @transform_1, window_bounds = array<i64: 32, 288>}, {pipeline_mode = #tpu.pipeline_mode<synchronous>, transform_indices = @transform_2, window_bounds = array<i64: 9, 256>}, {transform_indices = @transform_3, window_bounds = array<i64: 1, 32, 256>}, {transform_indices = @transform_4, window_bounds = array<i64: 1, 32, 1>}, {transform_indices = @transform_5, window_bounds = array<i64: 1, 32, 1>}]} {
    %cst = arith.constant 0.000000e+00 : f32
    %0 = vector.broadcast %cst : f32 to vector<32x1xf32>
    %cst_0 = arith.constant 0.000000e+00 : f32
    %1 = vector.broadcast %cst_0 : f32 to vector<32x1xf32>
    %c0 = arith.constant 0 : index
    %c0_1 = arith.constant 0 : index
    %c0_2 = arith.constant 0 : index
    %2 = vector.load %arg1[%c0, %c0_1, %c0_2] : memref<1x32x256xf32, #tpu.memory_space<vmem>>, vector<1x32x256xf32>
    %3 = vector.shape_cast %2 : vector<1x32x256xf32> to vector<32x256xf32>
    %c17_i32 = arith.constant 17 : i32
    %4 = tpu.dynamic_rotate %3 by %c17_i32 dim 1 : vector<32x256xf32>, i32 -> vector<32x256xf32>
    %c0_3 = arith.constant 0 : index
    %c0_4 = arith.constant 0 : index
    %5 = vector.load %arg3[%c0_3, %c0_4] : memref<9x256xf32, #tpu.memory_space<vmem>>, vector<1x256xf32>
    %6 = vector.broadcast %5 : vector<1x256xf32> to vector<32x256xf32>
    %7 = arith.mulf %4, %6 : vector<32x256xf32>
    %8 = arith.truncf %7 : vector<32x256xf32> to vector<32x256xbf16>
    %c0_5 = arith.constant 0 : index
    %c0_6 = arith.constant 0 : index
    %9 = vector.load %arg7[%c0_5, %c0_6] : memref<288x256xbf16, #tpu.memory_space<vmem>>, vector<32x256xbf16>
    tpu.vector_store %arg7[%c0_5, %c0_6], %8 {strides = array<i32>} : memref<288x256xbf16, #tpu.memory_space<vmem>>, vector<32x256xbf16>,
    %c16_i32 = arith.constant 16 : i32
    %10 = tpu.dynamic_rotate %3 by %c16_i32 dim 1 : vector<32x256xf32>, i32 -> vector<32x256xf32>
    %c1 = arith.constant 1 : index
    %c0_7 = arith.constant 0 : index
    %11 = vector.load %arg3[%c1, %c0_7] : memref<9x256xf32, #tpu.memory_space<vmem>>, vector<1x256xf32>
    %12 = vector.broadcast %11 : vector<1x256xf32> to vector<32x256xf32>
    %13 = arith.mulf %10, %12 : vector<32x256xf32>
    %14 = arith.truncf %13 : vector<32x256xf32> to vector<32x256xbf16>
    %c32 = arith.constant 32 : index
    %c0_8 = arith.constant 0 : index
    %15 = vector.load %arg7[%c32, %c0_8] : memref<288x256xbf16, #tpu.memory_space<vmem>>, vector<32x256xbf16>
    tpu.vector_store %arg7[%c32, %c0_8], %14 {strides = array<i32>} : memref<288x256xbf16, #tpu.memory_space<vmem>>, vector<32x256xbf16>,
    %c15_i32 = arith.constant 15 : i32
    %16 = tpu.dynamic_rotate %3 by %c15_i32 dim 1 : vector<32x256xf32>, i32 -> vector<32x256xf32>
    %c2 = arith.constant 2 : index
    %c0_9 = arith.constant 0 : index
    %17 = vector.load %arg3[%c2, %c0_9] : memref<9x256xf32, #tpu.memory_space<vmem>>, vector<1x256xf32>
    %18 = vector.broadcast %17 : vector<1x256xf32> to vector<32x256xf32>
    %19 = arith.mulf %16, %18 : vector<32x256xf32>
    %20 = arith.truncf %19 : vector<32x256xf32> to vector<32x256xbf16>
    %c64 = arith.constant 64 : index
    %c0_10 = arith.constant 0 : index
    %21 = vector.load %arg7[%c64, %c0_10] : memref<288x256xbf16, #tpu.memory_space<vmem>>, vector<32x256xbf16>
    tpu.vector_store %arg7[%c64, %c0_10], %20 {strides = array<i32>} : memref<288x256xbf16, #tpu.memory_space<vmem>>, vector<32x256xbf16>,
    %c1_i32 = arith.constant 1 : i32
    %22 = tpu.dynamic_rotate %3 by %c1_i32 dim 1 : vector<32x256xf32>, i32 -> vector<32x256xf32>
    %c3 = arith.constant 3 : index
    %c0_11 = arith.constant 0 : index
    %23 = vector.load %arg3[%c3, %c0_11] : memref<9x256xf32, #tpu.memory_space<vmem>>, vector<1x256xf32>
    %24 = vector.broadcast %23 : vector<1x256xf32> to vector<32x256xf32>
    %25 = arith.mulf %22, %24 : vector<32x256xf32>
    %26 = arith.truncf %25 : vector<32x256xf32> to vector<32x256xbf16>
    %c96 = arith.constant 96 : index
    %c0_12 = arith.constant 0 : index
    %27 = vector.load %arg7[%c96, %c0_12] : memref<288x256xbf16, #tpu.memory_space<vmem>>, vector<32x256xbf16>
    tpu.vector_store %arg7[%c96, %c0_12], %26 {strides = array<i32>} : memref<288x256xbf16, #tpu.memory_space<vmem>>, vector<32x256xbf16>,
    %28 = arith.truncf %3 : vector<32x256xf32> to vector<32x256xbf16>
    %c128 = arith.constant 128 : index
    %c0_13 = arith.constant 0 : index
    %29 = vector.load %arg7[%c128, %c0_13] : memref<288x256xbf16, #tpu.memory_space<vmem>>, vector<32x256xbf16>
    tpu.vector_store %arg7[%c128, %c0_13], %28 {strides = array<i32>} : memref<288x256xbf16, #tpu.memory_space<vmem>>, vector<32x256xbf16>,
    %c255_i32 = arith.constant 255 : i32
    %30 = tpu.dynamic_rotate %3 by %c255_i32 dim 1 : vector<32x256xf32>, i32 -> vector<32x256xf32>
    %c5 = arith.constant 5 : index
    %c0_14 = arith.constant 0 : index
    %31 = vector.load %arg3[%c5, %c0_14] : memref<9x256xf32, #tpu.memory_space<vmem>>, vector<1x256xf32>
    %32 = vector.broadcast %31 : vector<1x256xf32> to vector<32x256xf32>
    %33 = arith.mulf %30, %32 : vector<32x256xf32>
    %34 = arith.truncf %33 : vector<32x256xf32> to vector<32x256xbf16>
    %c160 = arith.constant 160 : index
    %c0_15 = arith.constant 0 : index
    %35 = vector.load %arg7[%c160, %c0_15] : memref<288x256xbf16, #tpu.memory_space<vmem>>, vector<32x256xbf16>
    tpu.vector_store %arg7[%c160, %c0_15], %34 {strides = array<i32>} : memref<288x256xbf16, #tpu.memory_space<vmem>>, vector<32x256xbf16>,
    %c241_i32 = arith.constant 241 : i32
    %36 = tpu.dynamic_rotate %3 by %c241_i32 dim 1 : vector<32x256xf32>, i32 -> vector<32x256xf32>
    %c6 = arith.constant 6 : index
    %c0_16 = arith.constant 0 : index
    %37 = vector.load %arg3[%c6, %c0_16] : memref<9x256xf32, #tpu.memory_space<vmem>>, vector<1x256xf32>
    %38 = vector.broadcast %37 : vector<1x256xf32> to vector<32x256xf32>
    %39 = arith.mulf %36, %38 : vector<32x256xf32>
    %40 = arith.truncf %39 : vector<32x256xf32> to vector<32x256xbf16>
    %c192 = arith.constant 192 : index
    %c0_17 = arith.constant 0 : index
    %41 = vector.load %arg7[%c192, %c0_17] : memref<288x256xbf16, #tpu.memory_space<vmem>>, vector<32x256xbf16>
    tpu.vector_store %arg7[%c192, %c0_17], %40 {strides = array<i32>} : memref<288x256xbf16, #tpu.memory_space<vmem>>, vector<32x256xbf16>,
    %c240_i32 = arith.constant 240 : i32
    %42 = tpu.dynamic_rotate %3 by %c240_i32 dim 1 : vector<32x256xf32>, i32 -> vector<32x256xf32>
    %c7 = arith.constant 7 : index
    %c0_18 = arith.constant 0 : index
    %43 = vector.load %arg3[%c7, %c0_18] : memref<9x256xf32, #tpu.memory_space<vmem>>, vector<1x256xf32>
    %44 = vector.broadcast %43 : vector<1x256xf32> to vector<32x256xf32>
    %45 = arith.mulf %42, %44 : vector<32x256xf32>
    %46 = arith.truncf %45 : vector<32x256xf32> to vector<32x256xbf16>
    %c224 = arith.constant 224 : index
    %c0_19 = arith.constant 0 : index
    %47 = vector.load %arg7[%c224, %c0_19] : memref<288x256xbf16, #tpu.memory_space<vmem>>, vector<32x256xbf16>
    tpu.vector_store %arg7[%c224, %c0_19], %46 {strides = array<i32>} : memref<288x256xbf16, #tpu.memory_space<vmem>>, vector<32x256xbf16>,
    %c239_i32 = arith.constant 239 : i32
    %48 = tpu.dynamic_rotate %3 by %c239_i32 dim 1 : vector<32x256xf32>, i32 -> vector<32x256xf32>
    %c8 = arith.constant 8 : index
    %c0_20 = arith.constant 0 : index
    %49 = vector.load %arg3[%c8, %c0_20] : memref<9x256xf32, #tpu.memory_space<vmem>>, vector<1x256xf32>
    %50 = vector.broadcast %49 : vector<1x256xf32> to vector<32x256xf32>
    %51 = arith.mulf %48, %50 : vector<32x256xf32>
    %52 = arith.truncf %51 : vector<32x256xf32> to vector<32x256xbf16>
    %c256 = arith.constant 256 : index
    %c0_21 = arith.constant 0 : index
    %53 = vector.load %arg7[%c256, %c0_21] : memref<288x256xbf16, #tpu.memory_space<vmem>>, vector<32x256xbf16>
    tpu.vector_store %arg7[%c256, %c0_21], %52 {strides = array<i32>} : memref<288x256xbf16, #tpu.memory_space<vmem>>, vector<32x256xbf16>,
    %c0_22 = arith.constant 0 : index
    %c0_23 = arith.constant 0 : index
    %54 = vector.load %arg2[%c0_22, %c0_23] : memref<32x288xbf16, #tpu.memory_space<vmem>>, vector<32x288xbf16>
    %c0_24 = arith.constant 0 : index
    %c0_25 = arith.constant 0 : index
    %55 = vector.load %arg7[%c0_24, %c0_25] : memref<288x256xbf16, #tpu.memory_space<vmem>>, vector<288x256xbf16>
    %cst_26 = arith.constant dense<0.000000e+00> : vector<32x256xf32>
    %56 = tpu.matmul %54, %55, %cst_26 {dimension_numbers = #tpu.dot_dimension_numbers<[1], [0], [0], [1], [0, 0, 1, 1], [], []>} : vector<32x288xbf16>, vector<288x256xbf16>, vector<32x256xf32> -> vector<32x256xf32>
    %57 = arith.truncf %56 : vector<32x256xf32> to vector<32x256xbf16>
    %c0_27 = arith.constant 0 : index
    %c0_28 = arith.constant 0 : index
    %c0_29 = arith.constant 0 : index
    %58 = vector.load %arg4[%c0_27, %c0_28, %c0_29] : memref<1x32x256xbf16, #tpu.memory_space<vmem>>, vector<1x32x256xbf16>
    %59 = vector.shape_cast %58 : vector<1x32x256xbf16> to vector<32x256xbf16>
    %60 = vector.shape_cast %57 : vector<32x256xbf16> to vector<1x32x256xbf16>
    tpu.vector_store %arg4[%c0_27, %c0_28, %c0_29], %60 {strides = array<i32>} : memref<1x32x256xbf16, #tpu.memory_space<vmem>>, vector<1x32x256xbf16>,
    %cst_30 = arith.constant dense<0.000000e+00> : vector<32xf32>
    %61 = vector.multi_reduction <add>, %56, %cst_30 [1] : vector<32x256xf32> to vector<32xf32>
    %62 = vector.shape_cast %61 : vector<32xf32> to vector<32x1xf32>
    %63 = arith.addf %0, %62 : vector<32x1xf32>
    %64 = arith.mulf %56, %56 : vector<32x256xf32>
    %cst_31 = arith.constant dense<0.000000e+00> : vector<32xf32>
    %65 = vector.multi_reduction <add>, %64, %cst_31 [1] : vector<32x256xf32> to vector<32xf32>
    %66 = vector.shape_cast %65 : vector<32xf32> to vector<32x1xf32>
    %67 = arith.addf %1, %66 : vector<32x1xf32>
    %68 = vector.shape_cast %63 : vector<32x1xf32> to vector<1x32x1xf32>
    %c0_32 = arith.constant 0 : index
    %c0_33 = arith.constant 0 : index
    %c0_34 = arith.constant 0 : index
    %69 = vector.load %arg5[%c0_32, %c0_33, %c0_34] : memref<1x32x1xf32, #tpu.memory_space<vmem>>, vector<1x32x1xf32>
    tpu.vector_store %arg5[%c0_32, %c0_33, %c0_34], %68 {strides = array<i32>} : memref<1x32x1xf32, #tpu.memory_space<vmem>>, vector<1x32x1xf32>,
    %70 = vector.shape_cast %67 : vector<32x1xf32> to vector<1x32x1xf32>
    %c0_35 = arith.constant 0 : index
    %c0_36 = arith.constant 0 : index
    %c0_37 = arith.constant 0 : index
    %71 = vector.load %arg6[%c0_35, %c0_36, %c0_37] : memref<1x32x1xf32, #tpu.memory_space<vmem>>, vector<1x32x1xf32>
    tpu.vector_store %arg6[%c0_35, %c0_36, %c0_37], %70 {strides = array<i32>} : memref<1x32x1xf32, #tpu.memory_space<vmem>>, vector<1x32x1xf32>,
    return
  }
  func.func @transform_0(%arg0: i32) -> (i32, i32, i32) {
    %c0_i32 = arith.constant 0 : i32
    %c0_i32_0 = arith.constant 0 : i32
    %c0_i32_1 = arith.constant 0 : i32
    return %arg0, %c0_i32, %c0_i32_0 : i32, i32, i32
  }
  func.func @transform_1(%arg0: i32) -> (i32, i32) {
    %c0_i32 = arith.constant 0 : i32
    %c0_i32_0 = arith.constant 0 : i32
    %c0_i32_1 = arith.constant 0 : i32
    return %c0_i32, %c0_i32_0 : i32, i32
  }
  func.func @transform_2(%arg0: i32) -> (i32, i32) {
    %c0_i32 = arith.constant 0 : i32
    %c0_i32_0 = arith.constant 0 : i32
    %c0_i32_1 = arith.constant 0 : i32
    return %c0_i32, %c0_i32_0 : i32, i32
  }
  func.func @transform_3(%arg0: i32) -> (i32, i32, i32) {
    %c0_i32 = arith.constant 0 : i32
    %c0_i32_0 = arith.constant 0 : i32
    %c0_i32_1 = arith.constant 0 : i32
    return %arg0, %c0_i32, %c0_i32_0 : i32, i32, i32
  }
  func.func @transform_4(%arg0: i32) -> (i32, i32, i32) {
    %c0_i32 = arith.constant 0 : i32
    %c0_i32_0 = arith.constant 0 : i32
    %c0_i32_1 = arith.constant 0 : i32
    return %arg0, %c0_i32, %c0_i32_0 : i32, i32, i32
  }
  func.func @transform_5(%arg0: i32) -> (i32, i32, i32) {
    %c0_i32 = arith.constant 0 : i32
    %c0_i32_0 = arith.constant 0 : i32
    %c0_i32_1 = arith.constant 0 : i32
    return %arg0, %c0_i32, %c0_i32_0 : i32, i32, i32
  }
}

module attributes {stable_mosaic.version = 11 : i64} {
  func.func @_bn1_conv2_kernel(%arg0: i32, %arg1: memref<1x32x256xbf16, #tpu.memory_space<vmem>>, %arg2: memref<32x1xf32, #tpu.memory_space<vmem>>, %arg3: memref<32x1xf32, #tpu.memory_space<vmem>>, %arg4: memref<32x288xbf16, #tpu.memory_space<vmem>>, %arg5: memref<9x256xf32, #tpu.memory_space<vmem>>, %arg6: memref<1x32x256xbf16, #tpu.memory_space<vmem>>, %arg7: memref<1x32x1xf32, #tpu.memory_space<vmem>>, %arg8: memref<1x32x1xf32, #tpu.memory_space<vmem>>, %arg9: memref<288x256xbf16, #tpu.memory_space<vmem>>) attributes {dimension_semantics = [#tpu.dimension_semantics<parallel>], iteration_bounds = array<i64: 2>, scalar_prefetch = 0 : i64, scratch_operands = 1 : i64, tpu.core_type = #tpu.core_type<tc>, window_params = [{transform_indices = @transform_0, window_bounds = array<i64: 1, 32, 256>}, {pipeline_mode = #tpu.pipeline_mode<synchronous>, transform_indices = @transform_1, window_bounds = array<i64: 32, 1>}, {pipeline_mode = #tpu.pipeline_mode<synchronous>, transform_indices = @transform_2, window_bounds = array<i64: 32, 1>}, {pipeline_mode = #tpu.pipeline_mode<synchronous>, transform_indices = @transform_3, window_bounds = array<i64: 32, 288>}, {pipeline_mode = #tpu.pipeline_mode<synchronous>, transform_indices = @transform_4, window_bounds = array<i64: 9, 256>}, {transform_indices = @transform_5, window_bounds = array<i64: 1, 32, 256>}, {transform_indices = @transform_6, window_bounds = array<i64: 1, 32, 1>}, {transform_indices = @transform_7, window_bounds = array<i64: 1, 32, 1>}]} {
    %c0 = arith.constant 0 : index
    %c0_0 = arith.constant 0 : index
    %0 = vector.load %arg2[%c0, %c0_0] : memref<32x1xf32, #tpu.memory_space<vmem>>, vector<32x1xf32>
    %c0_1 = arith.constant 0 : index
    %c0_2 = arith.constant 0 : index
    %1 = vector.load %arg3[%c0_1, %c0_2] : memref<32x1xf32, #tpu.memory_space<vmem>>, vector<32x1xf32>
    %cst = arith.constant 0.000000e+00 : f32
    %2 = vector.broadcast %cst : f32 to vector<32x1xf32>
    %cst_3 = arith.constant 0.000000e+00 : f32
    %3 = vector.broadcast %cst_3 : f32 to vector<32x1xf32>
    %c0_4 = arith.constant 0 : index
    %c0_5 = arith.constant 0 : index
    %c0_6 = arith.constant 0 : index
    %4 = vector.load %arg1[%c0_4, %c0_5, %c0_6] : memref<1x32x256xbf16, #tpu.memory_space<vmem>>, vector<1x32x256xbf16>
    %5 = vector.shape_cast %4 : vector<1x32x256xbf16> to vector<32x256xbf16>
    %6 = arith.extf %5 : vector<32x256xbf16> to vector<32x256xf32>
    %7 = vector.broadcast %0 : vector<32x1xf32> to vector<32x256xf32>
    %8 = arith.mulf %6, %7 : vector<32x256xf32>
    %9 = vector.broadcast %1 : vector<32x1xf32> to vector<32x256xf32>
    %10 = arith.addf %8, %9 : vector<32x256xf32>
    %11 = math.tanh %10 : vector<32x256xf32>
    %c17_i32 = arith.constant 17 : i32
    %12 = tpu.dynamic_rotate %11 by %c17_i32 dim 1 : vector<32x256xf32>, i32 -> vector<32x256xf32>
    %c0_7 = arith.constant 0 : index
    %c0_8 = arith.constant 0 : index
    %13 = vector.load %arg5[%c0_7, %c0_8] : memref<9x256xf32, #tpu.memory_space<vmem>>, vector<1x256xf32>
    %14 = vector.broadcast %13 : vector<1x256xf32> to vector<32x256xf32>
    %15 = arith.mulf %12, %14 : vector<32x256xf32>
    %16 = arith.truncf %15 : vector<32x256xf32> to vector<32x256xbf16>
    %c0_9 = arith.constant 0 : index
    %c0_10 = arith.constant 0 : index
    %17 = vector.load %arg9[%c0_9, %c0_10] : memref<288x256xbf16, #tpu.memory_space<vmem>>, vector<32x256xbf16>
    tpu.vector_store %arg9[%c0_9, %c0_10], %16 {strides = array<i32>} : memref<288x256xbf16, #tpu.memory_space<vmem>>, vector<32x256xbf16>,
    %c16_i32 = arith.constant 16 : i32
    %18 = tpu.dynamic_rotate %11 by %c16_i32 dim 1 : vector<32x256xf32>, i32 -> vector<32x256xf32>
    %c1 = arith.constant 1 : index
    %c0_11 = arith.constant 0 : index
    %19 = vector.load %arg5[%c1, %c0_11] : memref<9x256xf32, #tpu.memory_space<vmem>>, vector<1x256xf32>
    %20 = vector.broadcast %19 : vector<1x256xf32> to vector<32x256xf32>
    %21 = arith.mulf %18, %20 : vector<32x256xf32>
    %22 = arith.truncf %21 : vector<32x256xf32> to vector<32x256xbf16>
    %c32 = arith.constant 32 : index
    %c0_12 = arith.constant 0 : index
    %23 = vector.load %arg9[%c32, %c0_12] : memref<288x256xbf16, #tpu.memory_space<vmem>>, vector<32x256xbf16>
    tpu.vector_store %arg9[%c32, %c0_12], %22 {strides = array<i32>} : memref<288x256xbf16, #tpu.memory_space<vmem>>, vector<32x256xbf16>,
    %c15_i32 = arith.constant 15 : i32
    %24 = tpu.dynamic_rotate %11 by %c15_i32 dim 1 : vector<32x256xf32>, i32 -> vector<32x256xf32>
    %c2 = arith.constant 2 : index
    %c0_13 = arith.constant 0 : index
    %25 = vector.load %arg5[%c2, %c0_13] : memref<9x256xf32, #tpu.memory_space<vmem>>, vector<1x256xf32>
    %26 = vector.broadcast %25 : vector<1x256xf32> to vector<32x256xf32>
    %27 = arith.mulf %24, %26 : vector<32x256xf32>
    %28 = arith.truncf %27 : vector<32x256xf32> to vector<32x256xbf16>
    %c64 = arith.constant 64 : index
    %c0_14 = arith.constant 0 : index
    %29 = vector.load %arg9[%c64, %c0_14] : memref<288x256xbf16, #tpu.memory_space<vmem>>, vector<32x256xbf16>
    tpu.vector_store %arg9[%c64, %c0_14], %28 {strides = array<i32>} : memref<288x256xbf16, #tpu.memory_space<vmem>>, vector<32x256xbf16>,
    %c1_i32 = arith.constant 1 : i32
    %30 = tpu.dynamic_rotate %11 by %c1_i32 dim 1 : vector<32x256xf32>, i32 -> vector<32x256xf32>
    %c3 = arith.constant 3 : index
    %c0_15 = arith.constant 0 : index
    %31 = vector.load %arg5[%c3, %c0_15] : memref<9x256xf32, #tpu.memory_space<vmem>>, vector<1x256xf32>
    %32 = vector.broadcast %31 : vector<1x256xf32> to vector<32x256xf32>
    %33 = arith.mulf %30, %32 : vector<32x256xf32>
    %34 = arith.truncf %33 : vector<32x256xf32> to vector<32x256xbf16>
    %c96 = arith.constant 96 : index
    %c0_16 = arith.constant 0 : index
    %35 = vector.load %arg9[%c96, %c0_16] : memref<288x256xbf16, #tpu.memory_space<vmem>>, vector<32x256xbf16>
    tpu.vector_store %arg9[%c96, %c0_16], %34 {strides = array<i32>} : memref<288x256xbf16, #tpu.memory_space<vmem>>, vector<32x256xbf16>,
    %36 = arith.truncf %11 : vector<32x256xf32> to vector<32x256xbf16>
    %c128 = arith.constant 128 : index
    %c0_17 = arith.constant 0 : index
    %37 = vector.load %arg9[%c128, %c0_17] : memref<288x256xbf16, #tpu.memory_space<vmem>>, vector<32x256xbf16>
    tpu.vector_store %arg9[%c128, %c0_17], %36 {strides = array<i32>} : memref<288x256xbf16, #tpu.memory_space<vmem>>, vector<32x256xbf16>,
    %c255_i32 = arith.constant 255 : i32
    %38 = tpu.dynamic_rotate %11 by %c255_i32 dim 1 : vector<32x256xf32>, i32 -> vector<32x256xf32>
    %c5 = arith.constant 5 : index
    %c0_18 = arith.constant 0 : index
    %39 = vector.load %arg5[%c5, %c0_18] : memref<9x256xf32, #tpu.memory_space<vmem>>, vector<1x256xf32>
    %40 = vector.broadcast %39 : vector<1x256xf32> to vector<32x256xf32>
    %41 = arith.mulf %38, %40 : vector<32x256xf32>
    %42 = arith.truncf %41 : vector<32x256xf32> to vector<32x256xbf16>
    %c160 = arith.constant 160 : index
    %c0_19 = arith.constant 0 : index
    %43 = vector.load %arg9[%c160, %c0_19] : memref<288x256xbf16, #tpu.memory_space<vmem>>, vector<32x256xbf16>
    tpu.vector_store %arg9[%c160, %c0_19], %42 {strides = array<i32>} : memref<288x256xbf16, #tpu.memory_space<vmem>>, vector<32x256xbf16>,
    %c241_i32 = arith.constant 241 : i32
    %44 = tpu.dynamic_rotate %11 by %c241_i32 dim 1 : vector<32x256xf32>, i32 -> vector<32x256xf32>
    %c6 = arith.constant 6 : index
    %c0_20 = arith.constant 0 : index
    %45 = vector.load %arg5[%c6, %c0_20] : memref<9x256xf32, #tpu.memory_space<vmem>>, vector<1x256xf32>
    %46 = vector.broadcast %45 : vector<1x256xf32> to vector<32x256xf32>
    %47 = arith.mulf %44, %46 : vector<32x256xf32>
    %48 = arith.truncf %47 : vector<32x256xf32> to vector<32x256xbf16>
    %c192 = arith.constant 192 : index
    %c0_21 = arith.constant 0 : index
    %49 = vector.load %arg9[%c192, %c0_21] : memref<288x256xbf16, #tpu.memory_space<vmem>>, vector<32x256xbf16>
    tpu.vector_store %arg9[%c192, %c0_21], %48 {strides = array<i32>} : memref<288x256xbf16, #tpu.memory_space<vmem>>, vector<32x256xbf16>,
    %c240_i32 = arith.constant 240 : i32
    %50 = tpu.dynamic_rotate %11 by %c240_i32 dim 1 : vector<32x256xf32>, i32 -> vector<32x256xf32>
    %c7 = arith.constant 7 : index
    %c0_22 = arith.constant 0 : index
    %51 = vector.load %arg5[%c7, %c0_22] : memref<9x256xf32, #tpu.memory_space<vmem>>, vector<1x256xf32>
    %52 = vector.broadcast %51 : vector<1x256xf32> to vector<32x256xf32>
    %53 = arith.mulf %50, %52 : vector<32x256xf32>
    %54 = arith.truncf %53 : vector<32x256xf32> to vector<32x256xbf16>
    %c224 = arith.constant 224 : index
    %c0_23 = arith.constant 0 : index
    %55 = vector.load %arg9[%c224, %c0_23] : memref<288x256xbf16, #tpu.memory_space<vmem>>, vector<32x256xbf16>
    tpu.vector_store %arg9[%c224, %c0_23], %54 {strides = array<i32>} : memref<288x256xbf16, #tpu.memory_space<vmem>>, vector<32x256xbf16>,
    %c239_i32 = arith.constant 239 : i32
    %56 = tpu.dynamic_rotate %11 by %c239_i32 dim 1 : vector<32x256xf32>, i32 -> vector<32x256xf32>
    %c8 = arith.constant 8 : index
    %c0_24 = arith.constant 0 : index
    %57 = vector.load %arg5[%c8, %c0_24] : memref<9x256xf32, #tpu.memory_space<vmem>>, vector<1x256xf32>
    %58 = vector.broadcast %57 : vector<1x256xf32> to vector<32x256xf32>
    %59 = arith.mulf %56, %58 : vector<32x256xf32>
    %60 = arith.truncf %59 : vector<32x256xf32> to vector<32x256xbf16>
    %c256 = arith.constant 256 : index
    %c0_25 = arith.constant 0 : index
    %61 = vector.load %arg9[%c256, %c0_25] : memref<288x256xbf16, #tpu.memory_space<vmem>>, vector<32x256xbf16>
    tpu.vector_store %arg9[%c256, %c0_25], %60 {strides = array<i32>} : memref<288x256xbf16, #tpu.memory_space<vmem>>, vector<32x256xbf16>,
    %c0_26 = arith.constant 0 : index
    %c0_27 = arith.constant 0 : index
    %62 = vector.load %arg4[%c0_26, %c0_27] : memref<32x288xbf16, #tpu.memory_space<vmem>>, vector<32x288xbf16>
    %c0_28 = arith.constant 0 : index
    %c0_29 = arith.constant 0 : index
    %63 = vector.load %arg9[%c0_28, %c0_29] : memref<288x256xbf16, #tpu.memory_space<vmem>>, vector<288x256xbf16>
    %cst_30 = arith.constant dense<0.000000e+00> : vector<32x256xf32>
    %64 = tpu.matmul %62, %63, %cst_30 {dimension_numbers = #tpu.dot_dimension_numbers<[1], [0], [0], [1], [0, 0, 1, 1], [], []>} : vector<32x288xbf16>, vector<288x256xbf16>, vector<32x256xf32> -> vector<32x256xf32>
    %65 = arith.truncf %64 : vector<32x256xf32> to vector<32x256xbf16>
    %c0_31 = arith.constant 0 : index
    %c0_32 = arith.constant 0 : index
    %c0_33 = arith.constant 0 : index
    %66 = vector.load %arg6[%c0_31, %c0_32, %c0_33] : memref<1x32x256xbf16, #tpu.memory_space<vmem>>, vector<1x32x256xbf16>
    %67 = vector.shape_cast %66 : vector<1x32x256xbf16> to vector<32x256xbf16>
    %68 = vector.shape_cast %65 : vector<32x256xbf16> to vector<1x32x256xbf16>
    tpu.vector_store %arg6[%c0_31, %c0_32, %c0_33], %68 {strides = array<i32>} : memref<1x32x256xbf16, #tpu.memory_space<vmem>>, vector<1x32x256xbf16>,
    %cst_34 = arith.constant dense<0.000000e+00> : vector<32xf32>
    %69 = vector.multi_reduction <add>, %64, %cst_34 [1] : vector<32x256xf32> to vector<32xf32>
    %70 = vector.shape_cast %69 : vector<32xf32> to vector<32x1xf32>
    %71 = arith.addf %2, %70 : vector<32x1xf32>
    %72 = arith.mulf %64, %64 : vector<32x256xf32>
    %cst_35 = arith.constant dense<0.000000e+00> : vector<32xf32>
    %73 = vector.multi_reduction <add>, %72, %cst_35 [1] : vector<32x256xf32> to vector<32xf32>
    %74 = vector.shape_cast %73 : vector<32xf32> to vector<32x1xf32>
    %75 = arith.addf %3, %74 : vector<32x1xf32>
    %76 = vector.shape_cast %71 : vector<32x1xf32> to vector<1x32x1xf32>
    %c0_36 = arith.constant 0 : index
    %c0_37 = arith.constant 0 : index
    %c0_38 = arith.constant 0 : index
    %77 = vector.load %arg7[%c0_36, %c0_37, %c0_38] : memref<1x32x1xf32, #tpu.memory_space<vmem>>, vector<1x32x1xf32>
    tpu.vector_store %arg7[%c0_36, %c0_37, %c0_38], %76 {strides = array<i32>} : memref<1x32x1xf32, #tpu.memory_space<vmem>>, vector<1x32x1xf32>,
    %78 = vector.shape_cast %75 : vector<32x1xf32> to vector<1x32x1xf32>
    %c0_39 = arith.constant 0 : index
    %c0_40 = arith.constant 0 : index
    %c0_41 = arith.constant 0 : index
    %79 = vector.load %arg8[%c0_39, %c0_40, %c0_41] : memref<1x32x1xf32, #tpu.memory_space<vmem>>, vector<1x32x1xf32>
    tpu.vector_store %arg8[%c0_39, %c0_40, %c0_41], %78 {strides = array<i32>} : memref<1x32x1xf32, #tpu.memory_space<vmem>>, vector<1x32x1xf32>,
    return
  }
  func.func @transform_0(%arg0: i32) -> (i32, i32, i32) {
    %c0_i32 = arith.constant 0 : i32
    %c0_i32_0 = arith.constant 0 : i32
    %c0_i32_1 = arith.constant 0 : i32
    return %arg0, %c0_i32, %c0_i32_0 : i32, i32, i32
  }
  func.func @transform_1(%arg0: i32) -> (i32, i32) {
    %c0_i32 = arith.constant 0 : i32
    %c0_i32_0 = arith.constant 0 : i32
    %c0_i32_1 = arith.constant 0 : i32
    return %c0_i32, %c0_i32_0 : i32, i32
  }
  func.func @transform_2(%arg0: i32) -> (i32, i32) {
    %c0_i32 = arith.constant 0 : i32
    %c0_i32_0 = arith.constant 0 : i32
    %c0_i32_1 = arith.constant 0 : i32
    return %c0_i32, %c0_i32_0 : i32, i32
  }
  func.func @transform_3(%arg0: i32) -> (i32, i32) {
    %c0_i32 = arith.constant 0 : i32
    %c0_i32_0 = arith.constant 0 : i32
    %c0_i32_1 = arith.constant 0 : i32
    return %c0_i32, %c0_i32_0 : i32, i32
  }
  func.func @transform_4(%arg0: i32) -> (i32, i32) {
    %c0_i32 = arith.constant 0 : i32
    %c0_i32_0 = arith.constant 0 : i32
    %c0_i32_1 = arith.constant 0 : i32
    return %c0_i32, %c0_i32_0 : i32, i32
  }
  func.func @transform_5(%arg0: i32) -> (i32, i32, i32) {
    %c0_i32 = arith.constant 0 : i32
    %c0_i32_0 = arith.constant 0 : i32
    %c0_i32_1 = arith.constant 0 : i32
    return %arg0, %c0_i32, %c0_i32_0 : i32, i32, i32
  }
  func.func @transform_6(%arg0: i32) -> (i32, i32, i32) {
    %c0_i32 = arith.constant 0 : i32
    %c0_i32_0 = arith.constant 0 : i32
    %c0_i32_1 = arith.constant 0 : i32
    return %arg0, %c0_i32, %c0_i32_0 : i32, i32, i32
  }
  func.func @transform_7(%arg0: i32) -> (i32, i32, i32) {
    %c0_i32 = arith.constant 0 : i32
    %c0_i32_0 = arith.constant 0 : i32
    %c0_i32_1 = arith.constant 0 : i32
    return %arg0, %c0_i32, %c0_i32_0 : i32, i32, i32
  }
}

module attributes {stable_mosaic.version = 11 : i64} {
  func.func @_bn2_residual_kernel(%arg0: i32, %arg1: memref<1x32x256xbf16, #tpu.memory_space<vmem>>, %arg2: memref<1x32x256xf32, #tpu.memory_space<vmem>>, %arg3: memref<32x1xf32, #tpu.memory_space<vmem>>, %arg4: memref<32x1xf32, #tpu.memory_space<vmem>>, %arg5: memref<1x32x256xf32, #tpu.memory_space<vmem>>) attributes {dimension_semantics = [#tpu.dimension_semantics<parallel>], iteration_bounds = array<i64: 2>, scalar_prefetch = 0 : i64, scratch_operands = 0 : i64, tpu.core_type = #tpu.core_type<tc>, window_params = [{transform_indices = @transform_0, window_bounds = array<i64: 1, 32, 256>}, {transform_indices = @transform_1, window_bounds = array<i64: 1, 32, 256>}, {pipeline_mode = #tpu.pipeline_mode<synchronous>, transform_indices = @transform_2, window_bounds = array<i64: 32, 1>}, {pipeline_mode = #tpu.pipeline_mode<synchronous>, transform_indices = @transform_3, window_bounds = array<i64: 32, 1>}, {transform_indices = @transform_4, window_bounds = array<i64: 1, 32, 256>}]} {
    %c0 = arith.constant 0 : index
    %c0_0 = arith.constant 0 : index
    %0 = vector.load %arg3[%c0, %c0_0] : memref<32x1xf32, #tpu.memory_space<vmem>>, vector<32x1xf32>
    %1 = vector.shape_cast %0 : vector<32x1xf32> to vector<1x32x1xf32>
    %c0_1 = arith.constant 0 : index
    %c0_2 = arith.constant 0 : index
    %2 = vector.load %arg4[%c0_1, %c0_2] : memref<32x1xf32, #tpu.memory_space<vmem>>, vector<32x1xf32>
    %3 = vector.shape_cast %2 : vector<32x1xf32> to vector<1x32x1xf32>
    %c0_3 = arith.constant 0 : index
    %c0_4 = arith.constant 0 : index
    %c0_5 = arith.constant 0 : index
    %4 = vector.load %arg1[%c0_3, %c0_4, %c0_5] : memref<1x32x256xbf16, #tpu.memory_space<vmem>>, vector<1x32x256xbf16>
    %5 = arith.extf %4 : vector<1x32x256xbf16> to vector<1x32x256xf32>
    %6 = vector.broadcast %1 : vector<1x32x1xf32> to vector<1x32x256xf32>
    %7 = arith.mulf %5, %6 : vector<1x32x256xf32>
    %8 = vector.broadcast %3 : vector<1x32x1xf32> to vector<1x32x256xf32>
    %9 = arith.addf %7, %8 : vector<1x32x256xf32>
    %c0_6 = arith.constant 0 : index
    %c0_7 = arith.constant 0 : index
    %c0_8 = arith.constant 0 : index
    %10 = vector.load %arg2[%c0_6, %c0_7, %c0_8] : memref<1x32x256xf32, #tpu.memory_space<vmem>>, vector<1x32x256xf32>
    %11 = arith.addf %9, %10 : vector<1x32x256xf32>
    %12 = math.tanh %11 : vector<1x32x256xf32>
    %c0_9 = arith.constant 0 : index
    %c0_10 = arith.constant 0 : index
    %c0_11 = arith.constant 0 : index
    %13 = vector.load %arg5[%c0_9, %c0_10, %c0_11] : memref<1x32x256xf32, #tpu.memory_space<vmem>>, vector<1x32x256xf32>
    tpu.vector_store %arg5[%c0_9, %c0_10, %c0_11], %12 {strides = array<i32>} : memref<1x32x256xf32, #tpu.memory_space<vmem>>, vector<1x32x256xf32>,
    return
  }
  func.func @transform_0(%arg0: i32) -> (i32, i32, i32) {
    %c0_i32 = arith.constant 0 : i32
    %c0_i32_0 = arith.constant 0 : i32
    %c0_i32_1 = arith.constant 0 : i32
    return %arg0, %c0_i32, %c0_i32_0 : i32, i32, i32
  }
  func.func @transform_1(%arg0: i32) -> (i32, i32, i32) {
    %c0_i32 = arith.constant 0 : i32
    %c0_i32_0 = arith.constant 0 : i32
    %c0_i32_1 = arith.constant 0 : i32
    return %arg0, %c0_i32, %c0_i32_0 : i32, i32, i32
  }
  func.func @transform_2(%arg0: i32) -> (i32, i32) {
    %c0_i32 = arith.constant 0 : i32
    %c0_i32_0 = arith.constant 0 : i32
    %c0_i32_1 = arith.constant 0 : i32
    return %c0_i32, %c0_i32_0 : i32, i32
  }
  func.func @transform_3(%arg0: i32) -> (i32, i32) {
    %c0_i32 = arith.constant 0 : i32
    %c0_i32_0 = arith.constant 0 : i32
    %c0_i32_1 = arith.constant 0 : i32
    return %c0_i32, %c0_i32_0 : i32, i32
  }
  func.func @transform_4(%arg0: i32) -> (i32, i32, i32) {
    %c0_i32 = arith.constant 0 : i32
    %c0_i32_0 = arith.constant 0 : i32
    %c0_i32_1 = arith.constant 0 : i32
    return %arg0, %c0_i32, %c0_i32_0 : i32, i32, i32
  }
}

</mosaic_0001>

<llo_original>
// kernel: basic_block_forward.5
$region0: #{basic_block_forward.5}
  #allocation0 [shape = 'u32[]', space=smem, size = 0x4, offset = 0x4, fixed_abs, tag = 'smem constant byte address 0x4 - core index']
  #allocation1 [shape = 'u32[144,128]{1,0:T(1,128)}', space=vmem, size = 0x12000, scoped, tag = 'internal scratch']
  %s0 = inlined_call_operand.vmem [shape: bf16[2,32,256], index: 0, kind: input, shape index: {}]
  %s1 = inlined_call_operand.vmem [shape: f32[2,32,256], index: 1, kind: input, shape index: {}]
  %s2 = inlined_call_operand.vmem [shape: f32[32,1], index: 2, kind: input, shape index: {}]
  %s3 = inlined_call_operand.vmem [shape: f32[32,1], index: 3, kind: input, shape index: {}]
  %s4 = inlined_call_operand.vmem [shape: f32[2,32,256], index: 4, kind: output, shape index: {}]
  %s5 = sld [smem:[#allocation0]]
  $region49: #{basic_block_forward.5} parent=0
    _
  %s7 = ssub.s32 1, %s5
  %s8 = scalar_select 0, %s7, %s5
  loop: start=0, step=1, limit=4
  $region2: #{basic_block_forward.5} parent=0 // loop_pre_header
    _
  $region3: #{basic_block_forward.5} parent=0 // loop_header
    %s10 = sphi 0, %s14
    %p11 = scmp.ge.s32.totalorder %s10, 4
    %s20 = sphi 0, %s22
    %s23 = sphi 0, %s20
    %s24 = sphi 0, %s23
    %s40 = sphi 0, %s24
    %s46 = sphi 0, %s48
    %s49 = sphi 0, %s46
    %s50 = sphi 0, %s49
    %s66 = sphi 0, %s50
    %s70 = sphi 0, %s70
    %s72 = sphi 0, %s70
    %s73 = sphi 0, %s72
    %s87 = sphi 0, %s73
    %s91 = sphi 0, %s91
    %s93 = sphi 0, %s91
    %s94 = sphi 0, %s93
    %s108 = sphi 0, %s94
    %s114 = sphi 0, %s116
    %s117 = sphi 0, %s114
    %s118 = sphi 0, %s117
    %s134 = sphi 0, %s118
  $region4: #{basic_block_forward.5} parent=0 // loop_header_branch
    %13 = sbr.rel (%p11) target = $region8
  $region5: #{basic_block_forward.5} parent=0 // loop_body
    %s15 = ssub.s32 %s10, 1
    %s16 = ssub.s32 %s10, 2
    %s17 = sadd.s32 %s10, 1
    %s18 = ssub.s32 %s10, %s17
    %p19 = scmp.eq.s32.totalorder %s18, 0
    %s21 = sadd.s32 %s20, 1
    %s22 = scalar_select %p19, %s20, %s21
    %p25 = pneg %p19
    %p26 = scmp.eq.s32.totalorder %s10, 1
    %p27 = por %p25, %p26
    %p28 = scmp.ne.s32.totalorder %s20, %s23
    %p29 = scmp.eq.s32.totalorder %s10, 0
    %p30 = por %p28, %p29
    %p31 = scmp.ne.s32.totalorder %s20, %s23
    %p32 = scmp.eq.s32.totalorder %s15, 1
    %p33 = por %p31, %p32
    %p34 = scmp.ne.s32.totalorder %s23, %s24
    %p35 = scmp.eq.s32.totalorder %s15, 0
    %p36 = por %p34, %p35
    %p37 = scmp.ne.s32.totalorder %s23, %s24
    %p38 = scmp.eq.s32.totalorder %s16, 1
    %p39 = por %p37, %p38
    %p41 = scmp.ne.s32.totalorder %s24, %s40
    %p42 = scmp.eq.s32.totalorder %s16, 0
    %p43 = por %p41, %p42
    %s44 = ssub.s32 %s10, %s17
    %p45 = scmp.eq.s32.totalorder %s44, 0
    %s47 = sadd.s32 %s46, 1
    %s48 = scalar_select %p45, %s46, %s47
    %p51 = pneg %p45
    %p52 = scmp.eq.s32.totalorder %s10, 1
    %p53 = por %p51, %p52
    %p54 = scmp.ne.s32.totalorder %s46, %s49
    %p55 = scmp.eq.s32.totalorder %s10, 0
    %p56 = por %p54, %p55
    %p57 = scmp.ne.s32.totalorder %s46, %s49
    %p58 = scmp.eq.s32.totalorder %s15, 1
    %p59 = por %p57, %p58
    %p60 = scmp.ne.s32.totalorder %s49, %s50
    %p61 = scmp.eq.s32.totalorder %s15, 0
    %p62 = por %p60, %p61
    %p63 = scmp.ne.s32.totalorder %s49, %s50
    %p64 = scmp.eq.s32.totalorder %s16, 1
    %p65 = por %p63, %p64
    %p67 = scmp.ne.s32.totalorder %s50, %s66
    %p68 = scmp.eq.s32.totalorder %s16, 0
    %p69 = por %p67, %p68
    %s71 = sadd.s32 %s70, 1
    %p74 = scmp.eq.s32.totalorder %s10, 1
    %p75 = scmp.ne.s32.totalorder %s70, %s72
    %p76 = scmp.eq.s32.totalorder %s10, 0
    %p77 = por %p75, %p76
    %p78 = scmp.ne.s32.totalorder %s70, %s72
    %p79 = scmp.eq.s32.totalorder %s15, 1
    %p80 = por %p78, %p79
    %p81 = scmp.ne.s32.totalorder %s72, %s73
    %p82 = scmp.eq.s32.totalorder %s15, 0
    %p83 = por %p81, %p82
    %p84 = scmp.ne.s32.totalorder %s72, %s73
    %p85 = scmp.eq.s32.totalorder %s16, 1
    %p86 = por %p84, %p85
    %p88 = scmp.ne.s32.totalorder %s73, %s87
    %p89 = scmp.eq.s32.totalorder %s16, 0
    %p90 = por %p88, %p89
    %s92 = sadd.s32 %s91, 1
    %p95 = scmp.eq.s32.totalorder %s10, 1
    %p96 = scmp.ne.s32.totalorder %s91, %s93
    %p97 = scmp.eq.s32.totalorder %s10, 0
    %p98 = por %p96, %p97
    %p99 = scmp.ne.s32.totalorder %s91, %s93
    %p100 = scmp.eq.s32.totalorder %s15, 1
    %p101 = por %p99, %p100
    %p102 = scmp.ne.s32.totalorder %s93, %s94
    %p103 = scmp.eq.s32.totalorder %s15, 0
    %p104 = por %p102, %p103
    %p105 = scmp.ne.s32.totalorder %s93, %s94
    %p106 = scmp.eq.s32.totalorder %s16, 1
    %p107 = por %p105, %p106
    %p109 = scmp.ne.s32.totalorder %s94, %s108
    %p110 = scmp.eq.s32.totalorder %s16, 0
    %p111 = por %p109, %p110
    %s112 = ssub.s32 %s10, %s17
    %p113 = scmp.eq.s32.totalorder %s112, 0
    %s115 = sadd.s32 %s114, 1
    %s116 = scalar_select %p113, %s114, %s115
    %p119 = pneg %p113
    %p120 = scmp.eq.s32.totalorder %s10, 1
    %p121 = por %p119, %p120
    %p122 = scmp.ne.s32.totalorder %s114, %s117
    %p123 = scmp.eq.s32.totalorder %s10, 0
    %p124 = por %p122, %p123
    %p125 = scmp.ne.s32.totalorder %s114, %s117
    %p126 = scmp.eq.s32.totalorder %s15, 1
    %p127 = por %p125, %p126
    %p128 = scmp.ne.s32.totalorder %s117, %s118
    %p129 = scmp.eq.s32.totalorder %s15, 0
    %p130 = por %p128, %p129
    %p131 = scmp.ne.s32.totalorder %s117, %s118
    %p132 = scmp.eq.s32.totalorder %s16, 1
    %p133 = por %p131, %p132
    %p135 = scmp.ne.s32.totalorder %s118, %s134
    %p136 = scmp.eq.s32.totalorder %s16, 0
    %p137 = por %p135, %p136
    %p138 = scmp.le.s32.totalorder 1, %s10
    %p139 = scmp.lt.s32.totalorder %s10, 3
    %p140 = pnand %p138, %p139
    %p141 = pneg %p140
    // Predicated region
    $region9: #{basic_block_forward.5} parent=5 // pred_check
      _
    $region10: #{basic_block_forward.5} parent=5 // pred_check_branch
      %143 = sbr.rel (%p140) target = $region12
    $region11: #{basic_block_forward.5} parent=5 // pred_region
      %s144 = ssub.s32 %s10, 1
      // Predicated region
      $region13: #{basic_block_forward.5} parent=11 // pred_check
        %p145 = pneg %p83
      $region14: #{basic_block_forward.5} parent=11 // pred_check_branch
        %147 = sbr.rel (%p145) target = $region16
      $region15: #{basic_block_forward.5} parent=11 // pred_region
        _
      $region16: #{basic_block_forward.5} parent=11 // pred_fallthru
        _
      // Predicated region
      $region17: #{basic_block_forward.5} parent=11 // pred_check
        %p148 = pneg %p104
      $region18: #{basic_block_forward.5} parent=11 // pred_check_branch
        %150 = sbr.rel (%p148) target = $region20
      $region19: #{basic_block_forward.5} parent=11 // pred_region
        _
      $region20: #{basic_block_forward.5} parent=11 // pred_fallthru
        _
    $region12: #{basic_block_forward.5} parent=5 // pred_fallthru
      _
    %p151 = scmp.lt.s32.totalorder %s10, 2
    // Predicated region
    $region21: #{basic_block_forward.5} parent=5 // pred_check
      %p152 = pneg %p151
    $region22: #{basic_block_forward.5} parent=5 // pred_check_branch
      %154 = sbr.rel (%p152) target = $region24
    $region23: #{basic_block_forward.5} parent=5 // pred_region
      // Predicated region
      $region25: #{basic_block_forward.5} parent=23 // pred_check
        %p155 = pneg %p30
      $region26: #{basic_block_forward.5} parent=23 // pred_check_branch
        %157 = sbr.rel (%p155) target = $region28
      $region27: #{basic_block_forward.5} parent=23 // pred_region
        %p158 = scmp.lt.s32.totalorder %s10, 1
        %s159 = scalar_select %p158, %s10, 1
        %s160 = smul.addr %s159, 8
        %s161 = smul.addr %s160, 4
        %s162 = scalar_lea.vmem %s0, %s161
      $region28: #{basic_block_forward.5} parent=23 // pred_fallthru
        _
      // Predicated region
      $region29: #{basic_block_forward.5} parent=23 // pred_check
        %p163 = pneg %p56
      $region30: #{basic_block_forward.5} parent=23 // pred_check_branch
        %165 = sbr.rel (%p163) target = $region32
      $region31: #{basic_block_forward.5} parent=23 // pred_region
        %p166 = scmp.lt.s32.totalorder %s10, 1
        %s167 = scalar_select %p166, %s10, 1
        %s168 = smul.addr %s167, 8
        %s169 = smul.addr %s168, 8
        %s170 = scalar_lea.vmem %s1, %s169
      $region32: #{basic_block_forward.5} parent=23 // pred_fallthru
        _
    $region24: #{basic_block_forward.5} parent=5 // pred_fallthru
      _
    %p171 = scmp.le.s32.totalorder 1, %s10
    %p172 = scmp.lt.s32.totalorder %s10, 3
    %p173 = pnand %p171, %p172
    %p174 = pneg %p173
    // Predicated region
    $region33: #{basic_block_forward.5} parent=5 // pred_check
      _
    $region34: #{basic_block_forward.5} parent=5 // pred_check_branch
      %176 = sbr.rel (%p173) target = $region36
    $region35: #{basic_block_forward.5} parent=5 // pred_region
      %s177 = ssub.s32 %s10, 1
      %p178 = scmp.lt.s32.totalorder %s15, 1
      %s179 = scalar_select %p178, %s15, 1
      %s180 = smul.addr %s179, 8
      %s181 = smul.addr %s180, 4
      %s182 = scalar_lea.vmem %s0, %s181
      %p183 = pneg %p36
      %p184 = pneg %p33
      %p185 = scmp.lt.s32.totalorder %s15, 1
      %s186 = scalar_select %p185, %s15, 1
      %s187 = smul.addr %s186, 8
      %s188 = smul.addr %s187, 8
      %s189 = scalar_lea.vmem %s1, %s188
      %p190 = pneg %p62
      %p191 = pneg %p59
      %p192 = pneg %p83
      %p193 = pneg %p80
      %p194 = pneg %p104
      %p195 = pneg %p101
      %p196 = pneg %p130
      %p197 = pneg %p127
      %p198 = scmp.lt.s32.totalorder %s15, 1
      %s199 = scalar_select %p198, %s15, 1
      %s200 = smul.addr %s199, 8
      %s201 = smul.addr %s200, 8
      %s202 = scalar_lea.vmem %s4, %s201
      %p203 = scmp.lt.s32.totalorder %s15, 1
      %s204 = scalar_select %p203, %s15, 1
      %s205 = smul.addr %s204, 8
      %s206 = smul.addr %s205, 4
      %s207 = scalar_lea.vmem %s0, %s206
      %p208 = scmp.lt.s32.totalorder %s15, 1
      %s209 = scalar_select %p208, %s15, 1
      %s210 = smul.addr %s209, 8
      %s211 = smul.addr %s210, 8
      %s212 = scalar_lea.vmem %s1, %s211
      %p213 = scmp.lt.s32.totalorder %s15, 1
      %s214 = scalar_select %p213, %s15, 1
      %s215 = smul.addr %s214, 8
      %s216 = smul.addr %s215, 8
      %s217 = scalar_lea.vmem %s4, %s216
      %v218 = vld [vmem:[%s2] sm:$0xff]
      %v219 = vld [vmem:[%s2 + $0x8] sm:$0xff]
      %v220 = vld [vmem:[%s2 + $0x10] sm:$0xff]
      %v221 = vld [vmem:[%s2 + $0x18] sm:$0xff]
      %v222 = vld [vmem:[%s3] sm:$0xff]
      %v223 = vld [vmem:[%s3 + $0x8] sm:$0xff]
      %v224 = vld [vmem:[%s3 + $0x10] sm:$0xff]
      %v225 = vld [vmem:[%s3 + $0x18] sm:$0xff]
      %v226 = vld [vmem:[%s207] sm:$0xff]
      %v227 = vld [vmem:[%s207 + $0x8] sm:$0xff]
      %v228 = vld [vmem:[%s207 + $0x10] sm:$0xff]
      %v229 = vld [vmem:[%s207 + $0x18] sm:$0xff]
      %v230 = vunpack.c.l.bf16 %v226
      %v231 = vunpack.c.h.bf16 %v226
      %v232 = vunpack.c.l.bf16 %v227
      %v233 = vunpack.c.h.bf16 %v227
      %v234 = vunpack.c.l.bf16 %v228
      %v235 = vunpack.c.h.bf16 %v228
      %v236 = vunpack.c.l.bf16 %v229
      %v237 = vunpack.c.h.bf16 %v229
      %239 = vset.pattern.permute.xlu0 0
      %240 = vperm.xlu0 %239, %v218
      %v241 = vpop.permute.xlu0 %240
      %244 = vset.pattern.permute.xlu0 0
      %245 = vperm.xlu0 %244, %v219
      %v246 = vpop.permute.xlu0 %245
      %249 = vset.pattern.permute.xlu0 0
      %250 = vperm.xlu0 %249, %v220
      %v251 = vpop.permute.xlu0 %250
      %254 = vset.pattern.permute.xlu0 0
      %255 = vperm.xlu0 %254, %v221
      %v256 = vpop.permute.xlu0 %255
      %v258 = vmul.f32 %v230, %v241
      %v259 = vmul.f32 %v231, %v241
      %v260 = vmul.f32 %v232, %v246
      %v261 = vmul.f32 %v233, %v246
      %v262 = vmul.f32 %v234, %v251
      %v263 = vmul.f32 %v235, %v251
      %v264 = vmul.f32 %v236, %v256
      %v265 = vmul.f32 %v237, %v256
      %267 = vset.pattern.permute.xlu0 0
      %268 = vperm.xlu0 %267, %v222
      %v269 = vpop.permute.xlu0 %268
      %272 = vset.pattern.permute.xlu0 0
      %273 = vperm.xlu0 %272, %v223
      %v274 = vpop.permute.xlu0 %273
      %277 = vset.pattern.permute.xlu0 0
      %278 = vperm.xlu0 %277, %v224
      %v279 = vpop.permute.xlu0 %278
      %282 = vset.pattern.permute.xlu0 0
      %283 = vperm.xlu0 %282, %v225
      %v284 = vpop.permute.xlu0 %283
      %v286 = vadd.f32 %v258, %v269
      %v287 = vadd.f32 %v259, %v269
      %v288 = vadd.f32 %v260, %v274
      %v289 = vadd.f32 %v261, %v274
      %v290 = vadd.f32 %v262, %v279
      %v291 = vadd.f32 %v263, %v279
      %v292 = vadd.f32 %v264, %v284
      %v293 = vadd.f32 %v265, %v284
      %v294 = vld [vmem:[%s212] sm:$0xff]
      %v295 = vld [vmem:[%s212 + $0x8] sm:$0xff]
      %v296 = vld [vmem:[%s212 + $0x10] sm:$0xff]
      %v297 = vld [vmem:[%s212 + $0x18] sm:$0xff]
      %v298 = vld [vmem:[%s212 + $0x20] sm:$0xff]
      %v299 = vld [vmem:[%s212 + $0x28] sm:$0xff]
      %v300 = vld [vmem:[%s212 + $0x30] sm:$0xff]
      %v301 = vld [vmem:[%s212 + $0x38] sm:$0xff]
      %v302 = vadd.f32 %v286, %v294
      %v303 = vadd.f32 %v287, %v295
      %v304 = vadd.f32 %v288, %v296
      %v305 = vadd.f32 %v289, %v297
      %v306 = vadd.f32 %v290, %v298
      %v307 = vadd.f32 %v291, %v299
      %v308 = vadd.f32 %v292, %v300
      %v309 = vadd.f32 %v293, %v301
      %v310 = vtanh.pop %v302
      %v311 = vtanh.pop %v303
      %v312 = vtanh.pop %v304
      %v313 = vtanh.pop %v305
      %v314 = vtanh.pop %v306
      %v315 = vtanh.pop %v307
      %v316 = vtanh.pop %v308
      %v317 = vtanh.pop %v309
      %318 = vst [vmem:[%s217] sm:$0xff] %v310
      %319 = vst [vmem:[%s217 + $0x8] sm:$0xff] %v311
      %320 = vst [vmem:[%s217 + $0x10] sm:$0xff] %v312
      %321 = vst [vmem:[%s217 + $0x18] sm:$0xff] %v313
      %322 = vst [vmem:[%s217 + $0x20] sm:$0xff] %v314
      %323 = vst [vmem:[%s217 + $0x28] sm:$0xff] %v315
      %324 = vst [vmem:[%s217 + $0x30] sm:$0xff] %v316
      %325 = vst [vmem:[%s217 + $0x38] sm:$0xff] %v317
      %p326 = scmp.lt.s32.totalorder %s15, 1
      %s327 = scalar_select %p326, %s15, 1
      %s328 = smul.addr %s327, 8
      %s329 = smul.addr %s328, 8
      %s330 = scalar_lea.vmem %s4, %s329
      // Predicated region
      $region37: #{basic_block_forward.5} parent=35 // pred_check
        %p331 = pneg %p127
      $region38: #{basic_block_forward.5} parent=35 // pred_check_branch
        %333 = sbr.rel (%p331) target = $region40
      $region39: #{basic_block_forward.5} parent=35 // pred_region
        _
      $region40: #{basic_block_forward.5} parent=35 // pred_fallthru
        _
    $region36: #{basic_block_forward.5} parent=5 // pred_fallthru
      _
    %p334 = scmp.le.s32.totalorder 2, %s10
    // Predicated region
    $region41: #{basic_block_forward.5} parent=5 // pred_check
      %p335 = pneg %p334
    $region42: #{basic_block_forward.5} parent=5 // pred_check_branch
      %337 = sbr.rel (%p335) target = $region44
    $region43: #{basic_block_forward.5} parent=5 // pred_region
      %s338 = ssub.s32 %s10, 2
      // Predicated region
      $region45: #{basic_block_forward.5} parent=43 // pred_check
        %p339 = pneg %p133
      $region46: #{basic_block_forward.5} parent=43 // pred_check_branch
        %341 = sbr.rel (%p339) target = $region48
      $region47: #{basic_block_forward.5} parent=43 // pred_region
        %p342 = scmp.lt.s32.totalorder %s16, 1
        %s343 = scalar_select %p342, %s16, 1
        %s344 = smul.addr %s343, 8
        %s345 = smul.addr %s344, 8
        %s346 = scalar_lea.vmem %s4, %s345
      $region48: #{basic_block_forward.5} parent=43 // pred_fallthru
        _
    $region44: #{basic_block_forward.5} parent=5 // pred_fallthru
      _
  $region6: #{basic_block_forward.5} parent=0 // loop_footer
    %s14 = sadd.s32 1, %s10
  $region7: #{basic_block_forward.5} parent=0 // loop_footer_branch
    %9 = sbr.rel target = $region3
  $region8: #{basic_block_forward.5} parent=0 // loop_exit
    _

// kernel: basic_block_forward.3
$region0: #{basic_block_forward.3}
  #allocation0 [shape = 'u32[]', space=smem, size = 0x4, offset = 0x4, fixed_abs, tag = 'smem constant byte address 0x4 - core index']
  #allocation1 [shape = 'u32[144,128]{1,0:T(1,128)}', space=vmem, size = 0x12000, scoped, tag = 'internal scratch']
  #allocation2 [shape = 'bf16[288,256]{1,0:T(8,128)(2,1)}', space=vmem, size = 0x24000, scoped, tag = 'scratch operand']
  %s0 = inlined_call_operand.vmem [shape: f32[2,32,256], index: 0, kind: input, shape index: {}]
  %s1 = inlined_call_operand.vmem [shape: bf16[32,288], index: 1, kind: input, shape index: {}]
  %s2 = inlined_call_operand.vmem [shape: f32[9,256], index: 2, kind: input, shape index: {}]
  %s3 = inlined_call_operand.vmem [shape: bf16[2,32,256], index: 3, kind: output, shape index: {0}]
  %s4 = inlined_call_operand.vmem [shape: f32[2,32,1], index: 4, kind: output, shape index: {1}]
  %s5 = inlined_call_operand.vmem [shape: f32[2,32,1], index: 5, kind: output, shape index: {2}]
  %6 = xla_tuple %s3, %s4, %s5
  %s7 = sld [smem:[#allocation0]]
  $region61: #{basic_block_forward.3} parent=0
    _
  %s9 = ssub.s32 1, %s7
  %s10 = scalar_select 0, %s9, %s7
  loop: start=0, step=1, limit=4
  $region2: #{basic_block_forward.3} parent=0 // loop_pre_header
    _
  $region3: #{basic_block_forward.3} parent=0 // loop_header
    %s12 = sphi 0, %s16
    %p13 = scmp.ge.s32.totalorder %s12, 4
    %s22 = sphi 0, %s24
    %s25 = sphi 0, %s22
    %s26 = sphi 0, %s25
    %s42 = sphi 0, %s26
    %s46 = sphi 0, %s46
    %s48 = sphi 0, %s46
    %s49 = sphi 0, %s48
    %s63 = sphi 0, %s49
    %s67 = sphi 0, %s67
    %s69 = sphi 0, %s67
    %s70 = sphi 0, %s69
    %s84 = sphi 0, %s70
    %s90 = sphi 0, %s92
    %s93 = sphi 0, %s90
    %s94 = sphi 0, %s93
    %s110 = sphi 0, %s94
    %s116 = sphi 0, %s118
    %s119 = sphi 0, %s116
    %s120 = sphi 0, %s119
    %s136 = sphi 0, %s120
    %s142 = sphi 0, %s144
    %s145 = sphi 0, %s142
    %s146 = sphi 0, %s145
    %s162 = sphi 0, %s146
  $region4: #{basic_block_forward.3} parent=0 // loop_header_branch
    %15 = sbr.rel (%p13) target = $region8
  $region5: #{basic_block_forward.3} parent=0 // loop_body
    %s17 = ssub.s32 %s12, 1
    %s18 = ssub.s32 %s12, 2
    %s19 = sadd.s32 %s12, 1
    %s20 = ssub.s32 %s12, %s19
    %p21 = scmp.eq.s32.totalorder %s20, 0
    %s23 = sadd.s32 %s22, 1
    %s24 = scalar_select %p21, %s22, %s23
    %p27 = pneg %p21
    %p28 = scmp.eq.s32.totalorder %s12, 1
    %p29 = por %p27, %p28
    %p30 = scmp.ne.s32.totalorder %s22, %s25
    %p31 = scmp.eq.s32.totalorder %s12, 0
    %p32 = por %p30, %p31
    %p33 = scmp.ne.s32.totalorder %s22, %s25
    %p34 = scmp.eq.s32.totalorder %s17, 1
    %p35 = por %p33, %p34
    %p36 = scmp.ne.s32.totalorder %s25, %s26
    %p37 = scmp.eq.s32.totalorder %s17, 0
    %p38 = por %p36, %p37
    %p39 = scmp.ne.s32.totalorder %s25, %s26
    %p40 = scmp.eq.s32.totalorder %s18, 1
    %p41 = por %p39, %p40
    %p43 = scmp.ne.s32.totalorder %s26, %s42
    %p44 = scmp.eq.s32.totalorder %s18, 0
    %p45 = por %p43, %p44
    %s47 = sadd.s32 %s46, 1
    %p50 = scmp.eq.s32.totalorder %s12, 1
    %p51 = scmp.ne.s32.totalorder %s46, %s48
    %p52 = scmp.eq.s32.totalorder %s12, 0
    %p53 = por %p51, %p52
    %p54 = scmp.ne.s32.totalorder %s46, %s48
    %p55 = scmp.eq.s32.totalorder %s17, 1
    %p56 = por %p54, %p55
    %p57 = scmp.ne.s32.totalorder %s48, %s49
    %p58 = scmp.eq.s32.totalorder %s17, 0
    %p59 = por %p57, %p58
    %p60 = scmp.ne.s32.totalorder %s48, %s49
    %p61 = scmp.eq.s32.totalorder %s18, 1
    %p62 = por %p60, %p61
    %p64 = scmp.ne.s32.totalorder %s49, %s63
    %p65 = scmp.eq.s32.totalorder %s18, 0
    %p66 = por %p64, %p65
    %s68 = sadd.s32 %s67, 1
    %p71 = scmp.eq.s32.totalorder %s12, 1
    %p72 = scmp.ne.s32.totalorder %s67, %s69
    %p73 = scmp.eq.s32.totalorder %s12, 0
    %p74 = por %p72, %p73
    %p75 = scmp.ne.s32.totalorder %s67, %s69
    %p76 = scmp.eq.s32.totalorder %s17, 1
    %p77 = por %p75, %p76
    %p78 = scmp.ne.s32.totalorder %s69, %s70
    %p79 = scmp.eq.s32.totalorder %s17, 0
    %p80 = por %p78, %p79
    %p81 = scmp.ne.s32.totalorder %s69, %s70
    %p82 = scmp.eq.s32.totalorder %s18, 1
    %p83 = por %p81, %p82
    %p85 = scmp.ne.s32.totalorder %s70, %s84
    %p86 = scmp.eq.s32.totalorder %s18, 0
    %p87 = por %p85, %p86
    %s88 = ssub.s32 %s12, %s19
    %p89 = scmp.eq.s32.totalorder %s88, 0
    %s91 = sadd.s32 %s90, 1
    %s92 = scalar_select %p89, %s90, %s91
    %p95 = pneg %p89
    %p96 = scmp.eq.s32.totalorder %s12, 1
    %p97 = por %p95, %p96
    %p98 = scmp.ne.s32.totalorder %s90, %s93
    %p99 = scmp.eq.s32.totalorder %s12, 0
    %p100 = por %p98, %p99
    %p101 = scmp.ne.s32.totalorder %s90, %s93
    %p102 = scmp.eq.s32.totalorder %s17, 1
    %p103 = por %p101, %p102
    %p104 = scmp.ne.s32.totalorder %s93, %s94
    %p105 = scmp.eq.s32.totalorder %s17, 0
    %p106 = por %p104, %p105
    %p107 = scmp.ne.s32.totalorder %s93, %s94
    %p108 = scmp.eq.s32.totalorder %s18, 1
    %p109 = por %p107, %p108
    %p111 = scmp.ne.s32.totalorder %s94, %s110
    %p112 = scmp.eq.s32.totalorder %s18, 0
    %p113 = por %p111, %p112
    %s114 = ssub.s32 %s12, %s19
    %p115 = scmp.eq.s32.totalorder %s114, 0
    %s117 = sadd.s32 %s116, 1
    %s118 = scalar_select %p115, %s116, %s117
    %p121 = pneg %p115
    %p122 = scmp.eq.s32.totalorder %s12, 1
    %p123 = por %p121, %p122
    %p124 = scmp.ne.s32.totalorder %s116, %s119
    %p125 = scmp.eq.s32.totalorder %s12, 0
    %p126 = por %p124, %p125
    %p127 = scmp.ne.s32.totalorder %s116, %s119
    %p128 = scmp.eq.s32.totalorder %s17, 1
    %p129 = por %p127, %p128
    %p130 = scmp.ne.s32.totalorder %s119, %s120
    %p131 = scmp.eq.s32.totalorder %s17, 0
    %p132 = por %p130, %p131
    %p133 = scmp.ne.s32.totalorder %s119, %s120
    %p134 = scmp.eq.s32.totalorder %s18, 1
    %p135 = por %p133, %p134
    %p137 = scmp.ne.s32.totalorder %s120, %s136
    %p138 = scmp.eq.s32.totalorder %s18, 0
    %p139 = por %p137, %p138
    %s140 = ssub.s32 %s12, %s19
    %p141 = scmp.eq.s32.totalorder %s140, 0
    %s143 = sadd.s32 %s142, 1
    %s144 = scalar_select %p141, %s142, %s143
    %p147 = pneg %p141
    %p148 = scmp.eq.s32.totalorder %s12, 1
    %p149 = por %p147, %p148
    %p150 = scmp.ne.s32.totalorder %s142, %s145
    %p151 = scmp.eq.s32.totalorder %s12, 0
    %p152 = por %p150, %p151
    %p153 = scmp.ne.s32.totalorder %s142, %s145
    %p154 = scmp.eq.s32.totalorder %s17, 1
    %p155 = por %p153, %p154
    %p156 = scmp.ne.s32.totalorder %s145, %s146
    %p157 = scmp.eq.s32.totalorder %s17, 0
    %p158 = por %p156, %p157
    %p159 = scmp.ne.s32.totalorder %s145, %s146
    %p160 = scmp.eq.s32.totalorder %s18, 1
    %p161 = por %p159, %p160
    %p163 = scmp.ne.s32.totalorder %s146, %s162
    %p164 = scmp.eq.s32.totalorder %s18, 0
    %p165 = por %p163, %p164
    %p166 = scmp.le.s32.totalorder 1, %s12
    %p167 = scmp.lt.s32.totalorder %s12, 3
    %p168 = pnand %p166, %p167
    %p169 = pneg %p168
    // Predicated region
    $region9: #{basic_block_forward.3} parent=5 // pred_check
      _
    $region10: #{basic_block_forward.3} parent=5 // pred_check_branch
      %171 = sbr.rel (%p168) target = $region12
    $region11: #{basic_block_forward.3} parent=5 // pred_region
      %s172 = ssub.s32 %s12, 1
      // Predicated region
      $region13: #{basic_block_forward.3} parent=11 // pred_check
        %p173 = pneg %p59
      $region14: #{basic_block_forward.3} parent=11 // pred_check_branch
        %175 = sbr.rel (%p173) target = $region16
      $region15: #{basic_block_forward.3} parent=11 // pred_region
        _
      $region16: #{basic_block_forward.3} parent=11 // pred_fallthru
        _
      // Predicated region
      $region17: #{basic_block_forward.3} parent=11 // pred_check
        %p176 = pneg %p80
      $region18: #{basic_block_forward.3} parent=11 // pred_check_branch
        %178 = sbr.rel (%p176) target = $region20
      $region19: #{basic_block_forward.3} parent=11 // pred_region
        _
      $region20: #{basic_block_forward.3} parent=11 // pred_fallthru
        _
    $region12: #{basic_block_forward.3} parent=5 // pred_fallthru
      _
    %p179 = scmp.lt.s32.totalorder %s12, 2
    // Predicated region
    $region21: #{basic_block_forward.3} parent=5 // pred_check
      %p180 = pneg %p179
    $region22: #{basic_block_forward.3} parent=5 // pred_check_branch
      %182 = sbr.rel (%p180) target = $region24
    $region23: #{basic_block_forward.3} parent=5 // pred_region
      // Predicated region
      $region25: #{basic_block_forward.3} parent=23 // pred_check
        %p183 = pneg %p32
      $region26: #{basic_block_forward.3} parent=23 // pred_check_branch
        %185 = sbr.rel (%p183) target = $region28
      $region27: #{basic_block_forward.3} parent=23 // pred_region
        %p186 = scmp.lt.s32.totalorder %s12, 1
        %s187 = scalar_select %p186, %s12, 1
        %s188 = smul.addr %s187, 8
        %s189 = smul.addr %s188, 8
        %s190 = scalar_lea.vmem %s0, %s189
      $region28: #{basic_block_forward.3} parent=23 // pred_fallthru
        _
    $region24: #{basic_block_forward.3} parent=5 // pred_fallthru
      _
    %p191 = scmp.le.s32.totalorder 1, %s12
    %p192 = scmp.lt.s32.totalorder %s12, 3
    %p193 = pnand %p191, %p192
    %p194 = pneg %p193
    // Predicated region
    $region29: #{basic_block_forward.3} parent=5 // pred_check
      _
    $region30: #{basic_block_forward.3} parent=5 // pred_check_branch
      %196 = sbr.rel (%p193) target = $region32
    $region31: #{basic_block_forward.3} parent=5 // pred_region
      %s197 = ssub.s32 %s12, 1
      %p198 = scmp.lt.s32.totalorder %s17, 1
      %s199 = scalar_select %p198, %s17, 1
      %s200 = smul.addr %s199, 8
      %s201 = smul.addr %s200, 8
      %s202 = scalar_lea.vmem %s0, %s201
      %p203 = pneg %p38
      %p204 = pneg %p35
      %p205 = pneg %p59
      %p206 = pneg %p56
      %p207 = pneg %p80
      %p208 = pneg %p77
      %p209 = pneg %p106
      %p210 = pneg %p103
      %p211 = scmp.lt.s32.totalorder %s17, 1
      %s212 = scalar_select %p211, %s17, 1
      %s213 = smul.addr %s212, 8
      %s214 = smul.addr %s213, 4
      %s215 = scalar_lea.vmem %s3, %s214
      %p216 = pneg %p132
      %p217 = pneg %p129
      %p218 = scmp.lt.s32.totalorder %s17, 1
      %s219 = scalar_select %p218, %s17, 1
      %s220 = smul.addr %s219, 4
      %s221 = smul.addr %s220, 8
      %s222 = scalar_lea.vmem %s4, %s221
      %p223 = pneg %p158
      %p224 = pneg %p155
      %p225 = scmp.lt.s32.totalorder %s17, 1
      %s226 = scalar_select %p225, %s17, 1
      %s227 = smul.addr %s226, 4
      %s228 = smul.addr %s227, 8
      %s229 = scalar_lea.vmem %s5, %s228
      %p230 = scmp.lt.s32.totalorder %s17, 1
      %s231 = scalar_select %p230, %s17, 1
      %s232 = smul.addr %s231, 8
      %s233 = smul.addr %s232, 8
      %s234 = scalar_lea.vmem %s0, %s233
      %p235 = scmp.lt.s32.totalorder %s17, 1
      %s236 = scalar_select %p235, %s17, 1
      %s237 = smul.addr %s236, 8
      %s238 = smul.addr %s237, 4
      %s239 = scalar_lea.vmem %s3, %s238
      %p240 = scmp.lt.s32.totalorder %s17, 1
      %s241 = scalar_select %p240, %s17, 1
      %s242 = smul.addr %s241, 4
      %s243 = smul.addr %s242, 8
      %s244 = scalar_lea.vmem %s4, %s243
      %p245 = scmp.lt.s32.totalorder %s17, 1
      %s246 = scalar_select %p245, %s17, 1
      %s247 = smul.addr %s246, 4
      %s248 = smul.addr %s247, 8
      %s249 = scalar_lea.vmem %s5, %s248
      %v251 = vld [vmem:[%s234] sm:$0xff]
      %v252 = vld [vmem:[%s234 + $0x8] sm:$0xff]
      %v253 = vld [vmem:[%s234 + $0x10] sm:$0xff]
      %v254 = vld [vmem:[%s234 + $0x18] sm:$0xff]
      %v255 = vld [vmem:[%s234 + $0x20] sm:$0xff]
      %v256 = vld [vmem:[%s234 + $0x28] sm:$0xff]
      %v257 = vld [vmem:[%s234 + $0x30] sm:$0xff]
      %v258 = vld [vmem:[%s234 + $0x38] sm:$0xff]
      %259 = vrot.lane.b32.xlu0 %v251, 17
      %v260 = vpop.permute.xlu0 %259
      %261 = vrot.lane.b32.xlu0 %v253, 17
      %v262 = vpop.permute.xlu0 %261
      %263 = vrot.lane.b32.xlu0 %v255, 17
      %v264 = vpop.permute.xlu0 %263
      %265 = vrot.lane.b32.xlu0 %v257, 17
      %v266 = vpop.permute.xlu0 %265
      %267 = vrot.lane.b32.xlu0 %v252, 17
      %v268 = vpop.permute.xlu0 %267
      %269 = vrot.lane.b32.xlu0 %v254, 17
      %v270 = vpop.permute.xlu0 %269
      %271 = vrot.lane.b32.xlu0 %v256, 17
      %v272 = vpop.permute.xlu0 %271
      %273 = vrot.lane.b32.xlu0 %v258, 17
      %v274 = vpop.permute.xlu0 %273
      %v275 = vlaneseq
      %v276 = vand.u32 %v275, 127
      %vm277 = vcmp.lt.s32.totalorder %v276, 17
      %v278 = vsel %vm277, %v260, %v268
      %v279 = vsel %vm277, %v262, %v270
      %v280 = vsel %vm277, %v264, %v272
      %v281 = vsel %vm277, %v266, %v274
      %v282 = vsel %vm277, %v268, %v260
      %v283 = vsel %vm277, %v270, %v262
      %v284 = vsel %vm277, %v272, %v264
      %v285 = vsel %vm277, %v274, %v266
      %v286 = vld [vmem:[%s2] ss:$8 sm:$0x3]
      %v288 = vlaneseq
      %v289 = vshrl.u32 %v288, 7
      %v290 = vsub.s32 0, %v289
      %v291 = vrot.slane %v286, %v290
      %v292 = vlaneseq
      %v293 = vshrl.u32 %v292, 7
      %v294 = vsub.s32 1, %v293
      %v295 = vrot.slane %v286, %v294
      %v298 = vmul.f32 %v282, %v291
      %v299 = vmul.f32 %v278, %v295
      %v300 = vmul.f32 %v283, %v291
      %v301 = vmul.f32 %v279, %v295
      %v302 = vmul.f32 %v284, %v291
      %v303 = vmul.f32 %v280, %v295
      %v304 = vmul.f32 %v285, %v291
      %v305 = vmul.f32 %v281, %v295
      %v306 = vpack.c.bf16 %v300, %v298
      %v307 = vpack.c.bf16 %v301, %v299
      %v308 = vpack.c.bf16 %v304, %v302
      %v309 = vpack.c.bf16 %v305, %v303
      %v314 = vunpack.c.l.b16 %v306
      %v315 = vunpack.c.l.b16 %v307
      %v316 = vunpack.c.h.b16 %v306
      %v317 = vunpack.c.h.b16 %v307
      %v318 = vunpack.c.l.b16 %v308
      %v319 = vunpack.c.l.b16 %v309
      %v320 = vunpack.c.h.b16 %v308
      %v321 = vunpack.c.h.b16 %v309
      %v322 = vpack.c.b16 %v315, %v314
      %v323 = vpack.c.b16 %v317, %v316
      %v324 = vpack.c.b16 %v319, %v318
      %v325 = vpack.c.b16 %v321, %v320
      %330 = vst [vmem:[#allocation2] sm:$0xff] %v322
      %331 = vst [vmem:[#allocation2 + $0x8] sm:$0xff] %v323
      %332 = vst [vmem:[#allocation2 + $0x10] sm:$0xff] %v324
      %333 = vst [vmem:[#allocation2 + $0x18] sm:$0xff] %v325
      %334 = vrot.lane.b32.xlu0 %v251, 16
      %v335 = vpop.permute.xlu0 %334
      %336 = vrot.lane.b32.xlu0 %v253, 16
      %v337 = vpop.permute.xlu0 %336
      %338 = vrot.lane.b32.xlu0 %v255, 16
      %v339 = vpop.permute.xlu0 %338
      %340 = vrot.lane.b32.xlu0 %v257, 16
      %v341 = vpop.permute.xlu0 %340
      %342 = vrot.lane.b32.xlu0 %v252, 16
      %v343 = vpop.permute.xlu0 %342
      %344 = vrot.lane.b32.xlu0 %v254, 16
      %v345 = vpop.permute.xlu0 %344
      %346 = vrot.lane.b32.xlu0 %v256, 16
      %v347 = vpop.permute.xlu0 %346
      %348 = vrot.lane.b32.xlu0 %v258, 16
      %v349 = vpop.permute.xlu0 %348
      %vm350 = vcmp.lt.s32.totalorder %v276, 16
      %v351 = vsel %vm350, %v335, %v343
      %v352 = vsel %vm350, %v337, %v345
      %v353 = vsel %vm350, %v339, %v347
      %v354 = vsel %vm350, %v341, %v349
      %v355 = vsel %vm350, %v343, %v335
      %v356 = vsel %vm350, %v345, %v337
      %v357 = vsel %vm350, %v347, %v339
      %v358 = vsel %vm350, %v349, %v341
      %s359 = scalar_lea.vmem %s2, 1
      %v360 = vld [vmem:[%s359] ss:$8 sm:$0x3]
      %v362 = vlaneseq
      %v363 = vshrl.u32 %v362, 7
      %v364 = vsub.s32 0, %v363
      %v365 = vrot.slane %v360, %v364
      %v366 = vlaneseq
      %v367 = vshrl.u32 %v366, 7
      %v368 = vsub.s32 1, %v367
      %v369 = vrot.slane %v360, %v368
      %v372 = vmul.f32 %v355, %v365
      %v373 = vmul.f32 %v351, %v369
      %v374 = vmul.f32 %v356, %v365
      %v375 = vmul.f32 %v352, %v369
      %v376 = vmul.f32 %v357, %v365
      %v377 = vmul.f32 %v353, %v369
      %v378 = vmul.f32 %v358, %v365
      %v379 = vmul.f32 %v354, %v369
      %v380 = vpack.c.bf16 %v374, %v372
      %v381 = vpack.c.bf16 %v375, %v373
      %v382 = vpack.c.bf16 %v378, %v376
      %v383 = vpack.c.bf16 %v379, %v377
      %v388 = vunpack.c.l.b16 %v380
      %v389 = vunpack.c.l.b16 %v381
      %v390 = vunpack.c.h.b16 %v380
      %v391 = vunpack.c.h.b16 %v381
      %v392 = vunpack.c.l.b16 %v382
      %v393 = vunpack.c.l.b16 %v383
      %v394 = vunpack.c.h.b16 %v382
      %v395 = vunpack.c.h.b16 %v383
      %v396 = vpack.c.b16 %v389, %v388
      %v397 = vpack.c.b16 %v391, %v390
      %v398 = vpack.c.b16 %v393, %v392
      %v399 = vpack.c.b16 %v395, %v394
      %404 = vst [vmem:[#allocation2 + $0x20] sm:$0xff] %v396
      %405 = vst [vmem:[#allocation2 + $0x28] sm:$0xff] %v397
      %406 = vst [vmem:[#allocation2 + $0x30] sm:$0xff] %v398
      %407 = vst [vmem:[#allocation2 + $0x38] sm:$0xff] %v399
      %408 = vrot.lane.b32.xlu0 %v251, 15
      %v409 = vpop.permute.xlu0 %408
      %410 = vrot.lane.b32.xlu0 %v253, 15
      %v411 = vpop.permute.xlu0 %410
      %412 = vrot.lane.b32.xlu0 %v255, 15
      %v413 = vpop.permute.xlu0 %412
      %414 = vrot.lane.b32.xlu0 %v257, 15
      %v415 = vpop.permute.xlu0 %414
      %416 = vrot.lane.b32.xlu0 %v252, 15
      %v417 = vpop.permute.xlu0 %416
      %418 = vrot.lane.b32.xlu0 %v254, 15
      %v419 = vpop.permute.xlu0 %418
      %420 = vrot.lane.b32.xlu0 %v256, 15
      %v421 = vpop.permute.xlu0 %420
      %422 = vrot.lane.b32.xlu0 %v258, 15
      %v423 = vpop.permute.xlu0 %422
      %vm424 = vcmp.lt.s32.totalorder %v276, 15
      %v425 = vsel %vm424, %v409, %v417
      %v426 = vsel %vm424, %v411, %v419
      %v427 = vsel %vm424, %v413, %v421
      %v428 = vsel %vm424, %v415, %v423
      %v429 = vsel %vm424, %v417, %v409
      %v430 = vsel %vm424, %v419, %v411
      %v431 = vsel %vm424, %v421, %v413
      %v432 = vsel %vm424, %v423, %v415
      %s433 = scalar_lea.vmem %s2, 2
      %v434 = vld [vmem:[%s433] ss:$8 sm:$0x3]
      %v436 = vlaneseq
      %v437 = vshrl.u32 %v436, 7
      %v438 = vsub.s32 0, %v437
      %v439 = vrot.slane %v434, %v438
      %v440 = vlaneseq
      %v441 = vshrl.u32 %v440, 7
      %v442 = vsub.s32 1, %v441
      %v443 = vrot.slane %v434, %v442
      %v446 = vmul.f32 %v429, %v439
      %v447 = vmul.f32 %v425, %v443
      %v448 = vmul.f32 %v430, %v439
      %v449 = vmul.f32 %v426, %v443
      %v450 = vmul.f32 %v431, %v439
      %v451 = vmul.f32 %v427, %v443
      %v452 = vmul.f32 %v432, %v439
      %v453 = vmul.f32 %v428, %v443
      %v454 = vpack.c.bf16 %v448, %v446
      %v455 = vpack.c.bf16 %v449, %v447
      %v456 = vpack.c.bf16 %v452, %v450
      %v457 = vpack.c.bf16 %v453, %v451
      %v462 = vunpack.c.l.b16 %v454
      %v463 = vunpack.c.l.b16 %v455
      %v464 = vunpack.c.h.b16 %v454
      %v465 = vunpack.c.h.b16 %v455
      %v466 = vunpack.c.l.b16 %v456
      %v467 = vunpack.c.l.b16 %v457
      %v468 = vunpack.c.h.b16 %v456
      %v469 = vunpack.c.h.b16 %v457
      %v470 = vpack.c.b16 %v463, %v462
      %v471 = vpack.c.b16 %v465, %v464
      %v472 = vpack.c.b16 %v467, %v466
      %v473 = vpack.c.b16 %v469, %v468
      %478 = vst [vmem:[#allocation2 + $0x40] sm:$0xff] %v470
      %479 = vst [vmem:[#allocation2 + $0x48] sm:$0xff] %v471
      %480 = vst [vmem:[#allocation2 + $0x50] sm:$0xff] %v472
      %481 = vst [vmem:[#allocation2 + $0x58] sm:$0xff] %v473
      %482 = vrot.lane.b32.xlu0 %v251, 1
      %v483 = vpop.permute.xlu0 %482
      %484 = vrot.lane.b32.xlu0 %v253, 1
      %v485 = vpop.permute.xlu0 %484
      %486 = vrot.lane.b32.xlu0 %v255, 1
      %v487 = vpop.permute.xlu0 %486
      %488 = vrot.lane.b32.xlu0 %v257, 1
      %v489 = vpop.permute.xlu0 %488
      %490 = vrot.lane.b32.xlu0 %v252, 1
      %v491 = vpop.permute.xlu0 %490
      %492 = vrot.lane.b32.xlu0 %v254, 1
      %v493 = vpop.permute.xlu0 %492
      %494 = vrot.lane.b32.xlu0 %v256, 1
      %v495 = vpop.permute.xlu0 %494
      %496 = vrot.lane.b32.xlu0 %v258, 1
      %v497 = vpop.permute.xlu0 %496
      %vm498 = vcmp.lt.s32.totalorder %v276, 1
      %v499 = vsel %vm498, %v483, %v491
      %v500 = vsel %vm498, %v485, %v493
      %v501 = vsel %vm498, %v487, %v495
      %v502 = vsel %vm498, %v489, %v497
      %v503 = vsel %vm498, %v491, %v483
      %v504 = vsel %vm498, %v493, %v485
      %v505 = vsel %vm498, %v495, %v487
      %v506 = vsel %vm498, %v497, %v489
      %s507 = scalar_lea.vmem %s2, 3
      %v508 = vld [vmem:[%s507] ss:$8 sm:$0x3]
      %v510 = vlaneseq
      %v511 = vshrl.u32 %v510, 7
      %v512 = vsub.s32 0, %v511
      %v513 = vrot.slane %v508, %v512
      %v514 = vlaneseq
      %v515 = vshrl.u32 %v514, 7
      %v516 = vsub.s32 1, %v515
      %v517 = vrot.slane %v508, %v516
      %v520 = vmul.f32 %v503, %v513
      %v521 = vmul.f32 %v499, %v517
      %v522 = vmul.f32 %v504, %v513
      %v523 = vmul.f32 %v500, %v517
      %v524 = vmul.f32 %v505, %v513
      %v525 = vmul.f32 %v501, %v517
      %v526 = vmul.f32 %v506, %v513
      %v527 = vmul.f32 %v502, %v517
      %v528 = vpack.c.bf16 %v522, %v520
      %v529 = vpack.c.bf16 %v523, %v521
      %v530 = vpack.c.bf16 %v526, %v524
      %v531 = vpack.c.bf16 %v527, %v525
      %v536 = vunpack.c.l.b16 %v528
      %v537 = vunpack.c.l.b16 %v529
      %v538 = vunpack.c.h.b16 %v528
      %v539 = vunpack.c.h.b16 %v529
      %v540 = vunpack.c.l.b16 %v530
      %v541 = vunpack.c.l.b16 %v531
      %v542 = vunpack.c.h.b16 %v530
      %v543 = vunpack.c.h.b16 %v531
      %v544 = vpack.c.b16 %v537, %v536
      %v545 = vpack.c.b16 %v539, %v538
      %v546 = vpack.c.b16 %v541, %v540
      %v547 = vpack.c.b16 %v543, %v542
      %552 = vst [vmem:[#allocation2 + $0x60] sm:$0xff] %v544
      %553 = vst [vmem:[#allocation2 + $0x68] sm:$0xff] %v545
      %554 = vst [vmem:[#allocation2 + $0x70] sm:$0xff] %v546
      %555 = vst [vmem:[#allocation2 + $0x78] sm:$0xff] %v547
      %v556 = vpack.c.bf16 %v253, %v251
      %v557 = vpack.c.bf16 %v254, %v252
      %v558 = vpack.c.bf16 %v257, %v255
      %v559 = vpack.c.bf16 %v258, %v256
      %v564 = vunpack.c.l.b16 %v556
      %v565 = vunpack.c.l.b16 %v557
      %v566 = vunpack.c.h.b16 %v556
      %v567 = vunpack.c.h.b16 %v557
      %v568 = vunpack.c.l.b16 %v558
      %v569 = vunpack.c.l.b16 %v559
      %v570 = vunpack.c.h.b16 %v558
      %v571 = vunpack.c.h.b16 %v559
      %v572 = vpack.c.b16 %v565, %v564
      %v573 = vpack.c.b16 %v567, %v566
      %v574 = vpack.c.b16 %v569, %v568
      %v575 = vpack.c.b16 %v571, %v570
      %580 = vst [vmem:[#allocation2 + $0x80] sm:$0xff] %v572
      %581 = vst [vmem:[#allocation2 + $0x88] sm:$0xff] %v573
      %582 = vst [vmem:[#allocation2 + $0x90] sm:$0xff] %v574
      %583 = vst [vmem:[#allocation2 + $0x98] sm:$0xff] %v575
      %584 = vrot.lane.b32.xlu0 %v251, 127
      %v585 = vpop.permute.xlu0 %584
      %586 = vrot.lane.b32.xlu0 %v253, 127
      %v587 = vpop.permute.xlu0 %586
      %588 = vrot.lane.b32.xlu0 %v255, 127
      %v589 = vpop.permute.xlu0 %588
      %590 = vrot.lane.b32.xlu0 %v257, 127
      %v591 = vpop.permute.xlu0 %590
      %592 = vrot.lane.b32.xlu0 %v252, 127
      %v593 = vpop.permute.xlu0 %592
      %594 = vrot.lane.b32.xlu0 %v254, 127
      %v595 = vpop.permute.xlu0 %594
      %596 = vrot.lane.b32.xlu0 %v256, 127
      %v597 = vpop.permute.xlu0 %596
      %598 = vrot.lane.b32.xlu0 %v258, 127
      %v599 = vpop.permute.xlu0 %598
      %vm600 = vcmp.lt.s32.totalorder %v276, 127
      %v601 = vsel %vm600, %v585, %v593
      %v602 = vsel %vm600, %v587, %v595
      %v603 = vsel %vm600, %v589, %v597
      %v604 = vsel %vm600, %v591, %v599
      %v605 = vsel %vm600, %v593, %v585
      %v606 = vsel %vm600, %v595, %v587
      %v607 = vsel %vm600, %v597, %v589
      %v608 = vsel %vm600, %v599, %v591
      %s609 = scalar_lea.vmem %s2, 5
      %v610 = vld [vmem:[%s609] ss:$8 sm:$0x3]
      %v612 = vlaneseq
      %v613 = vshrl.u32 %v612, 7
      %v614 = vsub.s32 0, %v613
      %v615 = vrot.slane %v610, %v614
      %v616 = vlaneseq
      %v617 = vshrl.u32 %v616, 7
      %v618 = vsub.s32 1, %v617
      %v619 = vrot.slane %v610, %v618
      %v622 = vmul.f32 %v601, %v615
      %v623 = vmul.f32 %v605, %v619
      %v624 = vmul.f32 %v602, %v615
      %v625 = vmul.f32 %v606, %v619
      %v626 = vmul.f32 %v603, %v615
      %v627 = vmul.f32 %v607, %v619
      %v628 = vmul.f32 %v604, %v615
      %v629 = vmul.f32 %v608, %v619
      %v630 = vpack.c.bf16 %v624, %v622
      %v631 = vpack.c.bf16 %v625, %v623
      %v632 = vpack.c.bf16 %v628, %v626
      %v633 = vpack.c.bf16 %v629, %v627
      %v638 = vunpack.c.l.b16 %v630
      %v639 = vunpack.c.l.b16 %v631
      %v640 = vunpack.c.h.b16 %v630
      %v641 = vunpack.c.h.b16 %v631
      %v642 = vunpack.c.l.b16 %v632
      %v643 = vunpack.c.l.b16 %v633
      %v644 = vunpack.c.h.b16 %v632
      %v645 = vunpack.c.h.b16 %v633
      %v646 = vpack.c.b16 %v639, %v638
      %v647 = vpack.c.b16 %v641, %v640
      %v648 = vpack.c.b16 %v643, %v642
      %v649 = vpack.c.b16 %v645, %v644
      %654 = vst [vmem:[#allocation2 + $0xa0] sm:$0xff] %v646
      %655 = vst [vmem:[#allocation2 + $0xa8] sm:$0xff] %v647
      %656 = vst [vmem:[#allocation2 + $0xb0] sm:$0xff] %v648
      %657 = vst [vmem:[#allocation2 + $0xb8] sm:$0xff] %v649
      %658 = vrot.lane.b32.xlu0 %v251, 113
      %v659 = vpop.permute.xlu0 %658
      %660 = vrot.lane.b32.xlu0 %v253, 113
      %v661 = vpop.permute.xlu0 %660
      %662 = vrot.lane.b32.xlu0 %v255, 113
      %v663 = vpop.permute.xlu0 %662
      %664 = vrot.lane.b32.xlu0 %v257, 113
      %v665 = vpop.permute.xlu0 %664
      %666 = vrot.lane.b32.xlu0 %v252, 113
      %v667 = vpop.permute.xlu0 %666
      %668 = vrot.lane.b32.xlu0 %v254, 113
      %v669 = vpop.permute.xlu0 %668
      %670 = vrot.lane.b32.xlu0 %v256, 113
      %v671 = vpop.permute.xlu0 %670
      %672 = vrot.lane.b32.xlu0 %v258, 113
      %v673 = vpop.permute.xlu0 %672
      %vm674 = vcmp.lt.s32.totalorder %v276, 113
      %v675 = vsel %vm674, %v659, %v667
      %v676 = vsel %vm674, %v661, %v669
      %v677 = vsel %vm674, %v663, %v671
      %v678 = vsel %vm674, %v665, %v673
      %v679 = vsel %vm674, %v667, %v659
      %v680 = vsel %vm674, %v669, %v661
      %v681 = vsel %vm674, %v671, %v663
      %v682 = vsel %vm674, %v673, %v665
      %s683 = scalar_lea.vmem %s2, 6
      %v684 = vld [vmem:[%s683] ss:$8 sm:$0x3]
      %v686 = vlaneseq
      %v687 = vshrl.u32 %v686, 7
      %v688 = vsub.s32 0, %v687
      %v689 = vrot.slane %v684, %v688
      %v690 = vlaneseq
      %v691 = vshrl.u32 %v690, 7
      %v692 = vsub.s32 1, %v691
      %v693 = vrot.slane %v684, %v692
      %v696 = vmul.f32 %v675, %v689
      %v697 = vmul.f32 %v679, %v693
      %v698 = vmul.f32 %v676, %v689
      %v699 = vmul.f32 %v680, %v693
      %v700 = vmul.f32 %v677, %v689
      %v701 = vmul.f32 %v681, %v693
      %v702 = vmul.f32 %v678, %v689
      %v703 = vmul.f32 %v682, %v693
      %v704 = vpack.c.bf16 %v698, %v696
      %v705 = vpack.c.bf16 %v699, %v697
      %v706 = vpack.c.bf16 %v702, %v700
      %v707 = vpack.c.bf16 %v703, %v701
      %v712 = vunpack.c.l.b16 %v704
      %v713 = vunpack.c.l.b16 %v705
      %v714 = vunpack.c.h.b16 %v704
      %v715 = vunpack.c.h.b16 %v705
      %v716 = vunpack.c.l.b16 %v706
      %v717 = vunpack.c.l.b16 %v707
      %v718 = vunpack.c.h.b16 %v706
      %v719 = vunpack.c.h.b16 %v707
      %v720 = vpack.c.b16 %v713, %v712
      %v721 = vpack.c.b16 %v715, %v714
      %v722 = vpack.c.b16 %v717, %v716
      %v723 = vpack.c.b16 %v719, %v718
      %728 = vst [vmem:[#allocation2 + $0xc0] sm:$0xff] %v720
      %729 = vst [vmem:[#allocation2 + $0xc8] sm:$0xff] %v721
      %730 = vst [vmem:[#allocation2 + $0xd0] sm:$0xff] %v722
      %731 = vst [vmem:[#allocation2 + $0xd8] sm:$0xff] %v723
      %732 = vrot.lane.b32.xlu0 %v251, 112
      %v733 = vpop.permute.xlu0 %732
      %734 = vrot.lane.b32.xlu0 %v253, 112
      %v735 = vpop.permute.xlu0 %734
      %736 = vrot.lane.b32.xlu0 %v255, 112
      %v737 = vpop.permute.xlu0 %736
      %738 = vrot.lane.b32.xlu0 %v257, 112
      %v739 = vpop.permute.xlu0 %738
      %740 = vrot.lane.b32.xlu0 %v252, 112
      %v741 = vpop.permute.xlu0 %740
      %742 = vrot.lane.b32.xlu0 %v254, 112
      %v743 = vpop.permute.xlu0 %742
      %744 = vrot.lane.b32.xlu0 %v256, 112
      %v745 = vpop.permute.xlu0 %744
      %746 = vrot.lane.b32.xlu0 %v258, 112
      %v747 = vpop.permute.xlu0 %746
      %vm748 = vcmp.lt.s32.totalorder %v276, 112
      %v749 = vsel %vm748, %v733, %v741
      %v750 = vsel %vm748, %v735, %v743
      %v751 = vsel %vm748, %v737, %v745
      %v752 = vsel %vm748, %v739, %v747
      %v753 = vsel %vm748, %v741, %v733
      %v754 = vsel %vm748, %v743, %v735
      %v755 = vsel %vm748, %v745, %v737
      %v756 = vsel %vm748, %v747, %v739
      %s757 = scalar_lea.vmem %s2, 7
      %v758 = vld [vmem:[%s757] ss:$8 sm:$0x3]
      %v760 = vlaneseq
      %v761 = vshrl.u32 %v760, 7
      %v762 = vsub.s32 0, %v761
      %v763 = vrot.slane %v758, %v762
      %v764 = vlaneseq
      %v765 = vshrl.u32 %v764, 7
      %v766 = vsub.s32 1, %v765
      %v767 = vrot.slane %v758, %v766
      %v770 = vmul.f32 %v749, %v763
      %v771 = vmul.f32 %v753, %v767
      %v772 = vmul.f32 %v750, %v763
      %v773 = vmul.f32 %v754, %v767
      %v774 = vmul.f32 %v751, %v763
      %v775 = vmul.f32 %v755, %v767
      %v776 = vmul.f32 %v752, %v763
      %v777 = vmul.f32 %v756, %v767
      %v778 = vpack.c.bf16 %v772, %v770
      %v779 = vpack.c.bf16 %v773, %v771
      %v780 = vpack.c.bf16 %v776, %v774
      %v781 = vpack.c.bf16 %v777, %v775
      %v786 = vunpack.c.l.b16 %v778
      %v787 = vunpack.c.l.b16 %v779
      %v788 = vunpack.c.h.b16 %v778
      %v789 = vunpack.c.h.b16 %v779
      %v790 = vunpack.c.l.b16 %v780
      %v791 = vunpack.c.l.b16 %v781
      %v792 = vunpack.c.h.b16 %v780
      %v793 = vunpack.c.h.b16 %v781
      %v794 = vpack.c.b16 %v787, %v786
      %v795 = vpack.c.b16 %v789, %v788
      %v796 = vpack.c.b16 %v791, %v790
      %v797 = vpack.c.b16 %v793, %v792
      %802 = vst [vmem:[#allocation2 + $0xe0] sm:$0xff] %v794
      %803 = vst [vmem:[#allocation2 + $0xe8] sm:$0xff] %v795
      %804 = vst [vmem:[#allocation2 + $0xf0] sm:$0xff] %v796
      %805 = vst [vmem:[#allocation2 + $0xf8] sm:$0xff] %v797
      %806 = vrot.lane.b32.xlu0 %v251, 111
      %v807 = vpop.permute.xlu0 %806
      %808 = vrot.lane.b32.xlu0 %v253, 111
      %v809 = vpop.permute.xlu0 %808
      %810 = vrot.lane.b32.xlu0 %v255, 111
      %v811 = vpop.permute.xlu0 %810
      %812 = vrot.lane.b32.xlu0 %v257, 111
      %v813 = vpop.permute.xlu0 %812
      %814 = vrot.lane.b32.xlu0 %v252, 111
      %v815 = vpop.permute.xlu0 %814
      %816 = vrot.lane.b32.xlu0 %v254, 111
      %v817 = vpop.permute.xlu0 %816
      %818 = vrot.lane.b32.xlu0 %v256, 111
      %v819 = vpop.permute.xlu0 %818
      %820 = vrot.lane.b32.xlu0 %v258, 111
      %v821 = vpop.permute.xlu0 %820
      %vm822 = vcmp.lt.s32.totalorder %v276, 111
      %v823 = vsel %vm822, %v807, %v815
      %v824 = vsel %vm822, %v809, %v817
      %v825 = vsel %vm822, %v811, %v819
      %v826 = vsel %vm822, %v813, %v821
      %v827 = vsel %vm822, %v815, %v807
      %v828 = vsel %vm822, %v817, %v809
      %v829 = vsel %vm822, %v819, %v811
      %v830 = vsel %vm822, %v821, %v813
      %s831 = scalar_lea.vmem %s2, 16
      %v832 = vld [vmem:[%s831] ss:$8 sm:$0x3]
      %v834 = vlaneseq
      %v835 = vshrl.u32 %v834, 7
      %v836 = vsub.s32 0, %v835
      %v837 = vrot.slane %v832, %v836
      %v838 = vlaneseq
      %v839 = vshrl.u32 %v838, 7
      %v840 = vsub.s32 1, %v839
      %v841 = vrot.slane %v832, %v840
      %v844 = vmul.f32 %v823, %v837
      %v845 = vmul.f32 %v827, %v841
      %v846 = vmul.f32 %v824, %v837
      %v847 = vmul.f32 %v828, %v841
      %v848 = vmul.f32 %v825, %v837
      %v849 = vmul.f32 %v829, %v841
      %v850 = vmul.f32 %v826, %v837
      %v851 = vmul.f32 %v830, %v841
      %v852 = vpack.c.bf16 %v846, %v844
      %v853 = vpack.c.bf16 %v847, %v845
      %v854 = vpack.c.bf16 %v850, %v848
      %v855 = vpack.c.bf16 %v851, %v849
      %v860 = vunpack.c.l.b16 %v852
      %v861 = vunpack.c.l.b16 %v853
      %v862 = vunpack.c.h.b16 %v852
      %v863 = vunpack.c.h.b16 %v853
      %v864 = vunpack.c.l.b16 %v854
      %v865 = vunpack.c.l.b16 %v855
      %v866 = vunpack.c.h.b16 %v854
      %v867 = vunpack.c.h.b16 %v855
      %v868 = vpack.c.b16 %v861, %v860
      %v869 = vpack.c.b16 %v863, %v862
      %v870 = vpack.c.b16 %v865, %v864
      %v871 = vpack.c.b16 %v867, %v866
      %876 = vst [vmem:[#allocation2 + $0x100] sm:$0xff] %v868
      %877 = vst [vmem:[#allocation2 + $0x108] sm:$0xff] %v869
      %878 = vst [vmem:[#allocation2 + $0x110] sm:$0xff] %v870
      %879 = vst [vmem:[#allocation2 + $0x118] sm:$0xff] %v871
      %v880 = vld [vmem:[%s1] sm:$0xff]
      %v881 = vld [vmem:[%s1 + $0x8] sm:$0xf]
      %v882 = vld [vmem:[%s1 + $0xc] sm:$0xff]
      %v883 = vld [vmem:[%s1 + $0x14] sm:$0xf]
      %v884 = vld [vmem:[%s1 + $0x18] sm:$0xff]
      %v885 = vld [vmem:[%s1 + $0x20] sm:$0xf]
      %v886 = vld [vmem:[%s1 + $0x24] sm:$0xff]
      %v887 = vld [vmem:[%s1 + $0x2c] sm:$0xf]
      %v888 = vld [vmem:[#allocation2] sm:$0xff]
      %v889 = vld [vmem:[#allocation2 + $0x8] sm:$0xff]
      %v890 = vld [vmem:[#allocation2 + $0x10] sm:$0xff]
      %v891 = vld [vmem:[#allocation2 + $0x18] sm:$0xff]
      %v892 = vld [vmem:[#allocation2 + $0x20] sm:$0xff]
      %v893 = vld [vmem:[#allocation2 + $0x28] sm:$0xff]
      %v894 = vld [vmem:[#allocation2 + $0x30] sm:$0xff]
      %v895 = vld [vmem:[#allocation2 + $0x38] sm:$0xff]
      %v896 = vld [vmem:[#allocation2 + $0x40] sm:$0xff]
      %v897 = vld [vmem:[#allocation2 + $0x48] sm:$0xff]
      %v898 = vld [vmem:[#allocation2 + $0x50] sm:$0xff]
      %v899 = vld [vmem:[#allocation2 + $0x58] sm:$0xff]
      %v900 = vld [vmem:[#allocation2 + $0x60] sm:$0xff]
      %v901 = vld [vmem:[#allocation2 + $0x68] sm:$0xff]
      %v902 = vld [vmem:[#allocation2 + $0x70] sm:$0xff]
      %v903 = vld [vmem:[#allocation2 + $0x78] sm:$0xff]
      %v904 = vld [vmem:[#allocation2 + $0x80] sm:$0xff]
      %v905 = vld [vmem:[#allocation2 + $0x88] sm:$0xff]
      %v906 = vld [vmem:[#allocation2 + $0x90] sm:$0xff]
      %v907 = vld [vmem:[#allocation2 + $0x98] sm:$0xff]
      %v908 = vld [vmem:[#allocation2 + $0xa0] sm:$0xff]
      %v909 = vld [vmem:[#allocation2 + $0xa8] sm:$0xff]
      %v910 = vld [vmem:[#allocation2 + $0xb0] sm:$0xff]
      %v911 = vld [vmem:[#allocation2 + $0xb8] sm:$0xff]
      %v912 = vld [vmem:[#allocation2 + $0xc0] sm:$0xff]
      %v913 = vld [vmem:[#allocation2 + $0xc8] sm:$0xff]
      %v914 = vld [vmem:[#allocation2 + $0xd0] sm:$0xff]
      %v915 = vld [vmem:[#allocation2 + $0xd8] sm:$0xff]
      %v916 = vld [vmem:[#allocation2 + $0xe0] sm:$0xff]
      %v917 = vld [vmem:[#allocation2 + $0xe8] sm:$0xff]
      %v918 = vld [vmem:[#allocation2 + $0xf0] sm:$0xff]
      %v919 = vld [vmem:[#allocation2 + $0xf8] sm:$0xff]
      %v920 = vld [vmem:[#allocation2 + $0x100] sm:$0xff]
      %v921 = vld [vmem:[#allocation2 + $0x108] sm:$0xff]
      %v922 = vld [vmem:[#allocation2 + $0x110] sm:$0xff]
      %v923 = vld [vmem:[#allocation2 + $0x118] sm:$0xff]
      %v932 = vunpack.c.l.b16 %v880
      %v933 = vunpack.c.h.b16 %v880
      %v934 = vunpack.c.l.b16 %v881
      %v935 = vunpack.c.l.b16 %v882
      %v936 = vunpack.c.h.b16 %v882
      %v937 = vunpack.c.l.b16 %v883
      %v938 = vunpack.c.l.b16 %v884
      %v939 = vunpack.c.h.b16 %v884
      %v940 = vunpack.c.l.b16 %v885
      %v941 = vunpack.c.l.b16 %v886
      %v942 = vunpack.c.h.b16 %v886
      %v943 = vunpack.c.l.b16 %v887
      %v944 = vpack.c.b16 %v935, %v932
      %v945 = vpack.c.b16 %v936, %v933
      %v946 = vpack.c.b16 %v937, %v934
      %v947 = vpack.c.b16 %v941, %v938
      %v948 = vpack.c.b16 %v942, %v939
      %v949 = vpack.c.b16 %v943, %v940
      %v990 = vunpack.c.l.b16 %v888
      %v991 = vunpack.c.h.b16 %v888
      %v992 = vunpack.c.l.b16 %v889
      %v993 = vunpack.c.h.b16 %v889
      %v994 = vunpack.c.l.b16 %v890
      %v995 = vunpack.c.h.b16 %v890
      %v996 = vunpack.c.l.b16 %v891
      %v997 = vunpack.c.h.b16 %v891
      %v998 = vunpack.c.l.b16 %v892
      %v999 = vunpack.c.h.b16 %v892
      %v1000 = vunpack.c.l.b16 %v893
      %v1001 = vunpack.c.h.b16 %v893
      %v1002 = vunpack.c.l.b16 %v894
      %v1003 = vunpack.c.h.b16 %v894
      %v1004 = vunpack.c.l.b16 %v895
      %v1005 = vunpack.c.h.b16 %v895
      %v1006 = vunpack.c.l.b16 %v896
      %v1007 = vunpack.c.h.b16 %v896
      %v1008 = vunpack.c.l.b16 %v897
      %v1009 = vunpack.c.h.b16 %v897
      %v1010 = vunpack.c.l.b16 %v898
      %v1011 = vunpack.c.h.b16 %v898
      %v1012 = vunpack.c.l.b16 %v899
      %v1013 = vunpack.c.h.b16 %v899
      %v1014 = vunpack.c.l.b16 %v900
      %v1015 = vunpack.c.h.b16 %v900
      %v1016 = vunpack.c.l.b16 %v901
      %v1017 = vunpack.c.h.b16 %v901
      %v1018 = vunpack.c.l.b16 %v902
      %v1019 = vunpack.c.h.b16 %v902
      %v1020 = vunpack.c.l.b16 %v903
      %v1021 = vunpack.c.h.b16 %v903
      %v1022 = vunpack.c.l.b16 %v904
      %v1023 = vunpack.c.h.b16 %v904
      %v1024 = vunpack.c.l.b16 %v905
      %v1025 = vunpack.c.h.b16 %v905
      %v1026 = vunpack.c.l.b16 %v906
      %v1027 = vunpack.c.h.b16 %v906
      %v1028 = vunpack.c.l.b16 %v907
      %v1029 = vunpack.c.h.b16 %v907
      %v1030 = vunpack.c.l.b16 %v908
      %v1031 = vunpack.c.h.b16 %v908
      %v1032 = vunpack.c.l.b16 %v909
      %v1033 = vunpack.c.h.b16 %v909
      %v1034 = vunpack.c.l.b16 %v910
      %v1035 = vunpack.c.h.b16 %v910
      %v1036 = vunpack.c.l.b16 %v911
      %v1037 = vunpack.c.h.b16 %v911
      %v1038 = vunpack.c.l.b16 %v912
      %v1039 = vunpack.c.h.b16 %v912
      %v1040 = vunpack.c.l.b16 %v913
      %v1041 = vunpack.c.h.b16 %v913
      %v1042 = vunpack.c.l.b16 %v914
      %v1043 = vunpack.c.h.b16 %v914
      %v1044 = vunpack.c.l.b16 %v915
      %v1045 = vunpack.c.h.b16 %v915
      %v1046 = vunpack.c.l.b16 %v916
      %v1047 = vunpack.c.h.b16 %v916
      %v1048 = vunpack.c.l.b16 %v917
      %v1049 = vunpack.c.h.b16 %v917
      %v1050 = vunpack.c.l.b16 %v918
      %v1051 = vunpack.c.h.b16 %v918
      %v1052 = vunpack.c.l.b16 %v919
      %v1053 = vunpack.c.h.b16 %v919
      %v1054 = vunpack.c.l.b16 %v920
      %v1055 = vunpack.c.h.b16 %v920
      %v1056 = vunpack.c.l.b16 %v921
      %v1057 = vunpack.c.h.b16 %v921
      %v1058 = vunpack.c.l.b16 %v922
      %v1059 = vunpack.c.h.b16 %v922
      %v1060 = vunpack.c.l.b16 %v923
      %v1061 = vunpack.c.h.b16 %v923
      %v1062 = vpack.c.b16 %v992, %v990
      %v1063 = vpack.c.b16 %v993, %v991
      %v1064 = vpack.c.b16 %v996, %v994
      %v1065 = vpack.c.b16 %v997, %v995
      %v1066 = vpack.c.b16 %v1000, %v998
      %v1067 = vpack.c.b16 %v1001, %v999
      %v1068 = vpack.c.b16 %v1004, %v1002
      %v1069 = vpack.c.b16 %v1005, %v1003
      %v1070 = vpack.c.b16 %v1008, %v1006
      %v1071 = vpack.c.b16 %v1009, %v1007
      %v1072 = vpack.c.b16 %v1012, %v1010
      %v1073 = vpack.c.b16 %v1013, %v1011
      %v1074 = vpack.c.b16 %v1016, %v1014
      %v1075 = vpack.c.b16 %v1017, %v1015
      %v1076 = vpack.c.b16 %v1020, %v1018
      %v1077 = vpack.c.b16 %v1021, %v1019
      %v1078 = vpack.c.b16 %v1024, %v1022
      %v1079 = vpack.c.b16 %v1025, %v1023
      %v1080 = vpack.c.b16 %v1028, %v1026
      %v1081 = vpack.c.b16 %v1029, %v1027
      %v1082 = vpack.c.b16 %v1032, %v1030
      %v1083 = vpack.c.b16 %v1033, %v1031
      %v1084 = vpack.c.b16 %v1036, %v1034
      %v1085 = vpack.c.b16 %v1037, %v1035
      %v1086 = vpack.c.b16 %v1040, %v1038
      %v1087 = vpack.c.b16 %v1041, %v1039
      %v1088 = vpack.c.b16 %v1044, %v1042
      %v1089 = vpack.c.b16 %v1045, %v1043
      %v1090 = vpack.c.b16 %v1048, %v1046
      %v1091 = vpack.c.b16 %v1049, %v1047
      %v1092 = vpack.c.b16 %v1052, %v1050
      %v1093 = vpack.c.b16 %v1053, %v1051
      %v1094 = vpack.c.b16 %v1056, %v1054
      %v1095 = vpack.c.b16 %v1057, %v1055
      %v1096 = vpack.c.b16 %v1060, %v1058
      %v1097 = vpack.c.b16 %v1061, %v1059
      %vm1134 = vcmask 261120
      %v1136 = vsel %vm1134, %v946, 0
      %v1139 = vsel %vm1134, %v949, 0
      %1141 = vmatprep.subr.bf16.mxu0 %v1077
      %1142 = vmatpush1.bf16.msra.mxu0 %v1076
      %1143 = vmatprep.subr.bf16.mxu0 %v1075
      %1144 = vmatpush1.bf16.msra.mxu0 %v1074
      %1145 = vmatprep.subr.bf16.mxu0 %v1073
      %1146 = vmatpush1.bf16.msra.mxu0 %v1072
      %1147 = vmatprep.subr.bf16.mxu0 %v1071
      %1148 = vmatpush1.bf16.msra.mxu0 %v1070
      %1149 = vmatprep.subr.bf16.mxu0 %v1069
      %1150 = vmatpush1.bf16.msra.mxu0 %v1068
      %1151 = vmatprep.subr.bf16.mxu0 %v1067
      %1152 = vmatpush1.bf16.msra.mxu0 %v1066
      %1153 = vmatprep.subr.bf16.mxu0 %v1065
      %1154 = vmatpush1.bf16.msra.mxu0 %v1064
      %1155 = vmatprep.subr.bf16.mxu0 %v1063
      %1156 = vmatpush1.bf16.msra.mxu0 %v1062
      %1157 = vmatprep.subr.bf16.mxu0 %v1093
      %1158 = vmatpush2.bf16.msra.mxu0 %v1092
      %1159 = vmatprep.subr.bf16.mxu0 %v1091
      %1160 = vmatpush2.bf16.msra.mxu0 %v1090
      %1161 = vmatprep.subr.bf16.mxu0 %v1089
      %1162 = vmatpush2.bf16.msra.mxu0 %v1088
      %1163 = vmatprep.subr.bf16.mxu0 %v1087
      %1164 = vmatpush2.bf16.msra.mxu0 %v1086
      %1165 = vmatprep.subr.bf16.mxu0 %v1085
      %1166 = vmatpush2.bf16.msra.mxu0 %v1084
      %1167 = vmatprep.subr.bf16.mxu0 %v1083
      %1168 = vmatpush2.bf16.msra.mxu0 %v1082
      %1169 = vmatprep.subr.bf16.mxu0 %v1081
      %1170 = vmatpush2.bf16.msra.mxu0 %v1080
      %1171 = vmatprep.subr.bf16.mxu0 %v1079
      %1172 = vmatpush2.bf16.msra.mxu0 %v1078
      %1173 = vmatprep.mubr.bf16.mxu0 %v945
      %1174 = vmatmul.mubr.bf16.gmra.mxu0 %v944
      %v1175 = vpop.f32.mrf.mxu0
      %v1176 = vadd.f32 0.0, %v1175
      %v1177 = vpop.f32.mrf.mxu0
      %v1178 = vadd.f32 0.0, %v1177
      %v1179 = vpop.f32.mrf.mxu0
      %v1180 = vadd.f32 0.0, %v1179
      %v1181 = vpop.f32.mrf.mxu0
      %v1182 = vadd.f32 0.0, %v1181
      %1183 = vmatprep.mubr.bf16.mxu0 %v948
      %1184 = vmatmul.mubr.bf16.gmra.mxu0 %v947
      %v1185 = vpop.f32.mrf.mxu0
      %v1186 = vadd.f32 0.0, %v1185
      %v1187 = vpop.f32.mrf.mxu0
      %v1188 = vadd.f32 0.0, %v1187
      %v1189 = vpop.f32.mrf.mxu0
      %v1190 = vadd.f32 0.0, %v1189
      %v1191 = vpop.f32.mrf.mxu0
      %v1192 = vadd.f32 0.0, %v1191
      %1193 = vdwg.mxu0
      %1194 = vmatprep.subr.bf16.mxu0 0
      %1195 = vmatpush1.bf16.msra.mxu0 0
      %1196 = vmatprep.subr.bf16.mxu0 0
      %1197 = vmatpush1.bf16.msra.mxu0 0
      %1198 = vmatprep.subr.bf16.mxu0 0
      %1199 = vmatpush1.bf16.msra.mxu0 0
      %1200 = vmatprep.subr.bf16.mxu0 0
      %1201 = vmatpush1.bf16.msra.mxu0 0
      %1202 = vmatprep.subr.bf16.mxu0 0
      %1203 = vmatpush1.bf16.msra.mxu0 0
      %1204 = vmatprep.subr.bf16.mxu0 0
      %1205 = vmatpush1.bf16.msra.mxu0 0
      %1206 = vmatprep.subr.bf16.mxu0 %v1097
      %1207 = vmatpush1.bf16.msra.mxu0 %v1096
      %1208 = vmatprep.subr.bf16.mxu0 %v1095
      %1209 = vmatpush1.bf16.msra.mxu0 %v1094
      %1210 = vmatprep.subr.bf16.mxu0 0
      %1211 = vmatpush2.bf16.msra.mxu0 0
      %1212 = vmatprep.subr.bf16.mxu0 0
      %1213 = vmatpush2.bf16.msra.mxu0 0
      %1214 = vmatprep.subr.bf16.mxu0 0
      %1215 = vmatpush2.bf16.msra.mxu0 0
      %1216 = vmatprep.subr.bf16.mxu0 0
      %1217 = vmatpush2.bf16.msra.mxu0 0
      %1218 = vmatprep.subr.bf16.mxu0 0
      %1219 = vmatpush2.bf16.msra.mxu0 0
      %1220 = vmatprep.subr.bf16.mxu0 0
      %1221 = vmatpush2.bf16.msra.mxu0 0
      %1222 = vmatprep.subr.bf16.mxu0 0
      %1223 = vmatpush2.bf16.msra.mxu0 0
      %1224 = vmatprep.subr.bf16.mxu0 0
      %1225 = vmatpush2.bf16.msra.mxu0 0
      %1226 = vmatprep.mubr.bf16.mxu0 0
      %1227 = vmatmul.mubr.bf16.gmra.mxu0 %v1136
      %v1228 = vpop.f32.mrf.mxu0
      %v1229 = vadd.f32 %v1176, %v1228
      %v1230 = vpop.f32.mrf.mxu0
      %v1231 = vadd.f32 %v1178, %v1230
      %v1232 = vpop.f32.mrf.mxu0
      %v1233 = vadd.f32 %v1180, %v1232
      %v1234 = vpop.f32.mrf.mxu0
      %v1235 = vadd.f32 %v1182, %v1234
      %1236 = vmatprep.mubr.bf16.mxu0 0
      %1237 = vmatmul.mubr.bf16.gmra.mxu0 %v1139
      %v1238 = vpop.f32.mrf.mxu0
      %v1239 = vadd.f32 %v1186, %v1238
      %v1240 = vpop.f32.mrf.mxu0
      %v1241 = vadd.f32 %v1188, %v1240
      %v1242 = vpop.f32.mrf.mxu0
      %v1243 = vadd.f32 %v1190, %v1242
      %v1244 = vpop.f32.mrf.mxu0
      %v1245 = vadd.f32 %v1192, %v1244
      %1246 = vdwg.mxu0
      %v1247 = vpack.c.bf16 %v1233, %v1229
      %v1248 = vpack.c.bf16 %v1235, %v1231
      %v1249 = vpack.c.bf16 %v1243, %v1239
      %v1250 = vpack.c.bf16 %v1245, %v1241
      %v1255 = vunpack.c.l.b16 %v1247
      %v1256 = vunpack.c.l.b16 %v1248
      %v1257 = vunpack.c.h.b16 %v1247
      %v1258 = vunpack.c.h.b16 %v1248
      %v1259 = vunpack.c.l.b16 %v1249
      %v1260 = vunpack.c.l.b16 %v1250
      %v1261 = vunpack.c.h.b16 %v1249
      %v1262 = vunpack.c.h.b16 %v1250
      %v1263 = vpack.c.b16 %v1256, %v1255
      %v1264 = vpack.c.b16 %v1258, %v1257
      %v1265 = vpack.c.b16 %v1260, %v1259
      %v1266 = vpack.c.b16 %v1262, %v1261
      %1271 = vst [vmem:[%s239] sm:$0xff] %v1263
      %1272 = vst [vmem:[%s239 + $0x8] sm:$0xff] %v1264
      %1273 = vst [vmem:[%s239 + $0x10] sm:$0xff] %v1265
      %1274 = vst [vmem:[%s239 + $0x18] sm:$0xff] %v1266
      %v1275 = vadd.f32 %v1229, %v1231
      %1276 = vadd.xlane.f32.xlu0 %v1275
      %v1277 = vpop.xlane.xlu0 %1276
      %v1278 = vadd.f32 %v1233, %v1235
      %1279 = vadd.xlane.f32.xlu0 %v1278
      %v1280 = vpop.xlane.xlu0 %1279
      %v1281 = vadd.f32 %v1239, %v1241
      %1282 = vadd.xlane.f32.xlu0 %v1281
      %v1283 = vpop.xlane.xlu0 %1282
      %v1284 = vadd.f32 %v1243, %v1245
      %1285 = vadd.xlane.f32.xlu0 %v1284
      %v1286 = vpop.xlane.xlu0 %1285
      %v1287 = vadd.f32 %v1277, 0.0
      %v1288 = vadd.f32 %v1280, 0.0
      %v1289 = vadd.f32 %v1283, 0.0
      %v1290 = vadd.f32 %v1286, 0.0
      %v1291 = vmul.f32 %v1229, %v1229
      %v1292 = vmul.f32 %v1231, %v1231
      %v1293 = vmul.f32 %v1233, %v1233
      %v1294 = vmul.f32 %v1235, %v1235
      %v1295 = vmul.f32 %v1239, %v1239
      %v1296 = vmul.f32 %v1241, %v1241
      %v1297 = vmul.f32 %v1243, %v1243
      %v1298 = vmul.f32 %v1245, %v1245
      %v1299 = vadd.f32 %v1291, %v1292
      %1300 = vadd.xlane.f32.xlu0 %v1299
      %v1301 = vpop.xlane.xlu0 %1300
      %v1302 = vadd.f32 %v1293, %v1294
      %1303 = vadd.xlane.f32.xlu0 %v1302
      %v1304 = vpop.xlane.xlu0 %1303
      %v1305 = vadd.f32 %v1295, %v1296
      %1306 = vadd.xlane.f32.xlu0 %v1305
      %v1307 = vpop.xlane.xlu0 %1306
      %v1308 = vadd.f32 %v1297, %v1298
      %1309 = vadd.xlane.f32.xlu0 %v1308
      %v1310 = vpop.xlane.xlu0 %1309
      %v1311 = vadd.f32 %v1301, 0.0
      %v1312 = vadd.f32 %v1304, 0.0
      %v1313 = vadd.f32 %v1307, 0.0
      %v1314 = vadd.f32 %v1310, 0.0
      %vm1315 = vcmask 7168
      %1316 = vst.msk [vmem:[%s244] sm:$0xff] %vm1315, %v1287
      %1317 = vst.msk [vmem:[%s244 + $0x8] sm:$0xff] %vm1315, %v1288
      %1318 = vst.msk [vmem:[%s244 + $0x10] sm:$0xff] %vm1315, %v1289
      %1319 = vst.msk [vmem:[%s244 + $0x18] sm:$0xff] %vm1315, %v1290
      %1320 = vst.msk [vmem:[%s249] sm:$0xff] %vm1315, %v1311
      %1321 = vst.msk [vmem:[%s249 + $0x8] sm:$0xff] %vm1315, %v1312
      %1322 = vst.msk [vmem:[%s249 + $0x10] sm:$0xff] %vm1315, %v1313
      %1323 = vst.msk [vmem:[%s249 + $0x18] sm:$0xff] %vm1315, %v1314
      %p1324 = scmp.lt.s32.totalorder %s17, 1
      %s1325 = scalar_select %p1324, %s17, 1
      %s1326 = smul.addr %s1325, 8
      %s1327 = smul.addr %s1326, 4
      %s1328 = scalar_lea.vmem %s3, %s1327
      %p1329 = scmp.lt.s32.totalorder %s17, 1
      %s1330 = scalar_select %p1329, %s17, 1
      %s1331 = smul.addr %s1330, 4
      %s1332 = smul.addr %s1331, 8
      %s1333 = scalar_lea.vmem %s4, %s1332
      %p1334 = scmp.lt.s32.totalorder %s17, 1
      %s1335 = scalar_select %p1334, %s17, 1
      %s1336 = smul.addr %s1335, 4
      %s1337 = smul.addr %s1336, 8
      %s1338 = scalar_lea.vmem %s5, %s1337
      // Predicated region
      $region33: #{basic_block_forward.3} parent=31 // pred_check
        %p1339 = pneg %p103
      $region34: #{basic_block_forward.3} parent=31 // pred_check_branch
        %1341 = sbr.rel (%p1339) target = $region36
      $region35: #{basic_block_forward.3} parent=31 // pred_region
        _
      $region36: #{basic_block_forward.3} parent=31 // pred_fallthru
        _
      // Predicated region
      $region37: #{basic_block_forward.3} parent=31 // pred_check
        %p1342 = pneg %p129
      $region38: #{basic_block_forward.3} parent=31 // pred_check_branch
        %1344 = sbr.rel (%p1342) target = $region40
      $region39: #{basic_block_forward.3} parent=31 // pred_region
        _
      $region40: #{basic_block_forward.3} parent=31 // pred_fallthru
        _
      // Predicated region
      $region41: #{basic_block_forward.3} parent=31 // pred_check
        %p1345 = pneg %p155
      $region42: #{basic_block_forward.3} parent=31 // pred_check_branch
        %1347 = sbr.rel (%p1345) target = $region44
      $region43: #{basic_block_forward.3} parent=31 // pred_region
        _
      $region44: #{basic_block_forward.3} parent=31 // pred_fallthru
        _
    $region32: #{basic_block_forward.3} parent=5 // pred_fallthru
      _
    %p1348 = scmp.le.s32.totalorder 2, %s12
    // Predicated region
    $region45: #{basic_block_forward.3} parent=5 // pred_check
      %p1349 = pneg %p1348
    $region46: #{basic_block_forward.3} parent=5 // pred_check_branch
      %1351 = sbr.rel (%p1349) target = $region48
    $region47: #{basic_block_forward.3} parent=5 // pred_region
      %s1352 = ssub.s32 %s12, 2
      // Predicated region
      $region49: #{basic_block_forward.3} parent=47 // pred_check
        %p1353 = pneg %p109
      $region50: #{basic_block_forward.3} parent=47 // pred_check_branch
        %1355 = sbr.rel (%p1353) target = $region52
      $region51: #{basic_block_forward.3} parent=47 // pred_region
        %p1356 = scmp.lt.s32.totalorder %s18, 1
        %s1357 = scalar_select %p1356, %s18, 1
        %s1358 = smul.addr %s1357, 8
        %s1359 = smul.addr %s1358, 4
        %s1360 = scalar_lea.vmem %s3, %s1359
      $region52: #{basic_block_forward.3} parent=47 // pred_fallthru
        _
      // Predicated region
      $region53: #{basic_block_forward.3} parent=47 // pred_check
        %p1361 = pneg %p135
      $region54: #{basic_block_forward.3} parent=47 // pred_check_branch
        %1363 = sbr.rel (%p1361) target = $region56
      $region55: #{basic_block_forward.3} parent=47 // pred_region
        %p1364 = scmp.lt.s32.totalorder %s18, 1
        %s1365 = scalar_select %p1364, %s18, 1
        %s1366 = smul.addr %s1365, 4
        %s1367 = smul.addr %s1366, 8
        %s1368 = scalar_lea.vmem %s4, %s1367
      $region56: #{basic_block_forward.3} parent=47 // pred_fallthru
        _
      // Predicated region
      $region57: #{basic_block_forward.3} parent=47 // pred_check
        %p1369 = pneg %p161
      $region58: #{basic_block_forward.3} parent=47 // pred_check_branch
        %1371 = sbr.rel (%p1369) target = $region60
      $region59: #{basic_block_forward.3} parent=47 // pred_region
        %p1372 = scmp.lt.s32.totalorder %s18, 1
        %s1373 = scalar_select %p1372, %s18, 1
        %s1374 = smul.addr %s1373, 4
        %s1375 = smul.addr %s1374, 8
        %s1376 = scalar_lea.vmem %s5, %s1375
      $region60: #{basic_block_forward.3} parent=47 // pred_fallthru
        _
    $region48: #{basic_block_forward.3} parent=5 // pred_fallthru
      _
  $region6: #{basic_block_forward.3} parent=0 // loop_footer
    %s16 = sadd.s32 1, %s12
  $region7: #{basic_block_forward.3} parent=0 // loop_footer_branch
    %11 = sbr.rel target = $region3
  $region8: #{basic_block_forward.3} parent=0 // loop_exit
    _

// kernel: basic_block_forward.4
$region0: #{basic_block_forward.4}
  #allocation0 [shape = 'u32[]', space=smem, size = 0x4, offset = 0x4, fixed_abs, tag = 'smem constant byte address 0x4 - core index']
  #allocation1 [shape = 'u32[144,128]{1,0:T(1,128)}', space=vmem, size = 0x12000, scoped, tag = 'internal scratch']
  #allocation2 [shape = 'bf16[288,256]{1,0:T(8,128)(2,1)}', space=vmem, size = 0x24000, scoped, tag = 'scratch operand']
  %s0 = inlined_call_operand.vmem [shape: bf16[2,32,256], index: 0, kind: input, shape index: {}]
  %s1 = inlined_call_operand.vmem [shape: f32[32,1], index: 1, kind: input, shape index: {}]
  %s2 = inlined_call_operand.vmem [shape: f32[32,1], index: 2, kind: input, shape index: {}]
  %s3 = inlined_call_operand.vmem [shape: bf16[32,288], index: 3, kind: input, shape index: {}]
  %s4 = inlined_call_operand.vmem [shape: f32[9,256], index: 4, kind: input, shape index: {}]
  %s5 = inlined_call_operand.vmem [shape: bf16[2,32,256], index: 5, kind: output, shape index: {0}]
  %s6 = inlined_call_operand.vmem [shape: f32[2,32,1], index: 6, kind: output, shape index: {1}]
  %s7 = inlined_call_operand.vmem [shape: f32[2,32,1], index: 7, kind: output, shape index: {2}]
  %8 = xla_tuple %s5, %s6, %s7
  %s9 = sld [smem:[#allocation0]]
  $region69: #{basic_block_forward.4} parent=0
    _
  %s11 = ssub.s32 1, %s9
  %s12 = scalar_select 0, %s11, %s9
  loop: start=0, step=1, limit=4
  $region2: #{basic_block_forward.4} parent=0 // loop_pre_header
    _
  $region3: #{basic_block_forward.4} parent=0 // loop_header
    %s14 = sphi 0, %s18
    %p15 = scmp.ge.s32.totalorder %s14, 4
    %s24 = sphi 0, %s26
    %s27 = sphi 0, %s24
    %s28 = sphi 0, %s27
    %s44 = sphi 0, %s28
    %s48 = sphi 0, %s48
    %s50 = sphi 0, %s48
    %s51 = sphi 0, %s50
    %s65 = sphi 0, %s51
    %s69 = sphi 0, %s69
    %s71 = sphi 0, %s69
    %s72 = sphi 0, %s71
    %s86 = sphi 0, %s72
    %s90 = sphi 0, %s90
    %s92 = sphi 0, %s90
    %s93 = sphi 0, %s92
    %s107 = sphi 0, %s93
    %s111 = sphi 0, %s111
    %s113 = sphi 0, %s111
    %s114 = sphi 0, %s113
    %s128 = sphi 0, %s114
    %s134 = sphi 0, %s136
    %s137 = sphi 0, %s134
    %s138 = sphi 0, %s137
    %s154 = sphi 0, %s138
    %s160 = sphi 0, %s162
    %s163 = sphi 0, %s160
    %s164 = sphi 0, %s163
    %s180 = sphi 0, %s164
    %s186 = sphi 0, %s188
    %s189 = sphi 0, %s186
    %s190 = sphi 0, %s189
    %s206 = sphi 0, %s190
  $region4: #{basic_block_forward.4} parent=0 // loop_header_branch
    %17 = sbr.rel (%p15) target = $region8
  $region5: #{basic_block_forward.4} parent=0 // loop_body
    %s19 = ssub.s32 %s14, 1
    %s20 = ssub.s32 %s14, 2
    %s21 = sadd.s32 %s14, 1
    %s22 = ssub.s32 %s14, %s21
    %p23 = scmp.eq.s32.totalorder %s22, 0
    %s25 = sadd.s32 %s24, 1
    %s26 = scalar_select %p23, %s24, %s25
    %p29 = pneg %p23
    %p30 = scmp.eq.s32.totalorder %s14, 1
    %p31 = por %p29, %p30
    %p32 = scmp.ne.s32.totalorder %s24, %s27
    %p33 = scmp.eq.s32.totalorder %s14, 0
    %p34 = por %p32, %p33
    %p35 = scmp.ne.s32.totalorder %s24, %s27
    %p36 = scmp.eq.s32.totalorder %s19, 1
    %p37 = por %p35, %p36
    %p38 = scmp.ne.s32.totalorder %s27, %s28
    %p39 = scmp.eq.s32.totalorder %s19, 0
    %p40 = por %p38, %p39
    %p41 = scmp.ne.s32.totalorder %s27, %s28
    %p42 = scmp.eq.s32.totalorder %s20, 1
    %p43 = por %p41, %p42
    %p45 = scmp.ne.s32.totalorder %s28, %s44
    %p46 = scmp.eq.s32.totalorder %s20, 0
    %p47 = por %p45, %p46
    %s49 = sadd.s32 %s48, 1
    %p52 = scmp.eq.s32.totalorder %s14, 1
    %p53 = scmp.ne.s32.totalorder %s48, %s50
    %p54 = scmp.eq.s32.totalorder %s14, 0
    %p55 = por %p53, %p54
    %p56 = scmp.ne.s32.totalorder %s48, %s50
    %p57 = scmp.eq.s32.totalorder %s19, 1
    %p58 = por %p56, %p57
    %p59 = scmp.ne.s32.totalorder %s50, %s51
    %p60 = scmp.eq.s32.totalorder %s19, 0
    %p61 = por %p59, %p60
    %p62 = scmp.ne.s32.totalorder %s50, %s51
    %p63 = scmp.eq.s32.totalorder %s20, 1
    %p64 = por %p62, %p63
    %p66 = scmp.ne.s32.totalorder %s51, %s65
    %p67 = scmp.eq.s32.totalorder %s20, 0
    %p68 = por %p66, %p67
    %s70 = sadd.s32 %s69, 1
    %p73 = scmp.eq.s32.totalorder %s14, 1
    %p74 = scmp.ne.s32.totalorder %s69, %s71
    %p75 = scmp.eq.s32.totalorder %s14, 0
    %p76 = por %p74, %p75
    %p77 = scmp.ne.s32.totalorder %s69, %s71
    %p78 = scmp.eq.s32.totalorder %s19, 1
    %p79 = por %p77, %p78
    %p80 = scmp.ne.s32.totalorder %s71, %s72
    %p81 = scmp.eq.s32.totalorder %s19, 0
    %p82 = por %p80, %p81
    %p83 = scmp.ne.s32.totalorder %s71, %s72
    %p84 = scmp.eq.s32.totalorder %s20, 1
    %p85 = por %p83, %p84
    %p87 = scmp.ne.s32.totalorder %s72, %s86
    %p88 = scmp.eq.s32.totalorder %s20, 0
    %p89 = por %p87, %p88
    %s91 = sadd.s32 %s90, 1
    %p94 = scmp.eq.s32.totalorder %s14, 1
    %p95 = scmp.ne.s32.totalorder %s90, %s92
    %p96 = scmp.eq.s32.totalorder %s14, 0
    %p97 = por %p95, %p96
    %p98 = scmp.ne.s32.totalorder %s90, %s92
    %p99 = scmp.eq.s32.totalorder %s19, 1
    %p100 = por %p98, %p99
    %p101 = scmp.ne.s32.totalorder %s92, %s93
    %p102 = scmp.eq.s32.totalorder %s19, 0
    %p103 = por %p101, %p102
    %p104 = scmp.ne.s32.totalorder %s92, %s93
    %p105 = scmp.eq.s32.totalorder %s20, 1
    %p106 = por %p104, %p105
    %p108 = scmp.ne.s32.totalorder %s93, %s107
    %p109 = scmp.eq.s32.totalorder %s20, 0
    %p110 = por %p108, %p109
    %s112 = sadd.s32 %s111, 1
    %p115 = scmp.eq.s32.totalorder %s14, 1
    %p116 = scmp.ne.s32.totalorder %s111, %s113
    %p117 = scmp.eq.s32.totalorder %s14, 0
    %p118 = por %p116, %p117
    %p119 = scmp.ne.s32.totalorder %s111, %s113
    %p120 = scmp.eq.s32.totalorder %s19, 1
    %p121 = por %p119, %p120
    %p122 = scmp.ne.s32.totalorder %s113, %s114
    %p123 = scmp.eq.s32.totalorder %s19, 0
    %p124 = por %p122, %p123
    %p125 = scmp.ne.s32.totalorder %s113, %s114
    %p126 = scmp.eq.s32.totalorder %s20, 1
    %p127 = por %p125, %p126
    %p129 = scmp.ne.s32.totalorder %s114, %s128
    %p130 = scmp.eq.s32.totalorder %s20, 0
    %p131 = por %p129, %p130
    %s132 = ssub.s32 %s14, %s21
    %p133 = scmp.eq.s32.totalorder %s132, 0
    %s135 = sadd.s32 %s134, 1
    %s136 = scalar_select %p133, %s134, %s135
    %p139 = pneg %p133
    %p140 = scmp.eq.s32.totalorder %s14, 1
    %p141 = por %p139, %p140
    %p142 = scmp.ne.s32.totalorder %s134, %s137
    %p143 = scmp.eq.s32.totalorder %s14, 0
    %p144 = por %p142, %p143
    %p145 = scmp.ne.s32.totalorder %s134, %s137
    %p146 = scmp.eq.s32.totalorder %s19, 1
    %p147 = por %p145, %p146
    %p148 = scmp.ne.s32.totalorder %s137, %s138
    %p149 = scmp.eq.s32.totalorder %s19, 0
    %p150 = por %p148, %p149
    %p151 = scmp.ne.s32.totalorder %s137, %s138
    %p152 = scmp.eq.s32.totalorder %s20, 1
    %p153 = por %p151, %p152
    %p155 = scmp.ne.s32.totalorder %s138, %s154
    %p156 = scmp.eq.s32.totalorder %s20, 0
    %p157 = por %p155, %p156
    %s158 = ssub.s32 %s14, %s21
    %p159 = scmp.eq.s32.totalorder %s158, 0
    %s161 = sadd.s32 %s160, 1
    %s162 = scalar_select %p159, %s160, %s161
    %p165 = pneg %p159
    %p166 = scmp.eq.s32.totalorder %s14, 1
    %p167 = por %p165, %p166
    %p168 = scmp.ne.s32.totalorder %s160, %s163
    %p169 = scmp.eq.s32.totalorder %s14, 0
    %p170 = por %p168, %p169
    %p171 = scmp.ne.s32.totalorder %s160, %s163
    %p172 = scmp.eq.s32.totalorder %s19, 1
    %p173 = por %p171, %p172
    %p174 = scmp.ne.s32.totalorder %s163, %s164
    %p175 = scmp.eq.s32.totalorder %s19, 0
    %p176 = por %p174, %p175
    %p177 = scmp.ne.s32.totalorder %s163, %s164
    %p178 = scmp.eq.s32.totalorder %s20, 1
    %p179 = por %p177, %p178
    %p181 = scmp.ne.s32.totalorder %s164, %s180
    %p182 = scmp.eq.s32.totalorder %s20, 0
    %p183 = por %p181, %p182
    %s184 = ssub.s32 %s14, %s21
    %p185 = scmp.eq.s32.totalorder %s184, 0
    %s187 = sadd.s32 %s186, 1
    %s188 = scalar_select %p185, %s186, %s187
    %p191 = pneg %p185
    %p192 = scmp.eq.s32.totalorder %s14, 1
    %p193 = por %p191, %p192
    %p194 = scmp.ne.s32.totalorder %s186, %s189
    %p195 = scmp.eq.s32.totalorder %s14, 0
    %p196 = por %p194, %p195
    %p197 = scmp.ne.s32.totalorder %s186, %s189
    %p198 = scmp.eq.s32.totalorder %s19, 1
    %p199 = por %p197, %p198
    %p200 = scmp.ne.s32.totalorder %s189, %s190
    %p201 = scmp.eq.s32.totalorder %s19, 0
    %p202 = por %p200, %p201
    %p203 = scmp.ne.s32.totalorder %s189, %s190
    %p204 = scmp.eq.s32.totalorder %s20, 1
    %p205 = por %p203, %p204
    %p207 = scmp.ne.s32.totalorder %s190, %s206
    %p208 = scmp.eq.s32.totalorder %s20, 0
    %p209 = por %p207, %p208
    %p210 = scmp.le.s32.totalorder 1, %s14
    %p211 = scmp.lt.s32.totalorder %s14, 3
    %p212 = pnand %p210, %p211
    %p213 = pneg %p212
    // Predicated region
    $region9: #{basic_block_forward.4} parent=5 // pred_check
      _
    $region10: #{basic_block_forward.4} parent=5 // pred_check_branch
      %215 = sbr.rel (%p212) target = $region12
    $region11: #{basic_block_forward.4} parent=5 // pred_region
      %s216 = ssub.s32 %s14, 1
      // Predicated region
      $region13: #{basic_block_forward.4} parent=11 // pred_check
        %p217 = pneg %p61
      $region14: #{basic_block_forward.4} parent=11 // pred_check_branch
        %219 = sbr.rel (%p217) target = $region16
      $region15: #{basic_block_forward.4} parent=11 // pred_region
        _
      $region16: #{basic_block_forward.4} parent=11 // pred_fallthru
        _
      // Predicated region
      $region17: #{basic_block_forward.4} parent=11 // pred_check
        %p220 = pneg %p82
      $region18: #{basic_block_forward.4} parent=11 // pred_check_branch
        %222 = sbr.rel (%p220) target = $region20
      $region19: #{basic_block_forward.4} parent=11 // pred_region
        _
      $region20: #{basic_block_forward.4} parent=11 // pred_fallthru
        _
      // Predicated region
      $region21: #{basic_block_forward.4} parent=11 // pred_check
        %p223 = pneg %p103
      $region22: #{basic_block_forward.4} parent=11 // pred_check_branch
        %225 = sbr.rel (%p223) target = $region24
      $region23: #{basic_block_forward.4} parent=11 // pred_region
        _
      $region24: #{basic_block_forward.4} parent=11 // pred_fallthru
        _
      // Predicated region
      $region25: #{basic_block_forward.4} parent=11 // pred_check
        %p226 = pneg %p124
      $region26: #{basic_block_forward.4} parent=11 // pred_check_branch
        %228 = sbr.rel (%p226) target = $region28
      $region27: #{basic_block_forward.4} parent=11 // pred_region
        _
      $region28: #{basic_block_forward.4} parent=11 // pred_fallthru
        _
    $region12: #{basic_block_forward.4} parent=5 // pred_fallthru
      _
    %p229 = scmp.lt.s32.totalorder %s14, 2
    // Predicated region
    $region29: #{basic_block_forward.4} parent=5 // pred_check
      %p230 = pneg %p229
    $region30: #{basic_block_forward.4} parent=5 // pred_check_branch
      %232 = sbr.rel (%p230) target = $region32
    $region31: #{basic_block_forward.4} parent=5 // pred_region
      // Predicated region
      $region33: #{basic_block_forward.4} parent=31 // pred_check
        %p233 = pneg %p34
      $region34: #{basic_block_forward.4} parent=31 // pred_check_branch
        %235 = sbr.rel (%p233) target = $region36
      $region35: #{basic_block_forward.4} parent=31 // pred_region
        %p236 = scmp.lt.s32.totalorder %s14, 1
        %s237 = scalar_select %p236, %s14, 1
        %s238 = smul.addr %s237, 8
        %s239 = smul.addr %s238, 4
        %s240 = scalar_lea.vmem %s0, %s239
      $region36: #{basic_block_forward.4} parent=31 // pred_fallthru
        _
    $region32: #{basic_block_forward.4} parent=5 // pred_fallthru
      _
    %p241 = scmp.le.s32.totalorder 1, %s14
    %p242 = scmp.lt.s32.totalorder %s14, 3
    %p243 = pnand %p241, %p242
    %p244 = pneg %p243
    // Predicated region
    $region37: #{basic_block_forward.4} parent=5 // pred_check
      _
    $region38: #{basic_block_forward.4} parent=5 // pred_check_branch
      %246 = sbr.rel (%p243) target = $region40
    $region39: #{basic_block_forward.4} parent=5 // pred_region
      %s247 = ssub.s32 %s14, 1
      %p248 = scmp.lt.s32.totalorder %s19, 1
      %s249 = scalar_select %p248, %s19, 1
      %s250 = smul.addr %s249, 8
      %s251 = smul.addr %s250, 4
      %s252 = scalar_lea.vmem %s0, %s251
      %p253 = pneg %p40
      %p254 = pneg %p37
      %p255 = pneg %p61
      %p256 = pneg %p58
      %p257 = pneg %p82
      %p258 = pneg %p79
      %p259 = pneg %p103
      %p260 = pneg %p100
      %p261 = pneg %p124
      %p262 = pneg %p121
      %p263 = pneg %p150
      %p264 = pneg %p147
      %p265 = scmp.lt.s32.totalorder %s19, 1
      %s266 = scalar_select %p265, %s19, 1
      %s267 = smul.addr %s266, 8
      %s268 = smul.addr %s267, 4
      %s269 = scalar_lea.vmem %s5, %s268
      %p270 = pneg %p176
      %p271 = pneg %p173
      %p272 = scmp.lt.s32.totalorder %s19, 1
      %s273 = scalar_select %p272, %s19, 1
      %s274 = smul.addr %s273, 4
      %s275 = smul.addr %s274, 8
      %s276 = scalar_lea.vmem %s6, %s275
      %p277 = pneg %p202
      %p278 = pneg %p199
      %p279 = scmp.lt.s32.totalorder %s19, 1
      %s280 = scalar_select %p279, %s19, 1
      %s281 = smul.addr %s280, 4
      %s282 = smul.addr %s281, 8
      %s283 = scalar_lea.vmem %s7, %s282
      %p284 = scmp.lt.s32.totalorder %s19, 1
      %s285 = scalar_select %p284, %s19, 1
      %s286 = smul.addr %s285, 8
      %s287 = smul.addr %s286, 4
      %s288 = scalar_lea.vmem %s0, %s287
      %p289 = scmp.lt.s32.totalorder %s19, 1
      %s290 = scalar_select %p289, %s19, 1
      %s291 = smul.addr %s290, 8
      %s292 = smul.addr %s291, 4
      %s293 = scalar_lea.vmem %s5, %s292
      %p294 = scmp.lt.s32.totalorder %s19, 1
      %s295 = scalar_select %p294, %s19, 1
      %s296 = smul.addr %s295, 4
      %s297 = smul.addr %s296, 8
      %s298 = scalar_lea.vmem %s6, %s297
      %p299 = scmp.lt.s32.totalorder %s19, 1
      %s300 = scalar_select %p299, %s19, 1
      %s301 = smul.addr %s300, 4
      %s302 = smul.addr %s301, 8
      %s303 = scalar_lea.vmem %s7, %s302
      %v305 = vld [vmem:[%s1] sm:$0xff]
      %v306 = vld [vmem:[%s1 + $0x8] sm:$0xff]
      %v307 = vld [vmem:[%s1 + $0x10] sm:$0xff]
      %v308 = vld [vmem:[%s1 + $0x18] sm:$0xff]
      %v309 = vld [vmem:[%s2] sm:$0xff]
      %v310 = vld [vmem:[%s2 + $0x8] sm:$0xff]
      %v311 = vld [vmem:[%s2 + $0x10] sm:$0xff]
      %v312 = vld [vmem:[%s2 + $0x18] sm:$0xff]
      %v313 = vld [vmem:[%s288] sm:$0xff]
      %v314 = vld [vmem:[%s288 + $0x8] sm:$0xff]
      %v315 = vld [vmem:[%s288 + $0x10] sm:$0xff]
      %v316 = vld [vmem:[%s288 + $0x18] sm:$0xff]
      %v317 = vunpack.c.l.bf16 %v313
      %v318 = vunpack.c.h.bf16 %v313
      %v319 = vunpack.c.l.bf16 %v314
      %v320 = vunpack.c.h.bf16 %v314
      %v321 = vunpack.c.l.bf16 %v315
      %v322 = vunpack.c.h.bf16 %v315
      %v323 = vunpack.c.l.bf16 %v316
      %v324 = vunpack.c.h.bf16 %v316
      %326 = vset.pattern.permute.xlu0 0
      %327 = vperm.xlu0 %326, %v305
      %v328 = vpop.permute.xlu0 %327
      %331 = vset.pattern.permute.xlu0 0
      %332 = vperm.xlu0 %331, %v306
      %v333 = vpop.permute.xlu0 %332
      %336 = vset.pattern.permute.xlu0 0
      %337 = vperm.xlu0 %336, %v307
      %v338 = vpop.permute.xlu0 %337
      %341 = vset.pattern.permute.xlu0 0
      %342 = vperm.xlu0 %341, %v308
      %v343 = vpop.permute.xlu0 %342
      %v345 = vmul.f32 %v317, %v328
      %v346 = vmul.f32 %v318, %v328
      %v347 = vmul.f32 %v319, %v333
      %v348 = vmul.f32 %v320, %v333
      %v349 = vmul.f32 %v321, %v338
      %v350 = vmul.f32 %v322, %v338
      %v351 = vmul.f32 %v323, %v343
      %v352 = vmul.f32 %v324, %v343
      %354 = vset.pattern.permute.xlu0 0
      %355 = vperm.xlu0 %354, %v309
      %v356 = vpop.permute.xlu0 %355
      %359 = vset.pattern.permute.xlu0 0
      %360 = vperm.xlu0 %359, %v310
      %v361 = vpop.permute.xlu0 %360
      %364 = vset.pattern.permute.xlu0 0
      %365 = vperm.xlu0 %364, %v311
      %v366 = vpop.permute.xlu0 %365
      %369 = vset.pattern.permute.xlu0 0
      %370 = vperm.xlu0 %369, %v312
      %v371 = vpop.permute.xlu0 %370
      %v373 = vadd.f32 %v345, %v356
      %v374 = vadd.f32 %v346, %v356
      %v375 = vadd.f32 %v347, %v361
      %v376 = vadd.f32 %v348, %v361
      %v377 = vadd.f32 %v349, %v366
      %v378 = vadd.f32 %v350, %v366
      %v379 = vadd.f32 %v351, %v371
      %v380 = vadd.f32 %v352, %v371
      %v381 = vtanh.pop %v373
      %v382 = vtanh.pop %v374
      %v383 = vtanh.pop %v375
      %v384 = vtanh.pop %v376
      %v385 = vtanh.pop %v377
      %v386 = vtanh.pop %v378
      %v387 = vtanh.pop %v379
      %v388 = vtanh.pop %v380
      %389 = vrot.lane.b32.xlu0 %v381, 17
      %v390 = vpop.permute.xlu0 %389
      %391 = vrot.lane.b32.xlu0 %v383, 17
      %v392 = vpop.permute.xlu0 %391
      %393 = vrot.lane.b32.xlu0 %v385, 17
      %v394 = vpop.permute.xlu0 %393
      %395 = vrot.lane.b32.xlu0 %v387, 17
      %v396 = vpop.permute.xlu0 %395
      %397 = vrot.lane.b32.xlu0 %v382, 17
      %v398 = vpop.permute.xlu0 %397
      %399 = vrot.lane.b32.xlu0 %v384, 17
      %v400 = vpop.permute.xlu0 %399
      %401 = vrot.lane.b32.xlu0 %v386, 17
      %v402 = vpop.permute.xlu0 %401
      %403 = vrot.lane.b32.xlu0 %v388, 17
      %v404 = vpop.permute.xlu0 %403
      %v405 = vlaneseq
      %v406 = vand.u32 %v405, 127
      %vm407 = vcmp.lt.s32.totalorder %v406, 17
      %v408 = vsel %vm407, %v390, %v398
      %v409 = vsel %vm407, %v392, %v400
      %v410 = vsel %vm407, %v394, %v402
      %v411 = vsel %vm407, %v396, %v404
      %v412 = vsel %vm407, %v398, %v390
      %v413 = vsel %vm407, %v400, %v392
      %v414 = vsel %vm407, %v402, %v394
      %v415 = vsel %vm407, %v404, %v396
      %v416 = vld [vmem:[%s4] ss:$8 sm:$0x3]
      %v418 = vlaneseq
      %v419 = vshrl.u32 %v418, 7
      %v420 = vsub.s32 0, %v419
      %v421 = vrot.slane %v416, %v420
      %v422 = vlaneseq
      %v423 = vshrl.u32 %v422, 7
      %v424 = vsub.s32 1, %v423
      %v425 = vrot.slane %v416, %v424
      %v428 = vmul.f32 %v412, %v421
      %v429 = vmul.f32 %v408, %v425
      %v430 = vmul.f32 %v413, %v421
      %v431 = vmul.f32 %v409, %v425
      %v432 = vmul.f32 %v414, %v421
      %v433 = vmul.f32 %v410, %v425
      %v434 = vmul.f32 %v415, %v421
      %v435 = vmul.f32 %v411, %v425
      %v436 = vpack.c.bf16 %v430, %v428
      %v437 = vpack.c.bf16 %v431, %v429
      %v438 = vpack.c.bf16 %v434, %v432
      %v439 = vpack.c.bf16 %v435, %v433
      %v444 = vunpack.c.l.b16 %v436
      %v445 = vunpack.c.l.b16 %v437
      %v446 = vunpack.c.h.b16 %v436
      %v447 = vunpack.c.h.b16 %v437
      %v448 = vunpack.c.l.b16 %v438
      %v449 = vunpack.c.l.b16 %v439
      %v450 = vunpack.c.h.b16 %v438
      %v451 = vunpack.c.h.b16 %v439
      %v452 = vpack.c.b16 %v445, %v444
      %v453 = vpack.c.b16 %v447, %v446
      %v454 = vpack.c.b16 %v449, %v448
      %v455 = vpack.c.b16 %v451, %v450
      %460 = vst [vmem:[#allocation2] sm:$0xff] %v452
      %461 = vst [vmem:[#allocation2 + $0x8] sm:$0xff] %v453
      %462 = vst [vmem:[#allocation2 + $0x10] sm:$0xff] %v454
      %463 = vst [vmem:[#allocation2 + $0x18] sm:$0xff] %v455
      %464 = vrot.lane.b32.xlu0 %v381, 16
      %v465 = vpop.permute.xlu0 %464
      %466 = vrot.lane.b32.xlu0 %v383, 16
      %v467 = vpop.permute.xlu0 %466
      %468 = vrot.lane.b32.xlu0 %v385, 16
      %v469 = vpop.permute.xlu0 %468
      %470 = vrot.lane.b32.xlu0 %v387, 16
      %v471 = vpop.permute.xlu0 %470
      %472 = vrot.lane.b32.xlu0 %v382, 16
      %v473 = vpop.permute.xlu0 %472
      %474 = vrot.lane.b32.xlu0 %v384, 16
      %v475 = vpop.permute.xlu0 %474
      %476 = vrot.lane.b32.xlu0 %v386, 16
      %v477 = vpop.permute.xlu0 %476
      %478 = vrot.lane.b32.xlu0 %v388, 16
      %v479 = vpop.permute.xlu0 %478
      %vm480 = vcmp.lt.s32.totalorder %v406, 16
      %v481 = vsel %vm480, %v465, %v473
      %v482 = vsel %vm480, %v467, %v475
      %v483 = vsel %vm480, %v469, %v477
      %v484 = vsel %vm480, %v471, %v479
      %v485 = vsel %vm480, %v473, %v465
      %v486 = vsel %vm480, %v475, %v467
      %v487 = vsel %vm480, %v477, %v469
      %v488 = vsel %vm480, %v479, %v471
      %s489 = scalar_lea.vmem %s4, 1
      %v490 = vld [vmem:[%s489] ss:$8 sm:$0x3]
      %v492 = vlaneseq
      %v493 = vshrl.u32 %v492, 7
      %v494 = vsub.s32 0, %v493
      %v495 = vrot.slane %v490, %v494
      %v496 = vlaneseq
      %v497 = vshrl.u32 %v496, 7
      %v498 = vsub.s32 1, %v497
      %v499 = vrot.slane %v490, %v498
      %v502 = vmul.f32 %v485, %v495
      %v503 = vmul.f32 %v481, %v499
      %v504 = vmul.f32 %v486, %v495
      %v505 = vmul.f32 %v482, %v499
      %v506 = vmul.f32 %v487, %v495
      %v507 = vmul.f32 %v483, %v499
      %v508 = vmul.f32 %v488, %v495
      %v509 = vmul.f32 %v484, %v499
      %v510 = vpack.c.bf16 %v504, %v502
      %v511 = vpack.c.bf16 %v505, %v503
      %v512 = vpack.c.bf16 %v508, %v506
      %v513 = vpack.c.bf16 %v509, %v507
      %v518 = vunpack.c.l.b16 %v510
      %v519 = vunpack.c.l.b16 %v511
      %v520 = vunpack.c.h.b16 %v510
      %v521 = vunpack.c.h.b16 %v511
      %v522 = vunpack.c.l.b16 %v512
      %v523 = vunpack.c.l.b16 %v513
      %v524 = vunpack.c.h.b16 %v512
      %v525 = vunpack.c.h.b16 %v513
      %v526 = vpack.c.b16 %v519, %v518
      %v527 = vpack.c.b16 %v521, %v520
      %v528 = vpack.c.b16 %v523, %v522
      %v529 = vpack.c.b16 %v525, %v524
      %534 = vst [vmem:[#allocation2 + $0x20] sm:$0xff] %v526
      %535 = vst [vmem:[#allocation2 + $0x28] sm:$0xff] %v527
      %536 = vst [vmem:[#allocation2 + $0x30] sm:$0xff] %v528
      %537 = vst [vmem:[#allocation2 + $0x38] sm:$0xff] %v529
      %538 = vrot.lane.b32.xlu0 %v381, 15
      %v539 = vpop.permute.xlu0 %538
      %540 = vrot.lane.b32.xlu0 %v383, 15
      %v541 = vpop.permute.xlu0 %540
      %542 = vrot.lane.b32.xlu0 %v385, 15
      %v543 = vpop.permute.xlu0 %542
      %544 = vrot.lane.b32.xlu0 %v387, 15
      %v545 = vpop.permute.xlu0 %544
      %546 = vrot.lane.b32.xlu0 %v382, 15
      %v547 = vpop.permute.xlu0 %546
      %548 = vrot.lane.b32.xlu0 %v384, 15
      %v549 = vpop.permute.xlu0 %548
      %550 = vrot.lane.b32.xlu0 %v386, 15
      %v551 = vpop.permute.xlu0 %550
      %552 = vrot.lane.b32.xlu0 %v388, 15
      %v553 = vpop.permute.xlu0 %552
      %vm554 = vcmp.lt.s32.totalorder %v406, 15
      %v555 = vsel %vm554, %v539, %v547
      %v556 = vsel %vm554, %v541, %v549
      %v557 = vsel %vm554, %v543, %v551
      %v558 = vsel %vm554, %v545, %v553
      %v559 = vsel %vm554, %v547, %v539
      %v560 = vsel %vm554, %v549, %v541
      %v561 = vsel %vm554, %v551, %v543
      %v562 = vsel %vm554, %v553, %v545
      %s563 = scalar_lea.vmem %s4, 2
      %v564 = vld [vmem:[%s563] ss:$8 sm:$0x3]
      %v566 = vlaneseq
      %v567 = vshrl.u32 %v566, 7
      %v568 = vsub.s32 0, %v567
      %v569 = vrot.slane %v564, %v568
      %v570 = vlaneseq
      %v571 = vshrl.u32 %v570, 7
      %v572 = vsub.s32 1, %v571
      %v573 = vrot.slane %v564, %v572
      %v576 = vmul.f32 %v559, %v569
      %v577 = vmul.f32 %v555, %v573
      %v578 = vmul.f32 %v560, %v569
      %v579 = vmul.f32 %v556, %v573
      %v580 = vmul.f32 %v561, %v569
      %v581 = vmul.f32 %v557, %v573
      %v582 = vmul.f32 %v562, %v569
      %v583 = vmul.f32 %v558, %v573
      %v584 = vpack.c.bf16 %v578, %v576
      %v585 = vpack.c.bf16 %v579, %v577
      %v586 = vpack.c.bf16 %v582, %v580
      %v587 = vpack.c.bf16 %v583, %v581
      %v592 = vunpack.c.l.b16 %v584
      %v593 = vunpack.c.l.b16 %v585
      %v594 = vunpack.c.h.b16 %v584
      %v595 = vunpack.c.h.b16 %v585
      %v596 = vunpack.c.l.b16 %v586
      %v597 = vunpack.c.l.b16 %v587
      %v598 = vunpack.c.h.b16 %v586
      %v599 = vunpack.c.h.b16 %v587
      %v600 = vpack.c.b16 %v593, %v592
      %v601 = vpack.c.b16 %v595, %v594
      %v602 = vpack.c.b16 %v597, %v596
      %v603 = vpack.c.b16 %v599, %v598
      %608 = vst [vmem:[#allocation2 + $0x40] sm:$0xff] %v600
      %609 = vst [vmem:[#allocation2 + $0x48] sm:$0xff] %v601
      %610 = vst [vmem:[#allocation2 + $0x50] sm:$0xff] %v602
      %611 = vst [vmem:[#allocation2 + $0x58] sm:$0xff] %v603
      %612 = vrot.lane.b32.xlu0 %v381, 1
      %v613 = vpop.permute.xlu0 %612
      %614 = vrot.lane.b32.xlu0 %v383, 1
      %v615 = vpop.permute.xlu0 %614
      %616 = vrot.lane.b32.xlu0 %v385, 1
      %v617 = vpop.permute.xlu0 %616
      %618 = vrot.lane.b32.xlu0 %v387, 1
      %v619 = vpop.permute.xlu0 %618
      %620 = vrot.lane.b32.xlu0 %v382, 1
      %v621 = vpop.permute.xlu0 %620
      %622 = vrot.lane.b32.xlu0 %v384, 1
      %v623 = vpop.permute.xlu0 %622
      %624 = vrot.lane.b32.xlu0 %v386, 1
      %v625 = vpop.permute.xlu0 %624
      %626 = vrot.lane.b32.xlu0 %v388, 1
      %v627 = vpop.permute.xlu0 %626
      %vm628 = vcmp.lt.s32.totalorder %v406, 1
      %v629 = vsel %vm628, %v613, %v621
      %v630 = vsel %vm628, %v615, %v623
      %v631 = vsel %vm628, %v617, %v625
      %v632 = vsel %vm628, %v619, %v627
      %v633 = vsel %vm628, %v621, %v613
      %v634 = vsel %vm628, %v623, %v615
      %v635 = vsel %vm628, %v625, %v617
      %v636 = vsel %vm628, %v627, %v619
      %s637 = scalar_lea.vmem %s4, 3
      %v638 = vld [vmem:[%s637] ss:$8 sm:$0x3]
      %v640 = vlaneseq
      %v641 = vshrl.u32 %v640, 7
      %v642 = vsub.s32 0, %v641
      %v643 = vrot.slane %v638, %v642
      %v644 = vlaneseq
      %v645 = vshrl.u32 %v644, 7
      %v646 = vsub.s32 1, %v645
      %v647 = vrot.slane %v638, %v646
      %v650 = vmul.f32 %v633, %v643
      %v651 = vmul.f32 %v629, %v647
      %v652 = vmul.f32 %v634, %v643
      %v653 = vmul.f32 %v630, %v647
      %v654 = vmul.f32 %v635, %v643
      %v655 = vmul.f32 %v631, %v647
      %v656 = vmul.f32 %v636, %v643
      %v657 = vmul.f32 %v632, %v647
      %v658 = vpack.c.bf16 %v652, %v650
      %v659 = vpack.c.bf16 %v653, %v651
      %v660 = vpack.c.bf16 %v656, %v654
      %v661 = vpack.c.bf16 %v657, %v655
      %v666 = vunpack.c.l.b16 %v658
      %v667 = vunpack.c.l.b16 %v659
      %v668 = vunpack.c.h.b16 %v658
      %v669 = vunpack.c.h.b16 %v659
      %v670 = vunpack.c.l.b16 %v660
      %v671 = vunpack.c.l.b16 %v661
      %v672 = vunpack.c.h.b16 %v660
      %v673 = vunpack.c.h.b16 %v661
      %v674 = vpack.c.b16 %v667, %v666
      %v675 = vpack.c.b16 %v669, %v668
      %v676 = vpack.c.b16 %v671, %v670
      %v677 = vpack.c.b16 %v673, %v672
      %682 = vst [vmem:[#allocation2 + $0x60] sm:$0xff] %v674
      %683 = vst [vmem:[#allocation2 + $0x68] sm:$0xff] %v675
      %684 = vst [vmem:[#allocation2 + $0x70] sm:$0xff] %v676
      %685 = vst [vmem:[#allocation2 + $0x78] sm:$0xff] %v677
      %v686 = vpack.c.bf16 %v383, %v381
      %v687 = vpack.c.bf16 %v384, %v382
      %v688 = vpack.c.bf16 %v387, %v385
      %v689 = vpack.c.bf16 %v388, %v386
      %v694 = vunpack.c.l.b16 %v686
      %v695 = vunpack.c.l.b16 %v687
      %v696 = vunpack.c.h.b16 %v686
      %v697 = vunpack.c.h.b16 %v687
      %v698 = vunpack.c.l.b16 %v688
      %v699 = vunpack.c.l.b16 %v689
      %v700 = vunpack.c.h.b16 %v688
      %v701 = vunpack.c.h.b16 %v689
      %v702 = vpack.c.b16 %v695, %v694
      %v703 = vpack.c.b16 %v697, %v696
      %v704 = vpack.c.b16 %v699, %v698
      %v705 = vpack.c.b16 %v701, %v700
      %710 = vst [vmem:[#allocation2 + $0x80] sm:$0xff] %v702
      %711 = vst [vmem:[#allocation2 + $0x88] sm:$0xff] %v703
      %712 = vst [vmem:[#allocation2 + $0x90] sm:$0xff] %v704
      %713 = vst [vmem:[#allocation2 + $0x98] sm:$0xff] %v705
      %714 = vrot.lane.b32.xlu0 %v381, 127
      %v715 = vpop.permute.xlu0 %714
      %716 = vrot.lane.b32.xlu0 %v383, 127
      %v717 = vpop.permute.xlu0 %716
      %718 = vrot.lane.b32.xlu0 %v385, 127
      %v719 = vpop.permute.xlu0 %718
      %720 = vrot.lane.b32.xlu0 %v387, 127
      %v721 = vpop.permute.xlu0 %720
      %722 = vrot.lane.b32.xlu0 %v382, 127
      %v723 = vpop.permute.xlu0 %722
      %724 = vrot.lane.b32.xlu0 %v384, 127
      %v725 = vpop.permute.xlu0 %724
      %726 = vrot.lane.b32.xlu0 %v386, 127
      %v727 = vpop.permute.xlu0 %726
      %728 = vrot.lane.b32.xlu0 %v388, 127
      %v729 = vpop.permute.xlu0 %728
      %vm730 = vcmp.lt.s32.totalorder %v406, 127
      %v731 = vsel %vm730, %v715, %v723
      %v732 = vsel %vm730, %v717, %v725
      %v733 = vsel %vm730, %v719, %v727
      %v734 = vsel %vm730, %v721, %v729
      %v735 = vsel %vm730, %v723, %v715
      %v736 = vsel %vm730, %v725, %v717
      %v737 = vsel %vm730, %v727, %v719
      %v738 = vsel %vm730, %v729, %v721
      %s739 = scalar_lea.vmem %s4, 5
      %v740 = vld [vmem:[%s739] ss:$8 sm:$0x3]
      %v742 = vlaneseq
      %v743 = vshrl.u32 %v742, 7
      %v744 = vsub.s32 0, %v743
      %v745 = vrot.slane %v740, %v744
      %v746 = vlaneseq
      %v747 = vshrl.u32 %v746, 7
      %v748 = vsub.s32 1, %v747
      %v749 = vrot.slane %v740, %v748
      %v752 = vmul.f32 %v731, %v745
      %v753 = vmul.f32 %v735, %v749
      %v754 = vmul.f32 %v732, %v745
      %v755 = vmul.f32 %v736, %v749
      %v756 = vmul.f32 %v733, %v745
      %v757 = vmul.f32 %v737, %v749
      %v758 = vmul.f32 %v734, %v745
      %v759 = vmul.f32 %v738, %v749
      %v760 = vpack.c.bf16 %v754, %v752
      %v761 = vpack.c.bf16 %v755, %v753
      %v762 = vpack.c.bf16 %v758, %v756
      %v763 = vpack.c.bf16 %v759, %v757
      %v768 = vunpack.c.l.b16 %v760
      %v769 = vunpack.c.l.b16 %v761
      %v770 = vunpack.c.h.b16 %v760
      %v771 = vunpack.c.h.b16 %v761
      %v772 = vunpack.c.l.b16 %v762
      %v773 = vunpack.c.l.b16 %v763
      %v774 = vunpack.c.h.b16 %v762
      %v775 = vunpack.c.h.b16 %v763
      %v776 = vpack.c.b16 %v769, %v768
      %v777 = vpack.c.b16 %v771, %v770
      %v778 = vpack.c.b16 %v773, %v772
      %v779 = vpack.c.b16 %v775, %v774
      %784 = vst [vmem:[#allocation2 + $0xa0] sm:$0xff] %v776
      %785 = vst [vmem:[#allocation2 + $0xa8] sm:$0xff] %v777
      %786 = vst [vmem:[#allocation2 + $0xb0] sm:$0xff] %v778
      %787 = vst [vmem:[#allocation2 + $0xb8] sm:$0xff] %v779
      %788 = vrot.lane.b32.xlu0 %v381, 113
      %v789 = vpop.permute.xlu0 %788
      %790 = vrot.lane.b32.xlu0 %v383, 113
      %v791 = vpop.permute.xlu0 %790
      %792 = vrot.lane.b32.xlu0 %v385, 113
      %v793 = vpop.permute.xlu0 %792
      %794 = vrot.lane.b32.xlu0 %v387, 113
      %v795 = vpop.permute.xlu0 %794
      %796 = vrot.lane.b32.xlu0 %v382, 113
      %v797 = vpop.permute.xlu0 %796
      %798 = vrot.lane.b32.xlu0 %v384, 113
      %v799 = vpop.permute.xlu0 %798
      %800 = vrot.lane.b32.xlu0 %v386, 113
      %v801 = vpop.permute.xlu0 %800
      %802 = vrot.lane.b32.xlu0 %v388, 113
      %v803 = vpop.permute.xlu0 %802
      %vm804 = vcmp.lt.s32.totalorder %v406, 113
      %v805 = vsel %vm804, %v789, %v797
      %v806 = vsel %vm804, %v791, %v799
      %v807 = vsel %vm804, %v793, %v801
      %v808 = vsel %vm804, %v795, %v803
      %v809 = vsel %vm804, %v797, %v789
      %v810 = vsel %vm804, %v799, %v791
      %v811 = vsel %vm804, %v801, %v793
      %v812 = vsel %vm804, %v803, %v795
      %s813 = scalar_lea.vmem %s4, 6
      %v814 = vld [vmem:[%s813] ss:$8 sm:$0x3]
      %v816 = vlaneseq
      %v817 = vshrl.u32 %v816, 7
      %v818 = vsub.s32 0, %v817
      %v819 = vrot.slane %v814, %v818
      %v820 = vlaneseq
      %v821 = vshrl.u32 %v820, 7
      %v822 = vsub.s32 1, %v821
      %v823 = vrot.slane %v814, %v822
      %v826 = vmul.f32 %v805, %v819
      %v827 = vmul.f32 %v809, %v823
      %v828 = vmul.f32 %v806, %v819
      %v829 = vmul.f32 %v810, %v823
      %v830 = vmul.f32 %v807, %v819
      %v831 = vmul.f32 %v811, %v823
      %v832 = vmul.f32 %v808, %v819
      %v833 = vmul.f32 %v812, %v823
      %v834 = vpack.c.bf16 %v828, %v826
      %v835 = vpack.c.bf16 %v829, %v827
      %v836 = vpack.c.bf16 %v832, %v830
      %v837 = vpack.c.bf16 %v833, %v831
      %v842 = vunpack.c.l.b16 %v834
      %v843 = vunpack.c.l.b16 %v835
      %v844 = vunpack.c.h.b16 %v834
      %v845 = vunpack.c.h.b16 %v835
      %v846 = vunpack.c.l.b16 %v836
      %v847 = vunpack.c.l.b16 %v837
      %v848 = vunpack.c.h.b16 %v836
      %v849 = vunpack.c.h.b16 %v837
      %v850 = vpack.c.b16 %v843, %v842
      %v851 = vpack.c.b16 %v845, %v844
      %v852 = vpack.c.b16 %v847, %v846
      %v853 = vpack.c.b16 %v849, %v848
      %858 = vst [vmem:[#allocation2 + $0xc0] sm:$0xff] %v850
      %859 = vst [vmem:[#allocation2 + $0xc8] sm:$0xff] %v851
      %860 = vst [vmem:[#allocation2 + $0xd0] sm:$0xff] %v852
      %861 = vst [vmem:[#allocation2 + $0xd8] sm:$0xff] %v853
      %862 = vrot.lane.b32.xlu0 %v381, 112
      %v863 = vpop.permute.xlu0 %862
      %864 = vrot.lane.b32.xlu0 %v383, 112
      %v865 = vpop.permute.xlu0 %864
      %866 = vrot.lane.b32.xlu0 %v385, 112
      %v867 = vpop.permute.xlu0 %866
      %868 = vrot.lane.b32.xlu0 %v387, 112
      %v869 = vpop.permute.xlu0 %868
      %870 = vrot.lane.b32.xlu0 %v382, 112
      %v871 = vpop.permute.xlu0 %870
      %872 = vrot.lane.b32.xlu0 %v384, 112
      %v873 = vpop.permute.xlu0 %872
      %874 = vrot.lane.b32.xlu0 %v386, 112
      %v875 = vpop.permute.xlu0 %874
      %876 = vrot.lane.b32.xlu0 %v388, 112
      %v877 = vpop.permute.xlu0 %876
      %vm878 = vcmp.lt.s32.totalorder %v406, 112
      %v879 = vsel %vm878, %v863, %v871
      %v880 = vsel %vm878, %v865, %v873
      %v881 = vsel %vm878, %v867, %v875
      %v882 = vsel %vm878, %v869, %v877
      %v883 = vsel %vm878, %v871, %v863
      %v884 = vsel %vm878, %v873, %v865
      %v885 = vsel %vm878, %v875, %v867
      %v886 = vsel %vm878, %v877, %v869
      %s887 = scalar_lea.vmem %s4, 7
      %v888 = vld [vmem:[%s887] ss:$8 sm:$0x3]
      %v890 = vlaneseq
      %v891 = vshrl.u32 %v890, 7
      %v892 = vsub.s32 0, %v891
      %v893 = vrot.slane %v888, %v892
      %v894 = vlaneseq
      %v895 = vshrl.u32 %v894, 7
      %v896 = vsub.s32 1, %v895
      %v897 = vrot.slane %v888, %v896
      %v900 = vmul.f32 %v879, %v893
      %v901 = vmul.f32 %v883, %v897
      %v902 = vmul.f32 %v880, %v893
      %v903 = vmul.f32 %v884, %v897
      %v904 = vmul.f32 %v881, %v893
      %v905 = vmul.f32 %v885, %v897
      %v906 = vmul.f32 %v882, %v893
      %v907 = vmul.f32 %v886, %v897
      %v908 = vpack.c.bf16 %v902, %v900
      %v909 = vpack.c.bf16 %v903, %v901
      %v910 = vpack.c.bf16 %v906, %v904
      %v911 = vpack.c.bf16 %v907, %v905
      %v916 = vunpack.c.l.b16 %v908
      %v917 = vunpack.c.l.b16 %v909
      %v918 = vunpack.c.h.b16 %v908
      %v919 = vunpack.c.h.b16 %v909
      %v920 = vunpack.c.l.b16 %v910
      %v921 = vunpack.c.l.b16 %v911
      %v922 = vunpack.c.h.b16 %v910
      %v923 = vunpack.c.h.b16 %v911
      %v924 = vpack.c.b16 %v917, %v916
      %v925 = vpack.c.b16 %v919, %v918
      %v926 = vpack.c.b16 %v921, %v920
      %v927 = vpack.c.b16 %v923, %v922
      %932 = vst [vmem:[#allocation2 + $0xe0] sm:$0xff] %v924
      %933 = vst [vmem:[#allocation2 + $0xe8] sm:$0xff] %v925
      %934 = vst [vmem:[#allocation2 + $0xf0] sm:$0xff] %v926
      %935 = vst [vmem:[#allocation2 + $0xf8] sm:$0xff] %v927
      %936 = vrot.lane.b32.xlu0 %v381, 111
      %v937 = vpop.permute.xlu0 %936
      %938 = vrot.lane.b32.xlu0 %v383, 111
      %v939 = vpop.permute.xlu0 %938
      %940 = vrot.lane.b32.xlu0 %v385, 111
      %v941 = vpop.permute.xlu0 %940
      %942 = vrot.lane.b32.xlu0 %v387, 111
      %v943 = vpop.permute.xlu0 %942
      %944 = vrot.lane.b32.xlu0 %v382, 111
      %v945 = vpop.permute.xlu0 %944
      %946 = vrot.lane.b32.xlu0 %v384, 111
      %v947 = vpop.permute.xlu0 %946
      %948 = vrot.lane.b32.xlu0 %v386, 111
      %v949 = vpop.permute.xlu0 %948
      %950 = vrot.lane.b32.xlu0 %v388, 111
      %v951 = vpop.permute.xlu0 %950
      %vm952 = vcmp.lt.s32.totalorder %v406, 111
      %v953 = vsel %vm952, %v937, %v945
      %v954 = vsel %vm952, %v939, %v947
      %v955 = vsel %vm952, %v941, %v949
      %v956 = vsel %vm952, %v943, %v951
      %v957 = vsel %vm952, %v945, %v937
      %v958 = vsel %vm952, %v947, %v939
      %v959 = vsel %vm952, %v949, %v941
      %v960 = vsel %vm952, %v951, %v943
      %s961 = scalar_lea.vmem %s4, 16
      %v962 = vld [vmem:[%s961] ss:$8 sm:$0x3]
      %v964 = vlaneseq
      %v965 = vshrl.u32 %v964, 7
      %v966 = vsub.s32 0, %v965
      %v967 = vrot.slane %v962, %v966
      %v968 = vlaneseq
      %v969 = vshrl.u32 %v968, 7
      %v970 = vsub.s32 1, %v969
      %v971 = vrot.slane %v962, %v970
      %v974 = vmul.f32 %v953, %v967
      %v975 = vmul.f32 %v957, %v971
      %v976 = vmul.f32 %v954, %v967
      %v977 = vmul.f32 %v958, %v971
      %v978 = vmul.f32 %v955, %v967
      %v979 = vmul.f32 %v959, %v971
      %v980 = vmul.f32 %v956, %v967
      %v981 = vmul.f32 %v960, %v971
      %v982 = vpack.c.bf16 %v976, %v974
      %v983 = vpack.c.bf16 %v977, %v975
      %v984 = vpack.c.bf16 %v980, %v978
      %v985 = vpack.c.bf16 %v981, %v979
      %v990 = vunpack.c.l.b16 %v982
      %v991 = vunpack.c.l.b16 %v983
      %v992 = vunpack.c.h.b16 %v982
      %v993 = vunpack.c.h.b16 %v983
      %v994 = vunpack.c.l.b16 %v984
      %v995 = vunpack.c.l.b16 %v985
      %v996 = vunpack.c.h.b16 %v984
      %v997 = vunpack.c.h.b16 %v985
      %v998 = vpack.c.b16 %v991, %v990
      %v999 = vpack.c.b16 %v993, %v992
      %v1000 = vpack.c.b16 %v995, %v994
      %v1001 = vpack.c.b16 %v997, %v996
      %1006 = vst [vmem:[#allocation2 + $0x100] sm:$0xff] %v998
      %1007 = vst [vmem:[#allocation2 + $0x108] sm:$0xff] %v999
      %1008 = vst [vmem:[#allocation2 + $0x110] sm:$0xff] %v1000
      %1009 = vst [vmem:[#allocation2 + $0x118] sm:$0xff] %v1001
      %v1010 = vld [vmem:[%s3] sm:$0xff]
      %v1011 = vld [vmem:[%s3 + $0x8] sm:$0xf]
      %v1012 = vld [vmem:[%s3 + $0xc] sm:$0xff]
      %v1013 = vld [vmem:[%s3 + $0x14] sm:$0xf]
      %v1014 = vld [vmem:[%s3 + $0x18] sm:$0xff]
      %v1015 = vld [vmem:[%s3 + $0x20] sm:$0xf]
      %v1016 = vld [vmem:[%s3 + $0x24] sm:$0xff]
      %v1017 = vld [vmem:[%s3 + $0x2c] sm:$0xf]
      %v1018 = vld [vmem:[#allocation2] sm:$0xff]
      %v1019 = vld [vmem:[#allocation2 + $0x8] sm:$0xff]
      %v1020 = vld [vmem:[#allocation2 + $0x10] sm:$0xff]
      %v1021 = vld [vmem:[#allocation2 + $0x18] sm:$0xff]
      %v1022 = vld [vmem:[#allocation2 + $0x20] sm:$0xff]
      %v1023 = vld [vmem:[#allocation2 + $0x28] sm:$0xff]
      %v1024 = vld [vmem:[#allocation2 + $0x30] sm:$0xff]
      %v1025 = vld [vmem:[#allocation2 + $0x38] sm:$0xff]
      %v1026 = vld [vmem:[#allocation2 + $0x40] sm:$0xff]
      %v1027 = vld [vmem:[#allocation2 + $0x48] sm:$0xff]
      %v1028 = vld [vmem:[#allocation2 + $0x50] sm:$0xff]
      %v1029 = vld [vmem:[#allocation2 + $0x58] sm:$0xff]
      %v1030 = vld [vmem:[#allocation2 + $0x60] sm:$0xff]
      %v1031 = vld [vmem:[#allocation2 + $0x68] sm:$0xff]
      %v1032 = vld [vmem:[#allocation2 + $0x70] sm:$0xff]
      %v1033 = vld [vmem:[#allocation2 + $0x78] sm:$0xff]
      %v1034 = vld [vmem:[#allocation2 + $0x80] sm:$0xff]
      %v1035 = vld [vmem:[#allocation2 + $0x88] sm:$0xff]
      %v1036 = vld [vmem:[#allocation2 + $0x90] sm:$0xff]
      %v1037 = vld [vmem:[#allocation2 + $0x98] sm:$0xff]
      %v1038 = vld [vmem:[#allocation2 + $0xa0] sm:$0xff]
      %v1039 = vld [vmem:[#allocation2 + $0xa8] sm:$0xff]
      %v1040 = vld [vmem:[#allocation2 + $0xb0] sm:$0xff]
      %v1041 = vld [vmem:[#allocation2 + $0xb8] sm:$0xff]
      %v1042 = vld [vmem:[#allocation2 + $0xc0] sm:$0xff]
      %v1043 = vld [vmem:[#allocation2 + $0xc8] sm:$0xff]
      %v1044 = vld [vmem:[#allocation2 + $0xd0] sm:$0xff]
      %v1045 = vld [vmem:[#allocation2 + $0xd8] sm:$0xff]
      %v1046 = vld [vmem:[#allocation2 + $0xe0] sm:$0xff]
      %v1047 = vld [vmem:[#allocation2 + $0xe8] sm:$0xff]
      %v1048 = vld [vmem:[#allocation2 + $0xf0] sm:$0xff]
      %v1049 = vld [vmem:[#allocation2 + $0xf8] sm:$0xff]
      %v1050 = vld [vmem:[#allocation2 + $0x100] sm:$0xff]
      %v1051 = vld [vmem:[#allocation2 + $0x108] sm:$0xff]
      %v1052 = vld [vmem:[#allocation2 + $0x110] sm:$0xff]
      %v1053 = vld [vmem:[#allocation2 + $0x118] sm:$0xff]
      %v1062 = vunpack.c.l.b16 %v1010
      %v1063 = vunpack.c.h.b16 %v1010
      %v1064 = vunpack.c.l.b16 %v1011
      %v1065 = vunpack.c.l.b16 %v1012
      %v1066 = vunpack.c.h.b16 %v1012
      %v1067 = vunpack.c.l.b16 %v1013
      %v1068 = vunpack.c.l.b16 %v1014
      %v1069 = vunpack.c.h.b16 %v1014
      %v1070 = vunpack.c.l.b16 %v1015
      %v1071 = vunpack.c.l.b16 %v1016
      %v1072 = vunpack.c.h.b16 %v1016
      %v1073 = vunpack.c.l.b16 %v1017
      %v1074 = vpack.c.b16 %v1065, %v1062
      %v1075 = vpack.c.b16 %v1066, %v1063
      %v1076 = vpack.c.b16 %v1067, %v1064
      %v1077 = vpack.c.b16 %v1071, %v1068
      %v1078 = vpack.c.b16 %v1072, %v1069
      %v1079 = vpack.c.b16 %v1073, %v1070
      %v1120 = vunpack.c.l.b16 %v1018
      %v1121 = vunpack.c.h.b16 %v1018
      %v1122 = vunpack.c.l.b16 %v1019
      %v1123 = vunpack.c.h.b16 %v1019
      %v1124 = vunpack.c.l.b16 %v1020
      %v1125 = vunpack.c.h.b16 %v1020
      %v1126 = vunpack.c.l.b16 %v1021
      %v1127 = vunpack.c.h.b16 %v1021
      %v1128 = vunpack.c.l.b16 %v1022
      %v1129 = vunpack.c.h.b16 %v1022
      %v1130 = vunpack.c.l.b16 %v1023
      %v1131 = vunpack.c.h.b16 %v1023
      %v1132 = vunpack.c.l.b16 %v1024
      %v1133 = vunpack.c.h.b16 %v1024
      %v1134 = vunpack.c.l.b16 %v1025
      %v1135 = vunpack.c.h.b16 %v1025
      %v1136 = vunpack.c.l.b16 %v1026
      %v1137 = vunpack.c.h.b16 %v1026
      %v1138 = vunpack.c.l.b16 %v1027
      %v1139 = vunpack.c.h.b16 %v1027
      %v1140 = vunpack.c.l.b16 %v1028
      %v1141 = vunpack.c.h.b16 %v1028
      %v1142 = vunpack.c.l.b16 %v1029
      %v1143 = vunpack.c.h.b16 %v1029
      %v1144 = vunpack.c.l.b16 %v1030
      %v1145 = vunpack.c.h.b16 %v1030
      %v1146 = vunpack.c.l.b16 %v1031
      %v1147 = vunpack.c.h.b16 %v1031
      %v1148 = vunpack.c.l.b16 %v1032
      %v1149 = vunpack.c.h.b16 %v1032
      %v1150 = vunpack.c.l.b16 %v1033
      %v1151 = vunpack.c.h.b16 %v1033
      %v1152 = vunpack.c.l.b16 %v1034
      %v1153 = vunpack.c.h.b16 %v1034
      %v1154 = vunpack.c.l.b16 %v1035
      %v1155 = vunpack.c.h.b16 %v1035
      %v1156 = vunpack.c.l.b16 %v1036
      %v1157 = vunpack.c.h.b16 %v1036
      %v1158 = vunpack.c.l.b16 %v1037
      %v1159 = vunpack.c.h.b16 %v1037
      %v1160 = vunpack.c.l.b16 %v1038
      %v1161 = vunpack.c.h.b16 %v1038
      %v1162 = vunpack.c.l.b16 %v1039
      %v1163 = vunpack.c.h.b16 %v1039
      %v1164 = vunpack.c.l.b16 %v1040
      %v1165 = vunpack.c.h.b16 %v1040
      %v1166 = vunpack.c.l.b16 %v1041
      %v1167 = vunpack.c.h.b16 %v1041
      %v1168 = vunpack.c.l.b16 %v1042
      %v1169 = vunpack.c.h.b16 %v1042
      %v1170 = vunpack.c.l.b16 %v1043
      %v1171 = vunpack.c.h.b16 %v1043
      %v1172 = vunpack.c.l.b16 %v1044
      %v1173 = vunpack.c.h.b16 %v1044
      %v1174 = vunpack.c.l.b16 %v1045
      %v1175 = vunpack.c.h.b16 %v1045
      %v1176 = vunpack.c.l.b16 %v1046
      %v1177 = vunpack.c.h.b16 %v1046
      %v1178 = vunpack.c.l.b16 %v1047
      %v1179 = vunpack.c.h.b16 %v1047
      %v1180 = vunpack.c.l.b16 %v1048
      %v1181 = vunpack.c.h.b16 %v1048
      %v1182 = vunpack.c.l.b16 %v1049
      %v1183 = vunpack.c.h.b16 %v1049
      %v1184 = vunpack.c.l.b16 %v1050
      %v1185 = vunpack.c.h.b16 %v1050
      %v1186 = vunpack.c.l.b16 %v1051
      %v1187 = vunpack.c.h.b16 %v1051
      %v1188 = vunpack.c.l.b16 %v1052
      %v1189 = vunpack.c.h.b16 %v1052
      %v1190 = vunpack.c.l.b16 %v1053
      %v1191 = vunpack.c.h.b16 %v1053
      %v1192 = vpack.c.b16 %v1122, %v1120
      %v1193 = vpack.c.b16 %v1123, %v1121
      %v1194 = vpack.c.b16 %v1126, %v1124
      %v1195 = vpack.c.b16 %v1127, %v1125
      %v1196 = vpack.c.b16 %v1130, %v1128
      %v1197 = vpack.c.b16 %v1131, %v1129
      %v1198 = vpack.c.b16 %v1134, %v1132
      %v1199 = vpack.c.b16 %v1135, %v1133
      %v1200 = vpack.c.b16 %v1138, %v1136
      %v1201 = vpack.c.b16 %v1139, %v1137
      %v1202 = vpack.c.b16 %v1142, %v1140
      %v1203 = vpack.c.b16 %v1143, %v1141
      %v1204 = vpack.c.b16 %v1146, %v1144
      %v1205 = vpack.c.b16 %v1147, %v1145
      %v1206 = vpack.c.b16 %v1150, %v1148
      %v1207 = vpack.c.b16 %v1151, %v1149
      %v1208 = vpack.c.b16 %v1154, %v1152
      %v1209 = vpack.c.b16 %v1155, %v1153
      %v1210 = vpack.c.b16 %v1158, %v1156
      %v1211 = vpack.c.b16 %v1159, %v1157
      %v1212 = vpack.c.b16 %v1162, %v1160
      %v1213 = vpack.c.b16 %v1163, %v1161
      %v1214 = vpack.c.b16 %v1166, %v1164
      %v1215 = vpack.c.b16 %v1167, %v1165
      %v1216 = vpack.c.b16 %v1170, %v1168
      %v1217 = vpack.c.b16 %v1171, %v1169
      %v1218 = vpack.c.b16 %v1174, %v1172
      %v1219 = vpack.c.b16 %v1175, %v1173
      %v1220 = vpack.c.b16 %v1178, %v1176
      %v1221 = vpack.c.b16 %v1179, %v1177
      %v1222 = vpack.c.b16 %v1182, %v1180
      %v1223 = vpack.c.b16 %v1183, %v1181
      %v1224 = vpack.c.b16 %v1186, %v1184
      %v1225 = vpack.c.b16 %v1187, %v1185
      %v1226 = vpack.c.b16 %v1190, %v1188
      %v1227 = vpack.c.b16 %v1191, %v1189
      %vm1264 = vcmask 261120
      %v1266 = vsel %vm1264, %v1076, 0
      %v1269 = vsel %vm1264, %v1079, 0
      %1271 = vmatprep.subr.bf16.mxu0 %v1207
      %1272 = vmatpush1.bf16.msra.mxu0 %v1206
      %1273 = vmatprep.subr.bf16.mxu0 %v1205
      %1274 = vmatpush1.bf16.msra.mxu0 %v1204
      %1275 = vmatprep.subr.bf16.mxu0 %v1203
      %1276 = vmatpush1.bf16.msra.mxu0 %v1202
      %1277 = vmatprep.subr.bf16.mxu0 %v1201
      %1278 = vmatpush1.bf16.msra.mxu0 %v1200
      %1279 = vmatprep.subr.bf16.mxu0 %v1199
      %1280 = vmatpush1.bf16.msra.mxu0 %v1198
      %1281 = vmatprep.subr.bf16.mxu0 %v1197
      %1282 = vmatpush1.bf16.msra.mxu0 %v1196
      %1283 = vmatprep.subr.bf16.mxu0 %v1195
      %1284 = vmatpush1.bf16.msra.mxu0 %v1194
      %1285 = vmatprep.subr.bf16.mxu0 %v1193
      %1286 = vmatpush1.bf16.msra.mxu0 %v1192
      %1287 = vmatprep.subr.bf16.mxu0 %v1223
      %1288 = vmatpush2.bf16.msra.mxu0 %v1222
      %1289 = vmatprep.subr.bf16.mxu0 %v1221
      %1290 = vmatpush2.bf16.msra.mxu0 %v1220
      %1291 = vmatprep.subr.bf16.mxu0 %v1219
      %1292 = vmatpush2.bf16.msra.mxu0 %v1218
      %1293 = vmatprep.subr.bf16.mxu0 %v1217
      %1294 = vmatpush2.bf16.msra.mxu0 %v1216
      %1295 = vmatprep.subr.bf16.mxu0 %v1215
      %1296 = vmatpush2.bf16.msra.mxu0 %v1214
      %1297 = vmatprep.subr.bf16.mxu0 %v1213
      %1298 = vmatpush2.bf16.msra.mxu0 %v1212
      %1299 = vmatprep.subr.bf16.mxu0 %v1211
      %1300 = vmatpush2.bf16.msra.mxu0 %v1210
      %1301 = vmatprep.subr.bf16.mxu0 %v1209
      %1302 = vmatpush2.bf16.msra.mxu0 %v1208
      %1303 = vmatprep.mubr.bf16.mxu0 %v1075
      %1304 = vmatmul.mubr.bf16.gmra.mxu0 %v1074
      %v1305 = vpop.f32.mrf.mxu0
      %v1306 = vadd.f32 0.0, %v1305
      %v1307 = vpop.f32.mrf.mxu0
      %v1308 = vadd.f32 0.0, %v1307
      %v1309 = vpop.f32.mrf.mxu0
      %v1310 = vadd.f32 0.0, %v1309
      %v1311 = vpop.f32.mrf.mxu0
      %v1312 = vadd.f32 0.0, %v1311
      %1313 = vmatprep.mubr.bf16.mxu0 %v1078
      %1314 = vmatmul.mubr.bf16.gmra.mxu0 %v1077
      %v1315 = vpop.f32.mrf.mxu0
      %v1316 = vadd.f32 0.0, %v1315
      %v1317 = vpop.f32.mrf.mxu0
      %v1318 = vadd.f32 0.0, %v1317
      %v1319 = vpop.f32.mrf.mxu0
      %v1320 = vadd.f32 0.0, %v1319
      %v1321 = vpop.f32.mrf.mxu0
      %v1322 = vadd.f32 0.0, %v1321
      %1323 = vdwg.mxu0
      %1324 = vmatprep.subr.bf16.mxu0 0
      %1325 = vmatpush1.bf16.msra.mxu0 0
      %1326 = vmatprep.subr.bf16.mxu0 0
      %1327 = vmatpush1.bf16.msra.mxu0 0
      %1328 = vmatprep.subr.bf16.mxu0 0
      %1329 = vmatpush1.bf16.msra.mxu0 0
      %1330 = vmatprep.subr.bf16.mxu0 0
      %1331 = vmatpush1.bf16.msra.mxu0 0
      %1332 = vmatprep.subr.bf16.mxu0 0
      %1333 = vmatpush1.bf16.msra.mxu0 0
      %1334 = vmatprep.subr.bf16.mxu0 0
      %1335 = vmatpush1.bf16.msra.mxu0 0
      %1336 = vmatprep.subr.bf16.mxu0 %v1227
      %1337 = vmatpush1.bf16.msra.mxu0 %v1226
      %1338 = vmatprep.subr.bf16.mxu0 %v1225
      %1339 = vmatpush1.bf16.msra.mxu0 %v1224
      %1340 = vmatprep.subr.bf16.mxu0 0
      %1341 = vmatpush2.bf16.msra.mxu0 0
      %1342 = vmatprep.subr.bf16.mxu0 0
      %1343 = vmatpush2.bf16.msra.mxu0 0
      %1344 = vmatprep.subr.bf16.mxu0 0
      %1345 = vmatpush2.bf16.msra.mxu0 0
      %1346 = vmatprep.subr.bf16.mxu0 0
      %1347 = vmatpush2.bf16.msra.mxu0 0
      %1348 = vmatprep.subr.bf16.mxu0 0
      %1349 = vmatpush2.bf16.msra.mxu0 0
      %1350 = vmatprep.subr.bf16.mxu0 0
      %1351 = vmatpush2.bf16.msra.mxu0 0
      %1352 = vmatprep.subr.bf16.mxu0 0
      %1353 = vmatpush2.bf16.msra.mxu0 0
      %1354 = vmatprep.subr.bf16.mxu0 0
      %1355 = vmatpush2.bf16.msra.mxu0 0
      %1356 = vmatprep.mubr.bf16.mxu0 0
      %1357 = vmatmul.mubr.bf16.gmra.mxu0 %v1266
      %v1358 = vpop.f32.mrf.mxu0
      %v1359 = vadd.f32 %v1306, %v1358
      %v1360 = vpop.f32.mrf.mxu0
      %v1361 = vadd.f32 %v1308, %v1360
      %v1362 = vpop.f32.mrf.mxu0
      %v1363 = vadd.f32 %v1310, %v1362
      %v1364 = vpop.f32.mrf.mxu0
      %v1365 = vadd.f32 %v1312, %v1364
      %1366 = vmatprep.mubr.bf16.mxu0 0
      %1367 = vmatmul.mubr.bf16.gmra.mxu0 %v1269
      %v1368 = vpop.f32.mrf.mxu0
      %v1369 = vadd.f32 %v1316, %v1368
      %v1370 = vpop.f32.mrf.mxu0
      %v1371 = vadd.f32 %v1318, %v1370
      %v1372 = vpop.f32.mrf.mxu0
      %v1373 = vadd.f32 %v1320, %v1372
      %v1374 = vpop.f32.mrf.mxu0
      %v1375 = vadd.f32 %v1322, %v1374
      %1376 = vdwg.mxu0
      %v1377 = vpack.c.bf16 %v1363, %v1359
      %v1378 = vpack.c.bf16 %v1365, %v1361
      %v1379 = vpack.c.bf16 %v1373, %v1369
      %v1380 = vpack.c.bf16 %v1375, %v1371
      %v1385 = vunpack.c.l.b16 %v1377
      %v1386 = vunpack.c.l.b16 %v1378
      %v1387 = vunpack.c.h.b16 %v1377
      %v1388 = vunpack.c.h.b16 %v1378
      %v1389 = vunpack.c.l.b16 %v1379
      %v1390 = vunpack.c.l.b16 %v1380
      %v1391 = vunpack.c.h.b16 %v1379
      %v1392 = vunpack.c.h.b16 %v1380
      %v1393 = vpack.c.b16 %v1386, %v1385
      %v1394 = vpack.c.b16 %v1388, %v1387
      %v1395 = vpack.c.b16 %v1390, %v1389
      %v1396 = vpack.c.b16 %v1392, %v1391
      %1401 = vst [vmem:[%s293] sm:$0xff] %v1393
      %1402 = vst [vmem:[%s293 + $0x8] sm:$0xff] %v1394
      %1403 = vst [vmem:[%s293 + $0x10] sm:$0xff] %v1395
      %1404 = vst [vmem:[%s293 + $0x18] sm:$0xff] %v1396
      %v1405 = vadd.f32 %v1359, %v1361
      %1406 = vadd.xlane.f32.xlu0 %v1405
      %v1407 = vpop.xlane.xlu0 %1406
      %v1408 = vadd.f32 %v1363, %v1365
      %1409 = vadd.xlane.f32.xlu0 %v1408
      %v1410 = vpop.xlane.xlu0 %1409
      %v1411 = vadd.f32 %v1369, %v1371
      %1412 = vadd.xlane.f32.xlu0 %v1411
      %v1413 = vpop.xlane.xlu0 %1412
      %v1414 = vadd.f32 %v1373, %v1375
      %1415 = vadd.xlane.f32.xlu0 %v1414
      %v1416 = vpop.xlane.xlu0 %1415
      %v1417 = vadd.f32 %v1407, 0.0
      %v1418 = vadd.f32 %v1410, 0.0
      %v1419 = vadd.f32 %v1413, 0.0
      %v1420 = vadd.f32 %v1416, 0.0
      %v1421 = vmul.f32 %v1359, %v1359
      %v1422 = vmul.f32 %v1361, %v1361
      %v1423 = vmul.f32 %v1363, %v1363
      %v1424 = vmul.f32 %v1365, %v1365
      %v1425 = vmul.f32 %v1369, %v1369
      %v1426 = vmul.f32 %v1371, %v1371
      %v1427 = vmul.f32 %v1373, %v1373
      %v1428 = vmul.f32 %v1375, %v1375
      %v1429 = vadd.f32 %v1421, %v1422
      %1430 = vadd.xlane.f32.xlu0 %v1429
      %v1431 = vpop.xlane.xlu0 %1430
      %v1432 = vadd.f32 %v1423, %v1424
      %1433 = vadd.xlane.f32.xlu0 %v1432
      %v1434 = vpop.xlane.xlu0 %1433
      %v1435 = vadd.f32 %v1425, %v1426
      %1436 = vadd.xlane.f32.xlu0 %v1435
      %v1437 = vpop.xlane.xlu0 %1436
      %v1438 = vadd.f32 %v1427, %v1428
      %1439 = vadd.xlane.f32.xlu0 %v1438
      %v1440 = vpop.xlane.xlu0 %1439
      %v1441 = vadd.f32 %v1431, 0.0
      %v1442 = vadd.f32 %v1434, 0.0
      %v1443 = vadd.f32 %v1437, 0.0
      %v1444 = vadd.f32 %v1440, 0.0
      %vm1445 = vcmask 7168
      %1446 = vst.msk [vmem:[%s298] sm:$0xff] %vm1445, %v1417
      %1447 = vst.msk [vmem:[%s298 + $0x8] sm:$0xff] %vm1445, %v1418
      %1448 = vst.msk [vmem:[%s298 + $0x10] sm:$0xff] %vm1445, %v1419
      %1449 = vst.msk [vmem:[%s298 + $0x18] sm:$0xff] %vm1445, %v1420
      %1450 = vst.msk [vmem:[%s303] sm:$0xff] %vm1445, %v1441
      %1451 = vst.msk [vmem:[%s303 + $0x8] sm:$0xff] %vm1445, %v1442
      %1452 = vst.msk [vmem:[%s303 + $0x10] sm:$0xff] %vm1445, %v1443
      %1453 = vst.msk [vmem:[%s303 + $0x18] sm:$0xff] %vm1445, %v1444
      %p1454 = scmp.lt.s32.totalorder %s19, 1
      %s1455 = scalar_select %p1454, %s19, 1
      %s1456 = smul.addr %s1455, 8
      %s1457 = smul.addr %s1456, 4
      %s1458 = scalar_lea.vmem %s5, %s1457
      %p1459 = scmp.lt.s32.totalorder %s19, 1
      %s1460 = scalar_select %p1459, %s19, 1
      %s1461 = smul.addr %s1460, 4
      %s1462 = smul.addr %s1461, 8
      %s1463 = scalar_lea.vmem %s6, %s1462
      %p1464 = scmp.lt.s32.totalorder %s19, 1
      %s1465 = scalar_select %p1464, %s19, 1
      %s1466 = smul.addr %s1465, 4
      %s1467 = smul.addr %s1466, 8
      %s1468 = scalar_lea.vmem %s7, %s1467
      // Predicated region
      $region41: #{basic_block_forward.4} parent=39 // pred_check
        %p1469 = pneg %p147
      $region42: #{basic_block_forward.4} parent=39 // pred_check_branch
        %1471 = sbr.rel (%p1469) target = $region44
      $region43: #{basic_block_forward.4} parent=39 // pred_region
        _
      $region44: #{basic_block_forward.4} parent=39 // pred_fallthru
        _
      // Predicated region
      $region45: #{basic_block_forward.4} parent=39 // pred_check
        %p1472 = pneg %p173
      $region46: #{basic_block_forward.4} parent=39 // pred_check_branch
        %1474 = sbr.rel (%p1472) target = $region48
      $region47: #{basic_block_forward.4} parent=39 // pred_region
        _
      $region48: #{basic_block_forward.4} parent=39 // pred_fallthru
        _
      // Predicated region
      $region49: #{basic_block_forward.4} parent=39 // pred_check
        %p1475 = pneg %p199
      $region50: #{basic_block_forward.4} parent=39 // pred_check_branch
        %1477 = sbr.rel (%p1475) target = $region52
      $region51: #{basic_block_forward.4} parent=39 // pred_region
        _
      $region52: #{basic_block_forward.4} parent=39 // pred_fallthru
        _
    $region40: #{basic_block_forward.4} parent=5 // pred_fallthru
      _
    %p1478 = scmp.le.s32.totalorder 2, %s14
    // Predicated region
    $region53: #{basic_block_forward.4} parent=5 // pred_check
      %p1479 = pneg %p1478
    $region54: #{basic_block_forward.4} parent=5 // pred_check_branch
      %1481 = sbr.rel (%p1479) target = $region56
    $region55: #{basic_block_forward.4} parent=5 // pred_region
      %s1482 = ssub.s32 %s14, 2
      // Predicated region
      $region57: #{basic_block_forward.4} parent=55 // pred_check
        %p1483 = pneg %p153
      $region58: #{basic_block_forward.4} parent=55 // pred_check_branch
        %1485 = sbr.rel (%p1483) target = $region60
      $region59: #{basic_block_forward.4} parent=55 // pred_region
        %p1486 = scmp.lt.s32.totalorder %s20, 1
        %s1487 = scalar_select %p1486, %s20, 1
        %s1488 = smul.addr %s1487, 8
        %s1489 = smul.addr %s1488, 4
        %s1490 = scalar_lea.vmem %s5, %s1489
      $region60: #{basic_block_forward.4} parent=55 // pred_fallthru
        _
      // Predicated region
      $region61: #{basic_block_forward.4} parent=55 // pred_check
        %p1491 = pneg %p179
      $region62: #{basic_block_forward.4} parent=55 // pred_check_branch
        %1493 = sbr.rel (%p1491) target = $region64
      $region63: #{basic_block_forward.4} parent=55 // pred_region
        %p1494 = scmp.lt.s32.totalorder %s20, 1
        %s1495 = scalar_select %p1494, %s20, 1
        %s1496 = smul.addr %s1495, 4
        %s1497 = smul.addr %s1496, 8
        %s1498 = scalar_lea.vmem %s6, %s1497
      $region64: #{basic_block_forward.4} parent=55 // pred_fallthru
        _
      // Predicated region
      $region65: #{basic_block_forward.4} parent=55 // pred_check
        %p1499 = pneg %p205
      $region66: #{basic_block_forward.4} parent=55 // pred_check_branch
        %1501 = sbr.rel (%p1499) target = $region68
      $region67: #{basic_block_forward.4} parent=55 // pred_region
        %p1502 = scmp.lt.s32.totalorder %s20, 1
        %s1503 = scalar_select %p1502, %s20, 1
        %s1504 = smul.addr %s1503, 4
        %s1505 = smul.addr %s1504, 8
        %s1506 = scalar_lea.vmem %s7, %s1505
      $region68: #{basic_block_forward.4} parent=55 // pred_fallthru
        _
    $region56: #{basic_block_forward.4} parent=5 // pred_fallthru
      _
  $region6: #{basic_block_forward.4} parent=0 // loop_footer
    %s18 = sadd.s32 1, %s14
  $region7: #{basic_block_forward.4} parent=0 // loop_footer_branch
    %13 = sbr.rel target = $region3
  $region8: #{basic_block_forward.4} parent=0 // loop_exit
    _

</llo_original>
